<compile_context>
chip_gen: v6e
topology: v6e:2x2x1
jax: 0.10.0
libtpu: 0.0.40
codegen_flags: <defaults>
</compile_context>

<pallas_src>
import functools
import math

import jax
import jax.numpy as jnp
from jax.experimental import pallas as pl
from jax.experimental.pallas import tpu as pltpu


# --------------------------------- kernel ------------------------------------

def _layernorm(h, gamma, beta, eps=1e-5):
    mean = jnp.mean(h, axis=-1, keepdims=True)
    var = jnp.mean((h - mean) ** 2, axis=-1, keepdims=True)
    return (h - mean) * jax.lax.rsqrt(var + eps) * gamma + beta


def encoder_block_kernel(x_ref, decay_ref, wq_ref, wkvd_ref, wup_ref, wo_ref,
                         w1_ref, bf1_ref, w2_ref, pslab_ref,
                         o_ref,
                         hq_ref, hk_ref, hv_ref, attn_ref,
                         *, num_heads, compute_dtype, approx_recip):
    f32 = jnp.float32
    cdt = compute_dtype
    _, T, C = x_ref.shape
    hd = C // num_heads

    x = x_ref[0]                                   # (T, C) f32
    xc = x.astype(cdt)

    # --- projections: every contraction is a full C / L wide MXU matmul ------
    q = jnp.dot(xc, wq_ref[...], preferred_element_type=f32)            # (T, C)
    latent = jnp.dot(xc, wkvd_ref[...], preferred_element_type=f32)     # (T, L)
    kv = jnp.dot(latent.astype(cdt), wup_ref[...],
                 preferred_element_type=f32)                            # (T, 2C) = [k_rec | v_rec]

    # scale folded into q (torch: scores / (sqrt(d_model) + 1e-8))
    qs = (q * (1.0 / (math.sqrt(C) + 1e-8))).astype(cdt)
    kvc = kv.astype(cdt)

    # --- head relayout through VMEM scratch (data movement only, no matmuls) -
    for h in range(num_heads):
        lo, hi = h * hd, (h + 1) * hd
        hq_ref[h] = qs[:, lo:hi]
        hk_ref[h] = kvc[:, lo:hi]
        hv_ref[h] = kvc[:, C + lo:C + hi]

    # --- attention: one head-batched contraction for scores and outputs ------
    s = jnp.einsum('hqd,hkd->hqk', hq_ref[...], hk_ref[...],
                   preferred_element_type=f32)                          # (H, T, T)
    s = jnp.where(s != s, -1.0e9, s)          # nan_to_num(nan=-1e9) (identity here)
    s = jnp.clip(s, -1.0e4, 1.0e4)
    s = s * decay_ref[...][None, :, :]        # time decay (wall clock cancels)
    s = jnp.where(s != s, -1.0e9, s)
    s = jnp.clip(s, -1.0e4, 1.0e4)

    m = jnp.max(s, axis=-1, keepdims=True)
    e = jnp.exp(s - m)
    p = e * pl.reciprocal(jnp.sum(e, axis=-1, keepdims=True), approx=approx_recip)

    a = jnp.einsum('hqk,hkd->hqd', p.astype(cdt), hv_ref[...],
                   preferred_element_type=f32)                          # (H, T, hd)

    # merge heads back to (T, C) in VMEM, then one full-width output projection
    for h in range(num_heads):
        attn_ref[:, h * hd:(h + 1) * hd] = a[h].astype(cdt)
    attn_out = jnp.dot(attn_ref[...], wo_ref[...], preferred_element_type=f32)

    # --- residual + LN1, FFN (+clamp), residual + LN2 -------------------------
    g1, b1 = pslab_ref[0:1, :], pslab_ref[1:2, :]
    g2, b2 = pslab_ref[2:3, :], pslab_ref[3:4, :]
    bf2 = pslab_ref[4:5, :]

    h1 = _layernorm(x + attn_out, g1, b1)     # dropout = identity (inference)

    f = jnp.dot(h1.astype(cdt), w1_ref[...], preferred_element_type=f32) + bf1_ref[...]
    f = jnp.maximum(f, 0.0)
    f = jnp.dot(f.astype(cdt), w2_ref[...], preferred_element_type=f32) + bf2
    f = jnp.clip(f, -5.0, 5.0)

    o_ref[0] = _layernorm(h1 + f, g2, b2)


# --------------------------------- wrapper -----------------------------------

def encoder_block(x, params, *, num_heads, lambda_decay=0.01,
                  compute_dtype=jnp.float32, mask=None):
    if mask is not None:
        # TODO(synk): additive attention-mask path not implemented (module is used with mask=None).
        raise NotImplementedError("mask is not supported")

    B, T, C = x.shape
    L = params['wdown_t'].shape[1]
    hd = C // num_heads
    assert C % num_heads == 0
    cdt = compute_dtype
    f32 = jnp.float32

    # One-time wrapper-side weight algebra (exact, weight-only preprocessing):
    #   latent = W_down_kv(W_k x + W_v x)  ==  x @ [(Wk_t + Wv_t) @ Wdown_t]
    w_kvdown = ((params['wk_t'] + params['wv_t']) @ params['wdown_t']).astype(cdt)   # (C, L)
    w_up = jnp.concatenate([params['wupk_t'], params['wupv_t']], axis=1).astype(cdt)  # (L, 2C)
    wq = params['wq_t'].astype(cdt)
    wo = params['wo_t'].astype(cdt)
    w1 = params['w1_t'].astype(cdt)
    w2 = params['w2_t'].astype(cdt)
    bf1 = params['bf1'].astype(f32)      # biases / LN params stay f32

    # Small per-channel params packed into a single (8, C) slab:
    #   row 0: ln1 gamma, 1: ln1 beta, 2: ln2 gamma, 3: ln2 beta, 4: ffn bias2
    pslab = jnp.zeros((8, C), f32)
    pslab = pslab.at[0].set(params['g1'][0]).at[1].set(params['b1'][0])
    pslab = pslab.at[2].set(params['g2'][0]).at[3].set(params['b2'][0])
    pslab = pslab.at[4].set(params['bf2'][0])

    # Deterministic time decay: the wall-clock offset cancels in |t_i - t_j|.
    idx = jnp.arange(T, dtype=f32)
    decay = jnp.exp(-lambda_decay * 0.01 * jnp.abs(idx[:, None] - idx[None, :]))

    kernel = functools.partial(
        encoder_block_kernel,
        num_heads=num_heads,
        compute_dtype=cdt,
        approx_recip=(cdt != jnp.float32),
    )

    def const(shape):
        return pl.BlockSpec(shape, lambda b: (0,) * len(shape))

    def nbytes(shape, dtype):
        return math.prod(shape) * jnp.dtype(dtype).itemsize

    block_bytes = (
        2 * nbytes((1, T, C), f32)               # x block + out block
        + nbytes((T, T), f32)                    # decay
        + 2 * nbytes((C, C), cdt)                # W_q, W_o
        + nbytes((C, L), cdt)
        + nbytes((L, 2 * C), cdt)
        + nbytes((C, 4 * C), cdt)
        + nbytes((4 * C, C), cdt)
        + nbytes((1, 4 * C), f32)
        + nbytes((8, C), f32)
    )
    scratch_bytes = 3 * nbytes((num_heads, T, hd), cdt) + nbytes((T, C), cdt)
    # 2x for double-buffered pipeline stages + headroom for compiler scratch.
    vmem_limit = int(min(max(2 * block_bytes + scratch_bytes + (8 << 20), 16 << 20),
                         120 << 20))

    return pl.pallas_call(
        kernel,
        out_shape=jax.ShapeDtypeStruct((B, T, C), f32),
        grid=(B,),
        in_specs=[
            pl.BlockSpec((1, T, C), lambda b: (b, 0, 0)),   # x (per-batch tile)
            const((T, T)),                                   # time decay
            const((C, C)),                                   # W_q
            const((C, L)),                                   # fused (Wk+Wv) @ Wdown
            const((L, 2 * C)),                               # packed [W_up_k | W_up_v]
            const((C, C)),                                   # W_o
            const((C, 4 * C)),                               # FFN W1
            const((1, 4 * C)),                               # FFN b1
            const((4 * C, C)),                               # FFN W2
            const((8, C)),                                   # packed LN / bias slab
        ],
        out_specs=pl.BlockSpec((1, T, C), lambda b: (b, 0, 0)),
        scratch_shapes=[
            pltpu.VMEM((num_heads, T, hd), cdt),   # q heads
            pltpu.VMEM((num_heads, T, hd), cdt),   # k heads
            pltpu.VMEM((num_heads, T, hd), cdt),   # v heads
            pltpu.VMEM((T, C), cdt),               # merged attention output
        ],
        compiler_params=pltpu.CompilerParams(
            dimension_semantics=("parallel",),
            vmem_limit_bytes=vmem_limit),
    )(x, decay, wq, w_kvdown, w_up, wo, w1, bf1, w2, pslab)


# ------------------------------ params / reference ----------------------------

def init_params(key, d_model, d_latent, num_heads):
    """Deterministic init mimicking nn.Linear defaults; weights stored (in, out)."""
    C, L = d_model, d_latent
    assert C % num_heads == 0
    ks = jax.random.split(key, 13)

    def linear(k, fan_in, fan_out, bias):
        kw, kb = jax.random.split(k)
        bound = 1.0 / math.sqrt(fan_in)
        w = jax.random.uniform(kw, (fan_in, fan_out), minval=-bound, maxval=bound,
                               dtype=jnp.float32)
        b = (jax.random.uniform(kb, (1, fan_out), minval=-bound, maxval=bound,
                                dtype=jnp.float32) if bias else None)
        return w, b

    wq_t, _ = linear(ks[0], C, C, False)
    wk_t, _ = linear(ks[1], C, C, False)
    wv_t, _ = linear(ks[2], C, C, False)
    wo_t, _ = linear(ks[3], C, C, False)
    wdown_t, _ = linear(ks[4], C, L, False)
    wupk_t, _ = linear(ks[5], L, C, False)
    wupv_t, _ = linear(ks[6], L, C, False)
    w1_t, bf1 = linear(ks[7], C, 4 * C, True)
    w2_t, bf2 = linear(ks[8], 4 * C, C, True)
    # LayerNorm affine params randomized away from the 1/0 default so the
    # affine path is actually exercised by the test.
    g1 = 1.0 + 0.1 * jax.random.normal(ks[9], (1, C), jnp.float32)
    b1 = 0.1 * jax.random.normal(ks[10], (1, C), jnp.float32)
    g2 = 1.0 + 0.1 * jax.random.normal(ks[11], (1, C), jnp.float32)
    b2 = 0.1 * jax.random.normal(ks[12], (1, C), jnp.float32)
    return dict(wq_t=wq_t, wk_t=wk_t, wv_t=wv_t, wo_t=wo_t,
                wdown_t=wdown_t, wupk_t=wupk_t, wupv_t=wupv_t,
                w1_t=w1_t, bf1=bf1, w2_t=w2_t, bf2=bf2,
                g1=g1, b1=b1, g2=g2, b2=b2)


def reference_forward(x, params, *, num_heads, lambda_decay=0.01,
                      matmul_dtype=jnp.float32):
    """Pure-JAX replica of the PyTorch forward (module-structured; no fusion)."""
    p = params
    B, T, C = x.shape
    hd = C // num_heads

    def mm(a, w):
        return jnp.dot(a.astype(matmul_dtype), w.astype(matmul_dtype),
                       preferred_element_type=jnp.float32)

    def bmm(eq, a, b):
        return jnp.einsum(eq, a.astype(matmul_dtype), b.astype(matmul_dtype),
                          preferred_element_type=jnp.float32)

    q = mm(x, p['wq_t'])
    k = mm(x, p['wk_t'])
    v = mm(x, p['wv_t'])
    latent = mm(k + v, p['wdown_t'])
    k_rec = mm(latent, p['wupk_t'])
    v_rec = mm(latent, p['wupv_t'])

    def heads(t):
        return t.reshape(B, T, num_heads, hd).transpose(0, 2, 1, 3)

    qh, kh, vh = heads(q), heads(k_rec), heads(v_rec)
    s = bmm('bhqd,bhkd->bhqk', qh, kh) / (math.sqrt(C) + 1e-8)
    s = jnp.clip(jnp.nan_to_num(s, nan=-1.0e9), -1.0e4, 1.0e4)
    idx = jnp.arange(T, dtype=jnp.float32)
    decay = jnp.exp(-lambda_decay * 0.01 * jnp.abs(idx[:, None] - idx[None, :]))
    s = s * decay[None, None]
    s = jnp.clip(jnp.nan_to_num(s, nan=-1.0e9), -1.0e4, 1.0e4)
    w = jax.nn.softmax(s, axis=-1)
    a = bmm('bhqk,bhkd->bhqd', w, vh).transpose(0, 2, 1, 3).reshape(B, T, C)
    attn_out = mm(a, p['wo_t'])

    def ln(h, g, b):
        m = h.mean(-1, keepdims=True)
        var = ((h - m) ** 2).mean(-1, keepdims=True)
        return (h - m) * jax.lax.rsqrt(var + 1e-5) * g + b

    h1 = ln(x + attn_out, p['g1'], p['b1'])
    f = jnp.maximum(mm(h1, p['w1_t']) + p['bf1'], 0.0)
    f = mm(f, p['w2_t']) + p['bf2']
    f = jnp.clip(f, -5.0, 5.0)
    return ln(h1 + f, p['g2'], p['b2'])


# ----------------------------------- main -------------------------------------

if __name__ == "__main__":
    B, T, C, H, L = 4, 32, 128, 4, 64   # lane-dense d_model, seq_len matches module
    lam = 0.01

    key = jax.random.PRNGKey(0)
    kx, kp = jax.random.split(key)
    x = jax.random.normal(kx, (B, T, C), dtype=jnp.float32)
    params = init_params(kp, C, L, H)

    # f32-MXU path: tight correctness check against module-structured reference.
    out_f32 = encoder_block(x, params, num_heads=H, lambda_decay=lam,
                            compute_dtype=jnp.float32)
    jax.block_until_ready(out_f32)
    ref_f32 = reference_forward(x, params, num_heads=H, lambda_decay=lam,
                                matmul_dtype=jnp.float32)
    err_f32 = float(jnp.max(jnp.abs(out_f32 - ref_f32)))
    assert out_f32.shape == (B, T, C)
    assert jnp.allclose(out_f32, ref_f32, atol=2e-3, rtol=2e-3), \
        f"f32 kernel mismatch: max abs err {err_f32}"

    # bf16-MXU path (f32 accumulation + f32 elementwise): quantization sanity check.
    out_bf16 = encoder_block(x, params, num_heads=H, lambda_decay=lam,
                             compute_dtype=jnp.bfloat16)
    jax.block_until_ready(out_bf16)
    ref_bf16 = reference_forward(x, params, num_heads=H, lambda_decay=lam,
                                 matmul_dtype=jnp.bfloat16)
    err_bf16 = float(jnp.max(jnp.abs(out_bf16 - ref_bf16)))
    assert jnp.allclose(out_bf16, ref_bf16, atol=5e-2, rtol=5e-2), \
        f"bf16 kernel mismatch: max abs err {err_bf16}"

    print("KERNEL_OK")
</pallas_src>

<mosaic_0001>
module attributes {stable_mosaic.version = 11 : i64} {
  func.func @encoder_block_kernel(%arg0: i32, %arg1: memref<1x32x128xf32, #tpu.memory_space<vmem>>, %arg2: memref<32x32xf32, #tpu.memory_space<vmem>>, %arg3: memref<128x128xf32, #tpu.memory_space<vmem>>, %arg4: memref<128x64xf32, #tpu.memory_space<vmem>>, %arg5: memref<64x256xf32, #tpu.memory_space<vmem>>, %arg6: memref<128x128xf32, #tpu.memory_space<vmem>>, %arg7: memref<128x512xf32, #tpu.memory_space<vmem>>, %arg8: memref<1x512xf32, #tpu.memory_space<vmem>>, %arg9: memref<512x128xf32, #tpu.memory_space<vmem>>, %arg10: memref<8x128xf32, #tpu.memory_space<vmem>>, %arg11: memref<1x32x128xf32, #tpu.memory_space<vmem>>, %arg12: memref<4x32x32xf32, #tpu.memory_space<vmem>>, %arg13: memref<4x32x32xf32, #tpu.memory_space<vmem>>, %arg14: memref<4x32x32xf32, #tpu.memory_space<vmem>>, %arg15: memref<32x128xf32, #tpu.memory_space<vmem>>) attributes {dimension_semantics = [#tpu.dimension_semantics<parallel>], iteration_bounds = array<i64: 4>, scalar_prefetch = 0 : i64, scratch_operands = 4 : i64, tpu.core_type = #tpu.core_type<tc>, window_params = [{transform_indices = @transform_0, window_bounds = array<i64: 1, 32, 128>}, {pipeline_mode = #tpu.pipeline_mode<synchronous>, transform_indices = @transform_1, window_bounds = array<i64: 32, 32>}, {pipeline_mode = #tpu.pipeline_mode<synchronous>, transform_indices = @transform_2, window_bounds = array<i64: 128, 128>}, {pipeline_mode = #tpu.pipeline_mode<synchronous>, transform_indices = @transform_3, window_bounds = array<i64: 128, 64>}, {pipeline_mode = #tpu.pipeline_mode<synchronous>, transform_indices = @transform_4, window_bounds = array<i64: 64, 256>}, {pipeline_mode = #tpu.pipeline_mode<synchronous>, transform_indices = @transform_5, window_bounds = array<i64: 128, 128>}, {pipeline_mode = #tpu.pipeline_mode<synchronous>, transform_indices = @transform_6, window_bounds = array<i64: 128, 512>}, {pipeline_mode = #tpu.pipeline_mode<synchronous>, transform_indices = @transform_7, window_bounds = array<i64: 1, 512>}, {pipeline_mode = #tpu.pipeline_mode<synchronous>, transform_indices = @transform_8, window_bounds = array<i64: 512, 128>}, {pipeline_mode = #tpu.pipeline_mode<synchronous>, transform_indices = @transform_9, window_bounds = array<i64: 8, 128>}, {transform_indices = @transform_10, window_bounds = array<i64: 1, 32, 128>}]} {
    %c0 = arith.constant 0 : index
    %c0_0 = arith.constant 0 : index
    %c0_1 = arith.constant 0 : index
    %0 = vector.load %arg1[%c0, %c0_0, %c0_1] : memref<1x32x128xf32, #tpu.memory_space<vmem>>, vector<1x32x128xf32>
    %1 = vector.shape_cast %0 : vector<1x32x128xf32> to vector<32x128xf32>
    %c0_2 = arith.constant 0 : index
    %c0_3 = arith.constant 0 : index
    %2 = vector.load %arg3[%c0_2, %c0_3] : memref<128x128xf32, #tpu.memory_space<vmem>>, vector<128x128xf32>
    %cst = arith.constant dense<0.000000e+00> : vector<32x128xf32>
    %3 = tpu.matmul %1, %2, %cst {dimension_numbers = #tpu.dot_dimension_numbers<[1], [0], [0], [1], [0, 0, 1, 1], [], []>} : vector<32x128xf32>, vector<128x128xf32>, vector<32x128xf32> -> vector<32x128xf32>
    %c0_4 = arith.constant 0 : index
    %c0_5 = arith.constant 0 : index
    %4 = vector.load %arg4[%c0_4, %c0_5] : memref<128x64xf32, #tpu.memory_space<vmem>>, vector<128x64xf32>
    %cst_6 = arith.constant dense<0.000000e+00> : vector<32x64xf32>
    %5 = tpu.matmul %1, %4, %cst_6 {dimension_numbers = #tpu.dot_dimension_numbers<[1], [0], [0], [1], [0, 0, 1, 1], [], []>} : vector<32x128xf32>, vector<128x64xf32>, vector<32x64xf32> -> vector<32x64xf32>
    %c0_7 = arith.constant 0 : index
    %c0_8 = arith.constant 0 : index
    %6 = vector.load %arg5[%c0_7, %c0_8] : memref<64x256xf32, #tpu.memory_space<vmem>>, vector<64x256xf32>
    %cst_9 = arith.constant dense<0.000000e+00> : vector<32x256xf32>
    %7 = tpu.matmul %5, %6, %cst_9 {dimension_numbers = #tpu.dot_dimension_numbers<[1], [0], [0], [1], [0, 0, 1, 1], [], []>} : vector<32x64xf32>, vector<64x256xf32>, vector<32x256xf32> -> vector<32x256xf32>
    %cst_10 = arith.constant 0.0883883461 : f32
    %8 = vector.broadcast %cst_10 : f32 to vector<32x128xf32>
    %9 = arith.mulf %3, %8 : vector<32x128xf32>
    %10 = vector.extract_strided_slice %9 {offsets = [0, 0], sizes = [32, 32], strides = [1, 1]} : vector<32x128xf32> to vector<32x32xf32>
    %c0_11 = arith.constant 0 : index
    %c0_12 = arith.constant 0 : index
    %c0_13 = arith.constant 0 : index
    %11 = vector.load %arg12[%c0_11, %c0_12, %c0_13] : memref<4x32x32xf32, #tpu.memory_space<vmem>>, vector<1x32x32xf32>
    %12 = vector.shape_cast %11 : vector<1x32x32xf32> to vector<32x32xf32>
    %13 = vector.shape_cast %10 : vector<32x32xf32> to vector<1x32x32xf32>
    tpu.vector_store %arg12[%c0_11, %c0_12, %c0_13], %13 {strides = array<i32>} : memref<4x32x32xf32, #tpu.memory_space<vmem>>, vector<1x32x32xf32>,
    %14 = vector.extract_strided_slice %7 {offsets = [0, 0], sizes = [32, 32], strides = [1, 1]} : vector<32x256xf32> to vector<32x32xf32>
    %c0_14 = arith.constant 0 : index
    %c0_15 = arith.constant 0 : index
    %c0_16 = arith.constant 0 : index
    %15 = vector.load %arg13[%c0_14, %c0_15, %c0_16] : memref<4x32x32xf32, #tpu.memory_space<vmem>>, vector<1x32x32xf32>
    %16 = vector.shape_cast %15 : vector<1x32x32xf32> to vector<32x32xf32>
    %17 = vector.shape_cast %14 : vector<32x32xf32> to vector<1x32x32xf32>
    tpu.vector_store %arg13[%c0_14, %c0_15, %c0_16], %17 {strides = array<i32>} : memref<4x32x32xf32, #tpu.memory_space<vmem>>, vector<1x32x32xf32>,
    %18 = vector.extract_strided_slice %7 {offsets = [0, 128], sizes = [32, 32], strides = [1, 1]} : vector<32x256xf32> to vector<32x32xf32>
    %c0_17 = arith.constant 0 : index
    %c0_18 = arith.constant 0 : index
    %c0_19 = arith.constant 0 : index
    %19 = vector.load %arg14[%c0_17, %c0_18, %c0_19] : memref<4x32x32xf32, #tpu.memory_space<vmem>>, vector<1x32x32xf32>
    %20 = vector.shape_cast %19 : vector<1x32x32xf32> to vector<32x32xf32>
    %21 = vector.shape_cast %18 : vector<32x32xf32> to vector<1x32x32xf32>
    tpu.vector_store %arg14[%c0_17, %c0_18, %c0_19], %21 {strides = array<i32>} : memref<4x32x32xf32, #tpu.memory_space<vmem>>, vector<1x32x32xf32>,
    %22 = vector.extract_strided_slice %9 {offsets = [0, 32], sizes = [32, 32], strides = [1, 1]} : vector<32x128xf32> to vector<32x32xf32>
    %c1 = arith.constant 1 : index
    %c0_20 = arith.constant 0 : index
    %c0_21 = arith.constant 0 : index
    %23 = vector.load %arg12[%c1, %c0_20, %c0_21] : memref<4x32x32xf32, #tpu.memory_space<vmem>>, vector<1x32x32xf32>
    %24 = vector.shape_cast %23 : vector<1x32x32xf32> to vector<32x32xf32>
    %25 = vector.shape_cast %22 : vector<32x32xf32> to vector<1x32x32xf32>
    tpu.vector_store %arg12[%c1, %c0_20, %c0_21], %25 {strides = array<i32>} : memref<4x32x32xf32, #tpu.memory_space<vmem>>, vector<1x32x32xf32>,
    %26 = vector.extract_strided_slice %7 {offsets = [0, 32], sizes = [32, 32], strides = [1, 1]} : vector<32x256xf32> to vector<32x32xf32>
    %c1_22 = arith.constant 1 : index
    %c0_23 = arith.constant 0 : index
    %c0_24 = arith.constant 0 : index
    %27 = vector.load %arg13[%c1_22, %c0_23, %c0_24] : memref<4x32x32xf32, #tpu.memory_space<vmem>>, vector<1x32x32xf32>
    %28 = vector.shape_cast %27 : vector<1x32x32xf32> to vector<32x32xf32>
    %29 = vector.shape_cast %26 : vector<32x32xf32> to vector<1x32x32xf32>
    tpu.vector_store %arg13[%c1_22, %c0_23, %c0_24], %29 {strides = array<i32>} : memref<4x32x32xf32, #tpu.memory_space<vmem>>, vector<1x32x32xf32>,
    %30 = vector.extract_strided_slice %7 {offsets = [0, 160], sizes = [32, 32], strides = [1, 1]} : vector<32x256xf32> to vector<32x32xf32>
    %c1_25 = arith.constant 1 : index
    %c0_26 = arith.constant 0 : index
    %c0_27 = arith.constant 0 : index
    %31 = vector.load %arg14[%c1_25, %c0_26, %c0_27] : memref<4x32x32xf32, #tpu.memory_space<vmem>>, vector<1x32x32xf32>
    %32 = vector.shape_cast %31 : vector<1x32x32xf32> to vector<32x32xf32>
    %33 = vector.shape_cast %30 : vector<32x32xf32> to vector<1x32x32xf32>
    tpu.vector_store %arg14[%c1_25, %c0_26, %c0_27], %33 {strides = array<i32>} : memref<4x32x32xf32, #tpu.memory_space<vmem>>, vector<1x32x32xf32>,
    %34 = vector.extract_strided_slice %9 {offsets = [0, 64], sizes = [32, 32], strides = [1, 1]} : vector<32x128xf32> to vector<32x32xf32>
    %c2 = arith.constant 2 : index
    %c0_28 = arith.constant 0 : index
    %c0_29 = arith.constant 0 : index
    %35 = vector.load %arg12[%c2, %c0_28, %c0_29] : memref<4x32x32xf32, #tpu.memory_space<vmem>>, vector<1x32x32xf32>
    %36 = vector.shape_cast %35 : vector<1x32x32xf32> to vector<32x32xf32>
    %37 = vector.shape_cast %34 : vector<32x32xf32> to vector<1x32x32xf32>
    tpu.vector_store %arg12[%c2, %c0_28, %c0_29], %37 {strides = array<i32>} : memref<4x32x32xf32, #tpu.memory_space<vmem>>, vector<1x32x32xf32>,
    %38 = vector.extract_strided_slice %7 {offsets = [0, 64], sizes = [32, 32], strides = [1, 1]} : vector<32x256xf32> to vector<32x32xf32>
    %c2_30 = arith.constant 2 : index
    %c0_31 = arith.constant 0 : index
    %c0_32 = arith.constant 0 : index
    %39 = vector.load %arg13[%c2_30, %c0_31, %c0_32] : memref<4x32x32xf32, #tpu.memory_space<vmem>>, vector<1x32x32xf32>
    %40 = vector.shape_cast %39 : vector<1x32x32xf32> to vector<32x32xf32>
    %41 = vector.shape_cast %38 : vector<32x32xf32> to vector<1x32x32xf32>
    tpu.vector_store %arg13[%c2_30, %c0_31, %c0_32], %41 {strides = array<i32>} : memref<4x32x32xf32, #tpu.memory_space<vmem>>, vector<1x32x32xf32>,
    %42 = vector.extract_strided_slice %7 {offsets = [0, 192], sizes = [32, 32], strides = [1, 1]} : vector<32x256xf32> to vector<32x32xf32>
    %c2_33 = arith.constant 2 : index
    %c0_34 = arith.constant 0 : index
    %c0_35 = arith.constant 0 : index
    %43 = vector.load %arg14[%c2_33, %c0_34, %c0_35] : memref<4x32x32xf32, #tpu.memory_space<vmem>>, vector<1x32x32xf32>
    %44 = vector.shape_cast %43 : vector<1x32x32xf32> to vector<32x32xf32>
    %45 = vector.shape_cast %42 : vector<32x32xf32> to vector<1x32x32xf32>
    tpu.vector_store %arg14[%c2_33, %c0_34, %c0_35], %45 {strides = array<i32>} : memref<4x32x32xf32, #tpu.memory_space<vmem>>, vector<1x32x32xf32>,
    %46 = vector.extract_strided_slice %9 {offsets = [0, 96], sizes = [32, 32], strides = [1, 1]} : vector<32x128xf32> to vector<32x32xf32>
    %c3 = arith.constant 3 : index
    %c0_36 = arith.constant 0 : index
    %c0_37 = arith.constant 0 : index
    %47 = vector.load %arg12[%c3, %c0_36, %c0_37] : memref<4x32x32xf32, #tpu.memory_space<vmem>>, vector<1x32x32xf32>
    %48 = vector.shape_cast %47 : vector<1x32x32xf32> to vector<32x32xf32>
    %49 = vector.shape_cast %46 : vector<32x32xf32> to vector<1x32x32xf32>
    tpu.vector_store %arg12[%c3, %c0_36, %c0_37], %49 {strides = array<i32>} : memref<4x32x32xf32, #tpu.memory_space<vmem>>, vector<1x32x32xf32>,
    %50 = vector.extract_strided_slice %7 {offsets = [0, 96], sizes = [32, 32], strides = [1, 1]} : vector<32x256xf32> to vector<32x32xf32>
    %c3_38 = arith.constant 3 : index
    %c0_39 = arith.constant 0 : index
    %c0_40 = arith.constant 0 : index
    %51 = vector.load %arg13[%c3_38, %c0_39, %c0_40] : memref<4x32x32xf32, #tpu.memory_space<vmem>>, vector<1x32x32xf32>
    %52 = vector.shape_cast %51 : vector<1x32x32xf32> to vector<32x32xf32>
    %53 = vector.shape_cast %50 : vector<32x32xf32> to vector<1x32x32xf32>
    tpu.vector_store %arg13[%c3_38, %c0_39, %c0_40], %53 {strides = array<i32>} : memref<4x32x32xf32, #tpu.memory_space<vmem>>, vector<1x32x32xf32>,
    %54 = vector.extract_strided_slice %7 {offsets = [0, 224], sizes = [32, 32], strides = [1, 1]} : vector<32x256xf32> to vector<32x32xf32>
    %c3_41 = arith.constant 3 : index
    %c0_42 = arith.constant 0 : index
    %c0_43 = arith.constant 0 : index
    %55 = vector.load %arg14[%c3_41, %c0_42, %c0_43] : memref<4x32x32xf32, #tpu.memory_space<vmem>>, vector<1x32x32xf32>
    %56 = vector.shape_cast %55 : vector<1x32x32xf32> to vector<32x32xf32>
    %57 = vector.shape_cast %54 : vector<32x32xf32> to vector<1x32x32xf32>
    tpu.vector_store %arg14[%c3_41, %c0_42, %c0_43], %57 {strides = array<i32>} : memref<4x32x32xf32, #tpu.memory_space<vmem>>, vector<1x32x32xf32>,
    %c0_44 = arith.constant 0 : index
    %c0_45 = arith.constant 0 : index
    %c0_46 = arith.constant 0 : index
    %58 = vector.load %arg12[%c0_44, %c0_45, %c0_46] : memref<4x32x32xf32, #tpu.memory_space<vmem>>, vector<4x32x32xf32>
    %c0_47 = arith.constant 0 : index
    %c0_48 = arith.constant 0 : index
    %c0_49 = arith.constant 0 : index
    %59 = vector.load %arg13[%c0_47, %c0_48, %c0_49] : memref<4x32x32xf32, #tpu.memory_space<vmem>>, vector<4x32x32xf32>
    "tpu.trace_start"() <{level = 10 : i32, message = "hqd,hkd->hqk"}> : () -> ()
    %cst_50 = arith.constant dense<0.000000e+00> : vector<4x32x32xf32>
    %60 = tpu.matmul %58, %59, %cst_50 {dimension_numbers = #tpu.dot_dimension_numbers<[2], [2], [1], [1], [0, 0, 0, 1, 1, 1], [0], [0]>} : vector<4x32x32xf32>, vector<4x32x32xf32>, vector<4x32x32xf32> -> vector<4x32x32xf32>
    "tpu.trace_stop"() : () -> ()
    %61 = arith.cmpf one, %60, %60 : vector<4x32x32xf32>
    %cst_51 = arith.constant -1.000000e+09 : f32
    %62 = vector.broadcast %cst_51 : f32 to vector<4x32x32xf32>
    %63 = arith.select %61, %62, %60 : vector<4x32x32xi1>, vector<4x32x32xf32>
    %cst_52 = arith.constant -1.000000e+04 : f32
    %cst_53 = arith.constant 1.000000e+04 : f32
    %64 = vector.broadcast %cst_52 : f32 to vector<4x32x32xf32>
    %65 = arith.maximumf %64, %63 : vector<4x32x32xf32>
    %66 = vector.broadcast %cst_53 : f32 to vector<4x32x32xf32>
    %67 = arith.minimumf %66, %65 : vector<4x32x32xf32>
    %c0_54 = arith.constant 0 : index
    %c0_55 = arith.constant 0 : index
    %68 = vector.load %arg2[%c0_54, %c0_55] : memref<32x32xf32, #tpu.memory_space<vmem>>, vector<32x32xf32>
    %69 = vector.shape_cast %68 : vector<32x32xf32> to vector<1x32x32xf32>
    %70 = vector.broadcast %69 : vector<1x32x32xf32> to vector<4x32x32xf32>
    %71 = arith.mulf %67, %70 : vector<4x32x32xf32>
    %72 = arith.cmpf one, %71, %71 : vector<4x32x32xf32>
    %cst_56 = arith.constant -1.000000e+09 : f32
    %73 = vector.broadcast %cst_56 : f32 to vector<4x32x32xf32>
    %74 = arith.select %72, %73, %71 : vector<4x32x32xi1>, vector<4x32x32xf32>
    %cst_57 = arith.constant -1.000000e+04 : f32
    %cst_58 = arith.constant 1.000000e+04 : f32
    %75 = vector.broadcast %cst_57 : f32 to vector<4x32x32xf32>
    %76 = arith.maximumf %75, %74 : vector<4x32x32xf32>
    %77 = vector.broadcast %cst_58 : f32 to vector<4x32x32xf32>
    %78 = arith.minimumf %77, %76 : vector<4x32x32xf32>
    %cst_59 = arith.constant dense<0xFF800000> : vector<4x32xf32>
    %79 = vector.multi_reduction <maximumf>, %78, %cst_59 [2] : vector<4x32x32xf32> to vector<4x32xf32>
    %80 = vector.shape_cast %79 : vector<4x32xf32> to vector<4x32x1xf32>
    %81 = vector.broadcast %80 : vector<4x32x1xf32> to vector<4x32x32xf32>
    %82 = arith.subf %78, %81 : vector<4x32x32xf32>
    %83 = math.exp %82 : vector<4x32x32xf32>
    %cst_60 = arith.constant dense<0.000000e+00> : vector<4x32xf32>
    %84 = vector.multi_reduction <add>, %83, %cst_60 [2] : vector<4x32x32xf32> to vector<4x32xf32>
    %85 = vector.shape_cast %84 : vector<4x32xf32> to vector<4x32x1xf32>
    %86 = tpu.reciprocal %85 : vector<4x32x1xf32> -> vector<4x32x1xf32>
    %87 = vector.broadcast %86 : vector<4x32x1xf32> to vector<4x32x32xf32>
    %88 = arith.mulf %83, %87 : vector<4x32x32xf32>
    %c0_61 = arith.constant 0 : index
    %c0_62 = arith.constant 0 : index
    %c0_63 = arith.constant 0 : index
    %89 = vector.load %arg14[%c0_61, %c0_62, %c0_63] : memref<4x32x32xf32, #tpu.memory_space<vmem>>, vector<4x32x32xf32>
    "tpu.trace_start"() <{level = 10 : i32, message = "hqk,hkd->hqd"}> : () -> ()
    %cst_64 = arith.constant dense<0.000000e+00> : vector<4x32x32xf32>
    %90 = tpu.matmul %88, %89, %cst_64 {dimension_numbers = #tpu.dot_dimension_numbers<[2], [1], [1], [2], [0, 0, 0, 1, 1, 2], [0], [0]>} : vector<4x32x32xf32>, vector<4x32x32xf32>, vector<4x32x32xf32> -> vector<4x32x32xf32>
    "tpu.trace_stop"() : () -> ()
    %91 = vector.extract_strided_slice %90 {offsets = [0, 0, 0], sizes = [1, 32, 32], strides = [1, 1, 1]} : vector<4x32x32xf32> to vector<1x32x32xf32>
    %92 = vector.shape_cast %91 : vector<1x32x32xf32> to vector<32x32xf32>
    %c0_65 = arith.constant 0 : index
    %c0_66 = arith.constant 0 : index
    %93 = vector.load %arg15[%c0_65, %c0_66] : memref<32x128xf32, #tpu.memory_space<vmem>>, vector<32x32xf32>
    tpu.vector_store %arg15[%c0_65, %c0_66], %92 {strides = array<i32>} : memref<32x128xf32, #tpu.memory_space<vmem>>, vector<32x32xf32>,
    %94 = vector.extract_strided_slice %90 {offsets = [1, 0, 0], sizes = [1, 32, 32], strides = [1, 1, 1]} : vector<4x32x32xf32> to vector<1x32x32xf32>
    %95 = vector.shape_cast %94 : vector<1x32x32xf32> to vector<32x32xf32>
    %c0_67 = arith.constant 0 : index
    %c32 = arith.constant 32 : index
    %96 = vector.load %arg15[%c0_67, %c32] : memref<32x128xf32, #tpu.memory_space<vmem>>, vector<32x32xf32>
    tpu.vector_store %arg15[%c0_67, %c32], %95 {strides = array<i32>} : memref<32x128xf32, #tpu.memory_space<vmem>>, vector<32x32xf32>,
    %97 = vector.extract_strided_slice %90 {offsets = [2, 0, 0], sizes = [1, 32, 32], strides = [1, 1, 1]} : vector<4x32x32xf32> to vector<1x32x32xf32>
    %98 = vector.shape_cast %97 : vector<1x32x32xf32> to vector<32x32xf32>
    %c0_68 = arith.constant 0 : index
    %c64 = arith.constant 64 : index
    %99 = vector.load %arg15[%c0_68, %c64] : memref<32x128xf32, #tpu.memory_space<vmem>>, vector<32x32xf32>
    tpu.vector_store %arg15[%c0_68, %c64], %98 {strides = array<i32>} : memref<32x128xf32, #tpu.memory_space<vmem>>, vector<32x32xf32>,
    %100 = vector.extract_strided_slice %90 {offsets = [3, 0, 0], sizes = [1, 32, 32], strides = [1, 1, 1]} : vector<4x32x32xf32> to vector<1x32x32xf32>
    %101 = vector.shape_cast %100 : vector<1x32x32xf32> to vector<32x32xf32>
    %c0_69 = arith.constant 0 : index
    %c96 = arith.constant 96 : index
    %102 = vector.load %arg15[%c0_69, %c96] : memref<32x128xf32, #tpu.memory_space<vmem>>, vector<32x32xf32>
    tpu.vector_store %arg15[%c0_69, %c96], %101 {strides = array<i32>} : memref<32x128xf32, #tpu.memory_space<vmem>>, vector<32x32xf32>,
    %c0_70 = arith.constant 0 : index
    %c0_71 = arith.constant 0 : index
    %103 = vector.load %arg15[%c0_70, %c0_71] : memref<32x128xf32, #tpu.memory_space<vmem>>, vector<32x128xf32>
    %c0_72 = arith.constant 0 : index
    %c0_73 = arith.constant 0 : index
    %104 = vector.load %arg6[%c0_72, %c0_73] : memref<128x128xf32, #tpu.memory_space<vmem>>, vector<128x128xf32>
    %cst_74 = arith.constant dense<0.000000e+00> : vector<32x128xf32>
    %105 = tpu.matmul %103, %104, %cst_74 {dimension_numbers = #tpu.dot_dimension_numbers<[1], [0], [0], [1], [0, 0, 1, 1], [], []>} : vector<32x128xf32>, vector<128x128xf32>, vector<32x128xf32> -> vector<32x128xf32>
    %c0_75 = arith.constant 0 : index
    %c0_76 = arith.constant 0 : index
    %106 = vector.load %arg10[%c0_75, %c0_76] : memref<8x128xf32, #tpu.memory_space<vmem>>, vector<1x128xf32>
    %c1_77 = arith.constant 1 : index
    %c0_78 = arith.constant 0 : index
    %107 = vector.load %arg10[%c1_77, %c0_78] : memref<8x128xf32, #tpu.memory_space<vmem>>, vector<1x128xf32>
    %c2_79 = arith.constant 2 : index
    %c0_80 = arith.constant 0 : index
    %108 = vector.load %arg10[%c2_79, %c0_80] : memref<8x128xf32, #tpu.memory_space<vmem>>, vector<1x128xf32>
    %c3_81 = arith.constant 3 : index
    %c0_82 = arith.constant 0 : index
    %109 = vector.load %arg10[%c3_81, %c0_82] : memref<8x128xf32, #tpu.memory_space<vmem>>, vector<1x128xf32>
    %c4 = arith.constant 4 : index
    %c0_83 = arith.constant 0 : index
    %110 = vector.load %arg10[%c4, %c0_83] : memref<8x128xf32, #tpu.memory_space<vmem>>, vector<1x128xf32>
    %111 = arith.addf %1, %105 : vector<32x128xf32>
    %cst_84 = arith.constant dense<0.000000e+00> : vector<32xf32>
    %112 = vector.multi_reduction <add>, %111, %cst_84 [1] : vector<32x128xf32> to vector<32xf32>
    %113 = vector.shape_cast %112 : vector<32xf32> to vector<32x1xf32>
    %cst_85 = arith.constant 1.280000e+02 : f32
    %114 = vector.broadcast %cst_85 : f32 to vector<32x1xf32>
    %115 = arith.divf %113, %114 : vector<32x1xf32>
    %116 = vector.broadcast %115 : vector<32x1xf32> to vector<32x128xf32>
    %117 = arith.subf %111, %116 : vector<32x128xf32>
    %118 = arith.mulf %117, %117 : vector<32x128xf32>
    %cst_86 = arith.constant dense<0.000000e+00> : vector<32xf32>
    %119 = vector.multi_reduction <add>, %118, %cst_86 [1] : vector<32x128xf32> to vector<32xf32>
    %120 = vector.shape_cast %119 : vector<32xf32> to vector<32x1xf32>
    %cst_87 = arith.constant 1.280000e+02 : f32
    %121 = vector.broadcast %cst_87 : f32 to vector<32x1xf32>
    %122 = arith.divf %120, %121 : vector<32x1xf32>
    %123 = vector.broadcast %115 : vector<32x1xf32> to vector<32x128xf32>
    %124 = arith.subf %111, %123 : vector<32x128xf32>
    %cst_88 = arith.constant 9.99999974E-6 : f32
    %125 = vector.broadcast %cst_88 : f32 to vector<32x1xf32>
    %126 = arith.addf %122, %125 : vector<32x1xf32>
    %127 = math.rsqrt %126 : vector<32x1xf32>
    %128 = vector.broadcast %127 : vector<32x1xf32> to vector<32x128xf32>
    %129 = arith.mulf %124, %128 : vector<32x128xf32>
    %130 = vector.broadcast %106 : vector<1x128xf32> to vector<32x128xf32>
    %131 = arith.mulf %129, %130 : vector<32x128xf32>
    %132 = vector.broadcast %107 : vector<1x128xf32> to vector<32x128xf32>
    %133 = arith.addf %131, %132 : vector<32x128xf32>
    %c0_89 = arith.constant 0 : index
    %c0_90 = arith.constant 0 : index
    %134 = vector.load %arg7[%c0_89, %c0_90] : memref<128x512xf32, #tpu.memory_space<vmem>>, vector<128x512xf32>
    %cst_91 = arith.constant dense<0.000000e+00> : vector<32x512xf32>
    %135 = tpu.matmul %133, %134, %cst_91 {dimension_numbers = #tpu.dot_dimension_numbers<[1], [0], [0], [1], [0, 0, 1, 1], [], []>} : vector<32x128xf32>, vector<128x512xf32>, vector<32x512xf32> -> vector<32x512xf32>
    %c0_92 = arith.constant 0 : index
    %c0_93 = arith.constant 0 : index
    %136 = vector.load %arg8[%c0_92, %c0_93] : memref<1x512xf32, #tpu.memory_space<vmem>>, vector<1x512xf32>
    %137 = vector.broadcast %136 : vector<1x512xf32> to vector<32x512xf32>
    %138 = arith.addf %135, %137 : vector<32x512xf32>
    %cst_94 = arith.constant 0.000000e+00 : f32
    %139 = vector.broadcast %cst_94 : f32 to vector<32x512xf32>
    %140 = arith.maximumf %138, %139 : vector<32x512xf32>
    %c0_95 = arith.constant 0 : index
    %c0_96 = arith.constant 0 : index
    %141 = vector.load %arg9[%c0_95, %c0_96] : memref<512x128xf32, #tpu.memory_space<vmem>>, vector<512x128xf32>
    %cst_97 = arith.constant dense<0.000000e+00> : vector<32x128xf32>
    %142 = tpu.matmul %140, %141, %cst_97 {dimension_numbers = #tpu.dot_dimension_numbers<[1], [0], [0], [1], [0, 0, 1, 1], [], []>} : vector<32x512xf32>, vector<512x128xf32>, vector<32x128xf32> -> vector<32x128xf32>
    %143 = vector.broadcast %110 : vector<1x128xf32> to vector<32x128xf32>
    %144 = arith.addf %142, %143 : vector<32x128xf32>
    %cst_98 = arith.constant -5.000000e+00 : f32
    %cst_99 = arith.constant 5.000000e+00 : f32
    %145 = vector.broadcast %cst_98 : f32 to vector<32x128xf32>
    %146 = arith.maximumf %145, %144 : vector<32x128xf32>
    %147 = vector.broadcast %cst_99 : f32 to vector<32x128xf32>
    %148 = arith.minimumf %147, %146 : vector<32x128xf32>
    %149 = arith.addf %133, %148 : vector<32x128xf32>
    %cst_100 = arith.constant dense<0.000000e+00> : vector<32xf32>
    %150 = vector.multi_reduction <add>, %149, %cst_100 [1] : vector<32x128xf32> to vector<32xf32>
    %151 = vector.shape_cast %150 : vector<32xf32> to vector<32x1xf32>
    %cst_101 = arith.constant 1.280000e+02 : f32
    %152 = vector.broadcast %cst_101 : f32 to vector<32x1xf32>
    %153 = arith.divf %151, %152 : vector<32x1xf32>
    %154 = vector.broadcast %153 : vector<32x1xf32> to vector<32x128xf32>
    %155 = arith.subf %149, %154 : vector<32x128xf32>
    %156 = arith.mulf %155, %155 : vector<32x128xf32>
    %cst_102 = arith.constant dense<0.000000e+00> : vector<32xf32>
    %157 = vector.multi_reduction <add>, %156, %cst_102 [1] : vector<32x128xf32> to vector<32xf32>
    %158 = vector.shape_cast %157 : vector<32xf32> to vector<32x1xf32>
    %cst_103 = arith.constant 1.280000e+02 : f32
    %159 = vector.broadcast %cst_103 : f32 to vector<32x1xf32>
    %160 = arith.divf %158, %159 : vector<32x1xf32>
    %161 = vector.broadcast %153 : vector<32x1xf32> to vector<32x128xf32>
    %162 = arith.subf %149, %161 : vector<32x128xf32>
    %cst_104 = arith.constant 9.99999974E-6 : f32
    %163 = vector.broadcast %cst_104 : f32 to vector<32x1xf32>
    %164 = arith.addf %160, %163 : vector<32x1xf32>
    %165 = math.rsqrt %164 : vector<32x1xf32>
    %166 = vector.broadcast %165 : vector<32x1xf32> to vector<32x128xf32>
    %167 = arith.mulf %162, %166 : vector<32x128xf32>
    %168 = vector.broadcast %108 : vector<1x128xf32> to vector<32x128xf32>
    %169 = arith.mulf %167, %168 : vector<32x128xf32>
    %170 = vector.broadcast %109 : vector<1x128xf32> to vector<32x128xf32>
    %171 = arith.addf %169, %170 : vector<32x128xf32>
    %c0_105 = arith.constant 0 : index
    %c0_106 = arith.constant 0 : index
    %c0_107 = arith.constant 0 : index
    %172 = vector.load %arg11[%c0_105, %c0_106, %c0_107] : memref<1x32x128xf32, #tpu.memory_space<vmem>>, vector<1x32x128xf32>
    %173 = vector.shape_cast %172 : vector<1x32x128xf32> to vector<32x128xf32>
    %174 = vector.shape_cast %171 : vector<32x128xf32> to vector<1x32x128xf32>
    tpu.vector_store %arg11[%c0_105, %c0_106, %c0_107], %174 {strides = array<i32>} : memref<1x32x128xf32, #tpu.memory_space<vmem>>, vector<1x32x128xf32>,
    return
  }
  func.func @transform_0(%arg0: i32) -> (i32, i32, i32) {
    %c0_i32 = arith.constant 0 : i32
    %c0_i32_0 = arith.constant 0 : i32
    %c0_i32_1 = arith.constant 0 : i32
    return %arg0, %c0_i32, %c0_i32_0 : i32, i32, i32
  }
  func.func @transform_1(%arg0: i32) -> (i32, i32) {
    %c0_i32 = arith.constant 0 : i32
    %c0_i32_0 = arith.constant 0 : i32
    %c0_i32_1 = arith.constant 0 : i32
    return %c0_i32, %c0_i32_0 : i32, i32
  }
  func.func @transform_2(%arg0: i32) -> (i32, i32) {
    %c0_i32 = arith.constant 0 : i32
    %c0_i32_0 = arith.constant 0 : i32
    %c0_i32_1 = arith.constant 0 : i32
    return %c0_i32, %c0_i32_0 : i32, i32
  }
  func.func @transform_3(%arg0: i32) -> (i32, i32) {
    %c0_i32 = arith.constant 0 : i32
    %c0_i32_0 = arith.constant 0 : i32
    %c0_i32_1 = arith.constant 0 : i32
    return %c0_i32, %c0_i32_0 : i32, i32
  }
  func.func @transform_4(%arg0: i32) -> (i32, i32) {
    %c0_i32 = arith.constant 0 : i32
    %c0_i32_0 = arith.constant 0 : i32
    %c0_i32_1 = arith.constant 0 : i32
    return %c0_i32, %c0_i32_0 : i32, i32
  }
  func.func @transform_5(%arg0: i32) -> (i32, i32) {
    %c0_i32 = arith.constant 0 : i32
    %c0_i32_0 = arith.constant 0 : i32
    %c0_i32_1 = arith.constant 0 : i32
    return %c0_i32, %c0_i32_0 : i32, i32
  }
  func.func @transform_6(%arg0: i32) -> (i32, i32) {
    %c0_i32 = arith.constant 0 : i32
    %c0_i32_0 = arith.constant 0 : i32
    %c0_i32_1 = arith.constant 0 : i32
    return %c0_i32, %c0_i32_0 : i32, i32
  }
  func.func @transform_7(%arg0: i32) -> (i32, i32) {
    %c0_i32 = arith.constant 0 : i32
    %c0_i32_0 = arith.constant 0 : i32
    %c0_i32_1 = arith.constant 0 : i32
    return %c0_i32, %c0_i32_0 : i32, i32
  }
  func.func @transform_8(%arg0: i32) -> (i32, i32) {
    %c0_i32 = arith.constant 0 : i32
    %c0_i32_0 = arith.constant 0 : i32
    %c0_i32_1 = arith.constant 0 : i32
    return %c0_i32, %c0_i32_0 : i32, i32
  }
  func.func @transform_9(%arg0: i32) -> (i32, i32) {
    %c0_i32 = arith.constant 0 : i32
    %c0_i32_0 = arith.constant 0 : i32
    %c0_i32_1 = arith.constant 0 : i32
    return %c0_i32, %c0_i32_0 : i32, i32
  }
  func.func @transform_10(%arg0: i32) -> (i32, i32, i32) {
    %c0_i32 = arith.constant 0 : i32
    %c0_i32_0 = arith.constant 0 : i32
    %c0_i32_1 = arith.constant 0 : i32
    return %arg0, %c0_i32, %c0_i32_0 : i32, i32, i32
  }
}

</mosaic_0001>

<llo_original>
// kernel: tpu_custom_call.1
$region0: #{tpu_custom_call.1}
  #allocation0 [shape = 'u32[]', space=smem, size = 0x4, offset = 0x4, fixed_abs, tag = 'smem constant byte address 0x4 - core index']
  #allocation1 [shape = 'u32[144,128]{1,0:T(1,128)}', space=vmem, size = 0x12000, scoped, tag = 'internal scratch']
  #allocation2 [shape = 'f32[4,32,32]{2,1,0:T(8,128)}', space=vmem, size = 0x10000, scoped, tag = 'scratch operand']
  #allocation3 [shape = 'f32[4,32,32]{2,1,0:T(8,128)}', space=vmem, size = 0x10000, scoped, tag = 'scratch operand']
  #allocation4 [shape = 'f32[4,32,32]{2,1,0:T(8,128)}', space=vmem, size = 0x10000, scoped, tag = 'scratch operand']
  #allocation5 [shape = 'f32[32,128]{1,0:T(8,128)}', space=vmem, size = 0x4000, scoped, tag = 'scratch operand']
  %s0 = inlined_call_operand.vmem [shape: f32[4,32,128], index: 0, kind: input, shape index: {}]
  %s1 = inlined_call_operand.vmem [shape: f32[32,32], index: 1, kind: input, shape index: {}]
  %s2 = inlined_call_operand.hbm [shape: f32[128,128], index: 2, kind: input, shape index: {}]
  %s3 = inlined_call_operand.vmem [shape: f32[128,64], index: 3, kind: input, shape index: {}]
  %s4 = inlined_call_operand.hbm [shape: f32[64,256], index: 4, kind: input, shape index: {}]
  %s5 = inlined_call_operand.hbm [shape: f32[128,128], index: 5, kind: input, shape index: {}]
  %s6 = inlined_call_operand.hbm [shape: f32[128,512], index: 6, kind: input, shape index: {}]
  %s7 = inlined_call_operand.vmem [shape: f32[1,512], index: 7, kind: input, shape index: {}]
  %s8 = inlined_call_operand.hbm [shape: f32[512,128], index: 8, kind: input, shape index: {}]
  %s9 = inlined_call_operand.vmem [shape: f32[8,128], index: 9, kind: input, shape index: {}]
  %s10 = inlined_call_operand.hbm [shape: f32[4,32,128], index: 10, kind: output, shape index: {}]
  %s11 = sld [smem:[#allocation0]]
  $region93: #{tpu_custom_call.1} parent=0
    _
  %s13 = ssub.s32 1, %s11
  %s14 = scalar_select 0, %s13, %s11
  $region1: #{tpu_custom_call.1} parent=0
    #allocation6 [shape = 'u8[65536]{0}', space=vmem, size = 0x10000, scoped, tag = 'input window, operand 2, single buffered']
    #allocation7 [shape = 's32[2]{0}', space=sflag, size = 0x8, scoped, tag = 'scoped memory for tpu_custom_call.1']
    #allocation8 [shape = 's32[2]{0}', space=sflag, size = 0x8, scoped, tag = 'scoped memory for tpu_custom_call.1']
    #allocation9 [shape = 'u8[65536]{0}', space=vmem, size = 0x10000, scoped, tag = 'input window, operand 4, single buffered']
    #allocation10 [shape = 's32[1]{0}', space=sflag, size = 0x4, scoped, tag = 'scoped memory for tpu_custom_call.1']
    #allocation11 [shape = 'u8[65536]{0}', space=vmem, size = 0x10000, scoped, tag = 'input window, operand 5, single buffered']
    #allocation12 [shape = 'u8[262144]{0}', space=vmem, size = 0x40000, scoped, tag = 'input window, operand 6, single buffered']
    #allocation13 [shape = 's32[1]{0}', space=sflag, size = 0x4, scoped, tag = 'scoped memory for tpu_custom_call.1']
    #allocation14 [shape = 'u8[262144]{0}', space=vmem, size = 0x40000, scoped, tag = 'input window, operand 8, single buffered']
    #allocation15 [shape = 'u8[32768]{0}', space=vmem, size = 0x8000, scoped, tag = 'output window, operand 0']
    %15 = vsyncpa [#allocation7], 0
    %16 = vsyncpa [#allocation10], 0
    %17 = vsyncpa [#allocation13], 0
    %18 = vsyncpa [#allocation8], 0
    %s19 = scalar_lea.sflag [#allocation8], 1
    %20 = vsyncpa %s19, 0
    loop: start=0, step=1, limit=6
    $region2: #{tpu_custom_call.1} parent=1 // loop_pre_header
      _
    $region3: #{tpu_custom_call.1} parent=1 // loop_header
      %s22 = sphi 0, %s26
      %p23 = scmp.ge.s32.totalorder %s22, 6
      %s32 = sphi 0, %s34
      %s35 = sphi 0, %s32
      %s36 = sphi 0, %s35
      %s52 = sphi 0, %s36
      %s56 = sphi 0, %s56
      %s58 = sphi 0, %s56
      %s59 = sphi 0, %s58
      %s73 = sphi 0, %s59
      %s77 = sphi 0, %s77
      %s79 = sphi 0, %s77
      %s80 = sphi 0, %s79
      %s94 = sphi 0, %s80
      %s98 = sphi 0, %s98
      %s100 = sphi 0, %s98
      %s101 = sphi 0, %s100
      %s115 = sphi 0, %s101
      %s119 = sphi 0, %s119
      %s121 = sphi 0, %s119
      %s122 = sphi 0, %s121
      %s136 = sphi 0, %s122
      %s140 = sphi 0, %s140
      %s142 = sphi 0, %s140
      %s143 = sphi 0, %s142
      %s157 = sphi 0, %s143
      %s161 = sphi 0, %s161
      %s163 = sphi 0, %s161
      %s164 = sphi 0, %s163
      %s178 = sphi 0, %s164
      %s182 = sphi 0, %s182
      %s184 = sphi 0, %s182
      %s185 = sphi 0, %s184
      %s199 = sphi 0, %s185
      %s203 = sphi 0, %s203
      %s205 = sphi 0, %s203
      %s206 = sphi 0, %s205
      %s220 = sphi 0, %s206
      %s224 = sphi 0, %s224
      %s226 = sphi 0, %s224
      %s227 = sphi 0, %s226
      %s241 = sphi 0, %s227
      %s247 = sphi 0, %s249
      %s250 = sphi 0, %s247
      %s251 = sphi 0, %s250
      %s267 = sphi 0, %s251
    $region4: #{tpu_custom_call.1} parent=1 // loop_header_branch
      %25 = sbr.rel (%p23) target = $region8
    $region5: #{tpu_custom_call.1} parent=1 // loop_body
      %s27 = ssub.s32 %s22, 1
      %s28 = ssub.s32 %s22, 2
      %s29 = sadd.s32 %s22, 1
      %s30 = ssub.s32 %s22, %s29
      %p31 = scmp.eq.s32.totalorder %s30, 0
      %s33 = sadd.s32 %s32, 1
      %s34 = scalar_select %p31, %s32, %s33
      %p37 = pneg %p31
      %p38 = scmp.eq.s32.totalorder %s22, 3
      %p39 = por %p37, %p38
      %p40 = scmp.ne.s32.totalorder %s32, %s35
      %p41 = scmp.eq.s32.totalorder %s22, 0
      %p42 = por %p40, %p41
      %p43 = scmp.ne.s32.totalorder %s32, %s35
      %p44 = scmp.eq.s32.totalorder %s27, 3
      %p45 = por %p43, %p44
      %p46 = scmp.ne.s32.totalorder %s35, %s36
      %p47 = scmp.eq.s32.totalorder %s27, 0
      %p48 = por %p46, %p47
      %p49 = scmp.ne.s32.totalorder %s35, %s36
      %p50 = scmp.eq.s32.totalorder %s28, 3
      %p51 = por %p49, %p50
      %p53 = scmp.ne.s32.totalorder %s36, %s52
      %p54 = scmp.eq.s32.totalorder %s28, 0
      %p55 = por %p53, %p54
      %s57 = sadd.s32 %s56, 1
      %p60 = scmp.eq.s32.totalorder %s22, 3
      %p61 = scmp.ne.s32.totalorder %s56, %s58
      %p62 = scmp.eq.s32.totalorder %s22, 0
      %p63 = por %p61, %p62
      %p64 = scmp.ne.s32.totalorder %s56, %s58
      %p65 = scmp.eq.s32.totalorder %s27, 3
      %p66 = por %p64, %p65
      %p67 = scmp.ne.s32.totalorder %s58, %s59
      %p68 = scmp.eq.s32.totalorder %s27, 0
      %p69 = por %p67, %p68
      %p70 = scmp.ne.s32.totalorder %s58, %s59
      %p71 = scmp.eq.s32.totalorder %s28, 3
      %p72 = por %p70, %p71
      %p74 = scmp.ne.s32.totalorder %s59, %s73
      %p75 = scmp.eq.s32.totalorder %s28, 0
      %p76 = por %p74, %p75
      %s78 = sadd.s32 %s77, 1
      %p81 = scmp.eq.s32.totalorder %s22, 3
      %p82 = scmp.ne.s32.totalorder %s77, %s79
      %p83 = scmp.eq.s32.totalorder %s22, 0
      %p84 = por %p82, %p83
      %p85 = scmp.ne.s32.totalorder %s77, %s79
      %p86 = scmp.eq.s32.totalorder %s27, 3
      %p87 = por %p85, %p86
      %p88 = scmp.ne.s32.totalorder %s79, %s80
      %p89 = scmp.eq.s32.totalorder %s27, 0
      %p90 = por %p88, %p89
      %p91 = scmp.ne.s32.totalorder %s79, %s80
      %p92 = scmp.eq.s32.totalorder %s28, 3
      %p93 = por %p91, %p92
      %p95 = scmp.ne.s32.totalorder %s80, %s94
      %p96 = scmp.eq.s32.totalorder %s28, 0
      %p97 = por %p95, %p96
      %s99 = sadd.s32 %s98, 1
      %p102 = scmp.eq.s32.totalorder %s22, 3
      %p103 = scmp.ne.s32.totalorder %s98, %s100
      %p104 = scmp.eq.s32.totalorder %s22, 0
      %p105 = por %p103, %p104
      %p106 = scmp.ne.s32.totalorder %s98, %s100
      %p107 = scmp.eq.s32.totalorder %s27, 3
      %p108 = por %p106, %p107
      %p109 = scmp.ne.s32.totalorder %s100, %s101
      %p110 = scmp.eq.s32.totalorder %s27, 0
      %p111 = por %p109, %p110
      %p112 = scmp.ne.s32.totalorder %s100, %s101
      %p113 = scmp.eq.s32.totalorder %s28, 3
      %p114 = por %p112, %p113
      %p116 = scmp.ne.s32.totalorder %s101, %s115
      %p117 = scmp.eq.s32.totalorder %s28, 0
      %p118 = por %p116, %p117
      %s120 = sadd.s32 %s119, 1
      %p123 = scmp.eq.s32.totalorder %s22, 3
      %p124 = scmp.ne.s32.totalorder %s119, %s121
      %p125 = scmp.eq.s32.totalorder %s22, 0
      %p126 = por %p124, %p125
      %p127 = scmp.ne.s32.totalorder %s119, %s121
      %p128 = scmp.eq.s32.totalorder %s27, 3
      %p129 = por %p127, %p128
      %p130 = scmp.ne.s32.totalorder %s121, %s122
      %p131 = scmp.eq.s32.totalorder %s27, 0
      %p132 = por %p130, %p131
      %p133 = scmp.ne.s32.totalorder %s121, %s122
      %p134 = scmp.eq.s32.totalorder %s28, 3
      %p135 = por %p133, %p134
      %p137 = scmp.ne.s32.totalorder %s122, %s136
      %p138 = scmp.eq.s32.totalorder %s28, 0
      %p139 = por %p137, %p138
      %s141 = sadd.s32 %s140, 1
      %p144 = scmp.eq.s32.totalorder %s22, 3
      %p145 = scmp.ne.s32.totalorder %s140, %s142
      %p146 = scmp.eq.s32.totalorder %s22, 0
      %p147 = por %p145, %p146
      %p148 = scmp.ne.s32.totalorder %s140, %s142
      %p149 = scmp.eq.s32.totalorder %s27, 3
      %p150 = por %p148, %p149
      %p151 = scmp.ne.s32.totalorder %s142, %s143
      %p152 = scmp.eq.s32.totalorder %s27, 0
      %p153 = por %p151, %p152
      %p154 = scmp.ne.s32.totalorder %s142, %s143
      %p155 = scmp.eq.s32.totalorder %s28, 3
      %p156 = por %p154, %p155
      %p158 = scmp.ne.s32.totalorder %s143, %s157
      %p159 = scmp.eq.s32.totalorder %s28, 0
      %p160 = por %p158, %p159
      %s162 = sadd.s32 %s161, 1
      %p165 = scmp.eq.s32.totalorder %s22, 3
      %p166 = scmp.ne.s32.totalorder %s161, %s163
      %p167 = scmp.eq.s32.totalorder %s22, 0
      %p168 = por %p166, %p167
      %p169 = scmp.ne.s32.totalorder %s161, %s163
      %p170 = scmp.eq.s32.totalorder %s27, 3
      %p171 = por %p169, %p170
      %p172 = scmp.ne.s32.totalorder %s163, %s164
      %p173 = scmp.eq.s32.totalorder %s27, 0
      %p174 = por %p172, %p173
      %p175 = scmp.ne.s32.totalorder %s163, %s164
      %p176 = scmp.eq.s32.totalorder %s28, 3
      %p177 = por %p175, %p176
      %p179 = scmp.ne.s32.totalorder %s164, %s178
      %p180 = scmp.eq.s32.totalorder %s28, 0
      %p181 = por %p179, %p180
      %s183 = sadd.s32 %s182, 1
      %p186 = scmp.eq.s32.totalorder %s22, 3
      %p187 = scmp.ne.s32.totalorder %s182, %s184
      %p188 = scmp.eq.s32.totalorder %s22, 0
      %p189 = por %p187, %p188
      %p190 = scmp.ne.s32.totalorder %s182, %s184
      %p191 = scmp.eq.s32.totalorder %s27, 3
      %p192 = por %p190, %p191
      %p193 = scmp.ne.s32.totalorder %s184, %s185
      %p194 = scmp.eq.s32.totalorder %s27, 0
      %p195 = por %p193, %p194
      %p196 = scmp.ne.s32.totalorder %s184, %s185
      %p197 = scmp.eq.s32.totalorder %s28, 3
      %p198 = por %p196, %p197
      %p200 = scmp.ne.s32.totalorder %s185, %s199
      %p201 = scmp.eq.s32.totalorder %s28, 0
      %p202 = por %p200, %p201
      %s204 = sadd.s32 %s203, 1
      %p207 = scmp.eq.s32.totalorder %s22, 3
      %p208 = scmp.ne.s32.totalorder %s203, %s205
      %p209 = scmp.eq.s32.totalorder %s22, 0
      %p210 = por %p208, %p209
      %p211 = scmp.ne.s32.totalorder %s203, %s205
      %p212 = scmp.eq.s32.totalorder %s27, 3
      %p213 = por %p211, %p212
      %p214 = scmp.ne.s32.totalorder %s205, %s206
      %p215 = scmp.eq.s32.totalorder %s27, 0
      %p216 = por %p214, %p215
      %p217 = scmp.ne.s32.totalorder %s205, %s206
      %p218 = scmp.eq.s32.totalorder %s28, 3
      %p219 = por %p217, %p218
      %p221 = scmp.ne.s32.totalorder %s206, %s220
      %p222 = scmp.eq.s32.totalorder %s28, 0
      %p223 = por %p221, %p222
      %s225 = sadd.s32 %s224, 1
      %p228 = scmp.eq.s32.totalorder %s22, 3
      %p229 = scmp.ne.s32.totalorder %s224, %s226
      %p230 = scmp.eq.s32.totalorder %s22, 0
      %p231 = por %p229, %p230
      %p232 = scmp.ne.s32.totalorder %s224, %s226
      %p233 = scmp.eq.s32.totalorder %s27, 3
      %p234 = por %p232, %p233
      %p235 = scmp.ne.s32.totalorder %s226, %s227
      %p236 = scmp.eq.s32.totalorder %s27, 0
      %p237 = por %p235, %p236
      %p238 = scmp.ne.s32.totalorder %s226, %s227
      %p239 = scmp.eq.s32.totalorder %s28, 3
      %p240 = por %p238, %p239
      %p242 = scmp.ne.s32.totalorder %s227, %s241
      %p243 = scmp.eq.s32.totalorder %s28, 0
      %p244 = por %p242, %p243
      %s245 = ssub.s32 %s22, %s29
      %p246 = scmp.eq.s32.totalorder %s245, 0
      %s248 = sadd.s32 %s247, 1
      %s249 = scalar_select %p246, %s247, %s248
      %p252 = pneg %p246
      %p253 = scmp.eq.s32.totalorder %s22, 3
      %p254 = por %p252, %p253
      %p255 = scmp.ne.s32.totalorder %s247, %s250
      %p256 = scmp.eq.s32.totalorder %s22, 0
      %p257 = por %p255, %p256
      %p258 = scmp.ne.s32.totalorder %s247, %s250
      %p259 = scmp.eq.s32.totalorder %s27, 3
      %p260 = por %p258, %p259
      %p261 = scmp.ne.s32.totalorder %s250, %s251
      %p262 = scmp.eq.s32.totalorder %s27, 0
      %p263 = por %p261, %p262
      %p264 = scmp.ne.s32.totalorder %s250, %s251
      %p265 = scmp.eq.s32.totalorder %s28, 3
      %p266 = por %p264, %p265
      %p268 = scmp.ne.s32.totalorder %s251, %s267
      %p269 = scmp.eq.s32.totalorder %s28, 0
      %p270 = por %p268, %p269
      %p271 = scmp.le.s32.totalorder 1, %s22
      %p272 = scmp.lt.s32.totalorder %s22, 5
      %p273 = pnand %p271, %p272
      %p274 = pneg %p273
      // Predicated region
      $region9: #{tpu_custom_call.1} parent=5 // pred_check
        _
      $region10: #{tpu_custom_call.1} parent=5 // pred_check_branch
        %276 = sbr.rel (%p273) target = $region12
      $region11: #{tpu_custom_call.1} parent=5 // pred_region
        %s277 = ssub.s32 %s22, 1
        // Predicated region
        $region13: #{tpu_custom_call.1} parent=11 // pred_check
          %p278 = pneg %p69
        $region14: #{tpu_custom_call.1} parent=11 // pred_check_branch
          %280 = sbr.rel (%p278) target = $region16
        $region15: #{tpu_custom_call.1} parent=11 // pred_region
          _
        $region16: #{tpu_custom_call.1} parent=11 // pred_fallthru
          _
        // Predicated region
        $region17: #{tpu_custom_call.1} parent=11 // pred_check
          %p281 = pneg %p90
        $region18: #{tpu_custom_call.1} parent=11 // pred_check_branch
          %283 = sbr.rel (%p281) target = $region20
        $region19: #{tpu_custom_call.1} parent=11 // pred_region
          %s285 = ssub.s32 2048, 2048
          %286 = vsyncadd [#allocation7], %s285
          %s287 = sshll.u32 [#allocation6], 4
          %s288 = int_to_ptr.vmem [resolvable:$true] %s287
          %293 = dma.hbm_to_vmem [thread:$0]  %s2, 2048, %s288, [#allocation7], 128, 128, 8
        $region20: #{tpu_custom_call.1} parent=11 // pred_fallthru
          _
        // Predicated region
        $region21: #{tpu_custom_call.1} parent=11 // pred_check
          %p294 = pneg %p111
        $region22: #{tpu_custom_call.1} parent=11 // pred_check_branch
          %296 = sbr.rel (%p294) target = $region24
        $region23: #{tpu_custom_call.1} parent=11 // pred_region
          _
        $region24: #{tpu_custom_call.1} parent=11 // pred_fallthru
          _
        // Predicated region
        $region25: #{tpu_custom_call.1} parent=11 // pred_check
          %p297 = pneg %p132
        $region26: #{tpu_custom_call.1} parent=11 // pred_check_branch
          %299 = sbr.rel (%p297) target = $region28
        $region27: #{tpu_custom_call.1} parent=11 // pred_region
          %s301 = ssub.s32 2048, 2048
          %302 = vsyncadd [#allocation10], %s301
          %s303 = sshll.u32 [#allocation9], 4
          %s304 = int_to_ptr.vmem [resolvable:$true] %s303
          %309 = dma.hbm_to_vmem [thread:$0]  %s4, 2048, %s304, [#allocation10], 256, 256, 16
        $region28: #{tpu_custom_call.1} parent=11 // pred_fallthru
          _
        // Predicated region
        $region29: #{tpu_custom_call.1} parent=11 // pred_check
          %p310 = pneg %p153
        $region30: #{tpu_custom_call.1} parent=11 // pred_check_branch
          %312 = sbr.rel (%p310) target = $region32
        $region31: #{tpu_custom_call.1} parent=11 // pred_region
          %s314 = ssub.s32 2048, 2048
          %315 = vsyncadd [#allocation10], %s314
          %s316 = sshll.u32 [#allocation11], 4
          %s317 = int_to_ptr.vmem [resolvable:$true] %s316
          %322 = dma.hbm_to_vmem [thread:$0]  %s5, 2048, %s317, [#allocation10], 128, 128, 8
        $region32: #{tpu_custom_call.1} parent=11 // pred_fallthru
          _
        // Predicated region
        $region33: #{tpu_custom_call.1} parent=11 // pred_check
          %p323 = pneg %p174
        $region34: #{tpu_custom_call.1} parent=11 // pred_check_branch
          %325 = sbr.rel (%p323) target = $region36
        $region35: #{tpu_custom_call.1} parent=11 // pred_region
          %s327 = ssub.s32 8192, 8192
          %328 = vsyncadd [#allocation13], %s327
          %s329 = sshll.u32 [#allocation12], 4
          %s330 = int_to_ptr.vmem [resolvable:$true] %s329
          %335 = dma.hbm_to_vmem [thread:$0]  %s6, 8192, %s330, [#allocation13], 512, 512, 32
        $region36: #{tpu_custom_call.1} parent=11 // pred_fallthru
          _
        // Predicated region
        $region37: #{tpu_custom_call.1} parent=11 // pred_check
          %p336 = pneg %p195
        $region38: #{tpu_custom_call.1} parent=11 // pred_check_branch
          %338 = sbr.rel (%p336) target = $region40
        $region39: #{tpu_custom_call.1} parent=11 // pred_region
          _
        $region40: #{tpu_custom_call.1} parent=11 // pred_fallthru
          _
        // Predicated region
        $region41: #{tpu_custom_call.1} parent=11 // pred_check
          %p339 = pneg %p216
        $region42: #{tpu_custom_call.1} parent=11 // pred_check_branch
          %341 = sbr.rel (%p339) target = $region44
        $region43: #{tpu_custom_call.1} parent=11 // pred_region
          %s343 = ssub.s32 8192, 8192
          %344 = vsyncadd [#allocation13], %s343
          %s345 = sshll.u32 [#allocation14], 4
          %s346 = int_to_ptr.vmem [resolvable:$true] %s345
          %351 = dma.hbm_to_vmem [thread:$0]  %s8, 8192, %s346, [#allocation13], 128, 128, 8
        $region44: #{tpu_custom_call.1} parent=11 // pred_fallthru
          _
        // Predicated region
        $region45: #{tpu_custom_call.1} parent=11 // pred_check
          %p352 = pneg %p237
        $region46: #{tpu_custom_call.1} parent=11 // pred_check_branch
          %354 = sbr.rel (%p352) target = $region48
        $region47: #{tpu_custom_call.1} parent=11 // pred_region
          _
        $region48: #{tpu_custom_call.1} parent=11 // pred_fallthru
          _
      $region12: #{tpu_custom_call.1} parent=5 // pred_fallthru
        _
      %p355 = scmp.lt.s32.totalorder %s22, 4
      // Predicated region
      $region49: #{tpu_custom_call.1} parent=5 // pred_check
        %p356 = pneg %p355
      $region50: #{tpu_custom_call.1} parent=5 // pred_check_branch
        %358 = sbr.rel (%p356) target = $region52
      $region51: #{tpu_custom_call.1} parent=5 // pred_region
        // Predicated region
        $region53: #{tpu_custom_call.1} parent=51 // pred_check
          %p359 = pneg %p42
        $region54: #{tpu_custom_call.1} parent=51 // pred_check_branch
          %361 = sbr.rel (%p359) target = $region56
        $region55: #{tpu_custom_call.1} parent=51 // pred_region
          %p362 = scmp.lt.s32.totalorder %s22, 3
          %s363 = scalar_select %p362, %s22, 3
          %s364 = smul.addr %s363, 4
          %s365 = smul.addr %s364, 8
          %s366 = scalar_lea.vmem %s0, %s365
        $region56: #{tpu_custom_call.1} parent=51 // pred_fallthru
          _
      $region52: #{tpu_custom_call.1} parent=5 // pred_fallthru
        _
      %p367 = scmp.le.s32.totalorder 1, %s22
      %p368 = scmp.lt.s32.totalorder %s22, 5
      %p369 = pnand %p367, %p368
      %p370 = pneg %p369
      // Predicated region
      $region57: #{tpu_custom_call.1} parent=5 // pred_check
        _
      $region58: #{tpu_custom_call.1} parent=5 // pred_check_branch
        %372 = sbr.rel (%p369) target = $region60
      $region59: #{tpu_custom_call.1} parent=5 // pred_region
        %s373 = ssub.s32 %s22, 1
        // Predicated region
        $region61: #{tpu_custom_call.1} parent=59 // pred_check
          %p374 = pneg %p90
        $region62: #{tpu_custom_call.1} parent=59 // pred_check_branch
          %376 = sbr.rel (%p374) target = $region64
        $region63: #{tpu_custom_call.1} parent=59 // pred_region
          %377 = dma.done [#allocation7], 2048
        $region64: #{tpu_custom_call.1} parent=59 // pred_fallthru
          _
        // Predicated region
        $region65: #{tpu_custom_call.1} parent=59 // pred_check
          %p378 = pneg %p132
        $region66: #{tpu_custom_call.1} parent=59 // pred_check_branch
          %380 = sbr.rel (%p378) target = $region68
        $region67: #{tpu_custom_call.1} parent=59 // pred_region
          %381 = dma.done [#allocation10], 2048
        $region68: #{tpu_custom_call.1} parent=59 // pred_fallthru
          _
        // Predicated region
        $region69: #{tpu_custom_call.1} parent=59 // pred_check
          %p382 = pneg %p153
        $region70: #{tpu_custom_call.1} parent=59 // pred_check_branch
          %384 = sbr.rel (%p382) target = $region72
        $region71: #{tpu_custom_call.1} parent=59 // pred_region
          %385 = dma.done [#allocation10], 2048
        $region72: #{tpu_custom_call.1} parent=59 // pred_fallthru
          _
        // Predicated region
        $region73: #{tpu_custom_call.1} parent=59 // pred_check
          %p386 = pneg %p174
        $region74: #{tpu_custom_call.1} parent=59 // pred_check_branch
          %388 = sbr.rel (%p386) target = $region76
        $region75: #{tpu_custom_call.1} parent=59 // pred_region
          %389 = dma.done [#allocation13], 8192
        $region76: #{tpu_custom_call.1} parent=59 // pred_fallthru
          _
        // Predicated region
        $region77: #{tpu_custom_call.1} parent=59 // pred_check
          %p390 = pneg %p216
        $region78: #{tpu_custom_call.1} parent=59 // pred_check_branch
          %392 = sbr.rel (%p390) target = $region80
        $region79: #{tpu_custom_call.1} parent=59 // pred_region
          %393 = dma.done [#allocation13], 8192
        $region80: #{tpu_custom_call.1} parent=59 // pred_fallthru
          _
        %p394 = scmp.lt.s32.totalorder %s27, 3
        %s395 = scalar_select %p394, %s27, 3
        %s396 = smul.addr %s395, 4
        %s397 = smul.addr %s396, 8
        %s398 = scalar_lea.vmem %s0, %s397
        %p399 = pneg %p48
        %p400 = pneg %p45
        %p401 = pneg %p69
        %p402 = pneg %p66
        %p403 = pneg %p90
        %p404 = pneg %p87
        %p405 = pneg %p111
        %p406 = pneg %p108
        %p407 = pneg %p132
        %p408 = pneg %p129
        %p409 = pneg %p153
        %p410 = pneg %p150
        %p411 = pneg %p174
        %p412 = pneg %p171
        %p413 = pneg %p195
        %p414 = pneg %p192
        %p415 = pneg %p216
        %p416 = pneg %p213
        %p417 = pneg %p237
        %p418 = pneg %p234
        %p419 = pneg %p263
        %p420 = pneg %p260
        %s421 = sand.u32 %s250, 1
        %s422 = scalar_lea.sflag [#allocation8], %s421
        %s423 = sand.u32 %s250, 1
        %s424 = smul.addr %s423, 32
        %s425 = scalar_lea.vmem [#allocation15], %s424
        %p426 = scmp.lt.s32.totalorder %s27, 3
        %s427 = scalar_select %p426, %s27, 3
        %s428 = smul.addr %s427, 4
        %s429 = smul.addr %s428, 8
        %s430 = scalar_lea.vmem %s0, %s429
        %v431 = vld [vmem:[%s430] sm:$0xff]
        %v432 = vld [vmem:[%s430 + $0x8] sm:$0xff]
        %v433 = vld [vmem:[%s430 + $0x10] sm:$0xff]
        %v434 = vld [vmem:[%s430 + $0x18] sm:$0xff]
        %v435 = vld [vmem:[#allocation6] sm:$0xff]
        %v436 = vld [vmem:[#allocation6 + $0x8] sm:$0xff]
        %v437 = vld [vmem:[#allocation6 + $0x10] sm:$0xff]
        %v438 = vld [vmem:[#allocation6 + $0x18] sm:$0xff]
        %v439 = vld [vmem:[#allocation6 + $0x20] sm:$0xff]
        %v440 = vld [vmem:[#allocation6 + $0x28] sm:$0xff]
        %v441 = vld [vmem:[#allocation6 + $0x30] sm:$0xff]
        %v442 = vld [vmem:[#allocation6 + $0x38] sm:$0xff]
        %v443 = vld [vmem:[#allocation6 + $0x40] sm:$0xff]
        %v444 = vld [vmem:[#allocation6 + $0x48] sm:$0xff]
        %v445 = vld [vmem:[#allocation6 + $0x50] sm:$0xff]
        %v446 = vld [vmem:[#allocation6 + $0x58] sm:$0xff]
        %v447 = vld [vmem:[#allocation6 + $0x60] sm:$0xff]
        %v448 = vld [vmem:[#allocation6 + $0x68] sm:$0xff]
        %v449 = vld [vmem:[#allocation6 + $0x70] sm:$0xff]
        %v450 = vld [vmem:[#allocation6 + $0x78] sm:$0xff]
        %451 = vmatprep.subr.mxu0 0.0
        %452 = vmatpush1.msra.mxu0 %v450
        %453 = vmatprep.subr.mxu0 0.0
        %454 = vmatpush1.msra.mxu0 %v449
        %455 = vmatprep.subr.mxu0 0.0
        %456 = vmatpush1.msra.mxu0 %v448
        %457 = vmatprep.subr.mxu0 0.0
        %458 = vmatpush1.msra.mxu0 %v447
        %459 = vmatprep.subr.mxu0 0.0
        %460 = vmatpush1.msra.mxu0 %v446
        %461 = vmatprep.subr.mxu0 0.0
        %462 = vmatpush1.msra.mxu0 %v445
        %463 = vmatprep.subr.mxu0 0.0
        %464 = vmatpush1.msra.mxu0 %v444
        %465 = vmatprep.subr.mxu0 0.0
        %466 = vmatpush1.msra.mxu0 %v443
        %467 = vmatprep.subr.mxu0 0.0
        %468 = vmatpush1.msra.mxu0 %v442
        %469 = vmatprep.subr.mxu0 0.0
        %470 = vmatpush1.msra.mxu0 %v441
        %471 = vmatprep.subr.mxu0 0.0
        %472 = vmatpush1.msra.mxu0 %v440
        %473 = vmatprep.subr.mxu0 0.0
        %474 = vmatpush1.msra.mxu0 %v439
        %475 = vmatprep.subr.mxu0 0.0
        %476 = vmatpush1.msra.mxu0 %v438
        %477 = vmatprep.subr.mxu0 0.0
        %478 = vmatpush1.msra.mxu0 %v437
        %479 = vmatprep.subr.mxu0 0.0
        %480 = vmatpush1.msra.mxu0 %v436
        %481 = vmatprep.subr.mxu0 0.0
        %482 = vmatpush1.msra.mxu0 %v435
        %483 = vmatprep.subr.mxu0 0.0
        %484 = vmatpush2.msra.mxu0 0.0
        %485 = vmatprep.subr.mxu0 0.0
        %486 = vmatpush2.msra.mxu0 0.0
        %487 = vmatprep.subr.mxu0 0.0
        %488 = vmatpush2.msra.mxu0 0.0
        %489 = vmatprep.subr.mxu0 0.0
        %490 = vmatpush2.msra.mxu0 0.0
        %491 = vmatprep.subr.mxu0 0.0
        %492 = vmatpush2.msra.mxu0 0.0
        %493 = vmatprep.subr.mxu0 0.0
        %494 = vmatpush2.msra.mxu0 0.0
        %495 = vmatprep.subr.mxu0 0.0
        %496 = vmatpush2.msra.mxu0 0.0
        %497 = vmatprep.subr.mxu0 0.0
        %498 = vmatpush2.msra.mxu0 0.0
        %499 = vmatprep.subr.mxu0 0.0
        %500 = vmatpush2.msra.mxu0 0.0
        %501 = vmatprep.subr.mxu0 0.0
        %502 = vmatpush2.msra.mxu0 0.0
        %503 = vmatprep.subr.mxu0 0.0
        %504 = vmatpush2.msra.mxu0 0.0
        %505 = vmatprep.subr.mxu0 0.0
        %506 = vmatpush2.msra.mxu0 0.0
        %507 = vmatprep.subr.mxu0 0.0
        %508 = vmatpush2.msra.mxu0 0.0
        %509 = vmatprep.subr.mxu0 0.0
        %510 = vmatpush2.msra.mxu0 0.0
        %511 = vmatprep.subr.mxu0 0.0
        %512 = vmatpush2.msra.mxu0 0.0
        %513 = vmatprep.subr.mxu0 0.0
        %514 = vmatpush2.msra.mxu0 0.0
        %515 = vmatprep.mubr.f32.mxu0 0.0
        %516 = vmatmul.mubr.f32.gmra.mxu0 %v431
        %v517 = vpop.f32.mrf.mxu0
        %v518 = vadd.f32 0.0, %v517
        %v519 = vpop.f32.mrf.mxu0
        %520 = vmatprep.mubr.f32.mxu0 0.0
        %521 = vmatmul.mubr.f32.gmra.mxu0 %v432
        %v522 = vpop.f32.mrf.mxu0
        %v523 = vadd.f32 0.0, %v522
        %v524 = vpop.f32.mrf.mxu0
        %525 = vmatprep.mubr.f32.mxu0 0.0
        %526 = vmatmul.mubr.f32.gmra.mxu0 %v433
        %v527 = vpop.f32.mrf.mxu0
        %v528 = vadd.f32 0.0, %v527
        %v529 = vpop.f32.mrf.mxu0
        %530 = vmatprep.mubr.f32.mxu0 0.0
        %531 = vmatmul.mubr.f32.gmra.mxu0 %v434
        %v532 = vpop.f32.mrf.mxu0
        %v533 = vadd.f32 0.0, %v532
        %v534 = vpop.f32.mrf.mxu0
        %535 = vdwg.mxu0
        %v536 = vld [vmem:[%s3] sm:$0xff]
        %v537 = vld [vmem:[%s3 + $0x8] sm:$0xff]
        %v538 = vld [vmem:[%s3 + $0x10] sm:$0xff]
        %v539 = vld [vmem:[%s3 + $0x18] sm:$0xff]
        %v540 = vld [vmem:[%s3 + $0x20] sm:$0xff]
        %v541 = vld [vmem:[%s3 + $0x28] sm:$0xff]
        %v542 = vld [vmem:[%s3 + $0x30] sm:$0xff]
        %v543 = vld [vmem:[%s3 + $0x38] sm:$0xff]
        %v544 = vld [vmem:[%s3 + $0x40] sm:$0xff]
        %v545 = vld [vmem:[%s3 + $0x48] sm:$0xff]
        %v546 = vld [vmem:[%s3 + $0x50] sm:$0xff]
        %v547 = vld [vmem:[%s3 + $0x58] sm:$0xff]
        %v548 = vld [vmem:[%s3 + $0x60] sm:$0xff]
        %v549 = vld [vmem:[%s3 + $0x68] sm:$0xff]
        %v550 = vld [vmem:[%s3 + $0x70] sm:$0xff]
        %v551 = vld [vmem:[%s3 + $0x78] sm:$0xff]
        %552 = vmatprep.subr.mxu0 0.0
        %553 = vmatpush1.msra.mxu0 %v551
        %554 = vmatprep.subr.mxu0 0.0
        %555 = vmatpush1.msra.mxu0 %v550
        %556 = vmatprep.subr.mxu0 0.0
        %557 = vmatpush1.msra.mxu0 %v549
        %558 = vmatprep.subr.mxu0 0.0
        %559 = vmatpush1.msra.mxu0 %v548
        %560 = vmatprep.subr.mxu0 0.0
        %561 = vmatpush1.msra.mxu0 %v547
        %562 = vmatprep.subr.mxu0 0.0
        %563 = vmatpush1.msra.mxu0 %v546
        %564 = vmatprep.subr.mxu0 0.0
        %565 = vmatpush1.msra.mxu0 %v545
        %566 = vmatprep.subr.mxu0 0.0
        %567 = vmatpush1.msra.mxu0 %v544
        %568 = vmatprep.subr.mxu0 0.0
        %569 = vmatpush1.msra.mxu0 %v543
        %570 = vmatprep.subr.mxu0 0.0
        %571 = vmatpush1.msra.mxu0 %v542
        %572 = vmatprep.subr.mxu0 0.0
        %573 = vmatpush1.msra.mxu0 %v541
        %574 = vmatprep.subr.mxu0 0.0
        %575 = vmatpush1.msra.mxu0 %v540
        %576 = vmatprep.subr.mxu0 0.0
        %577 = vmatpush1.msra.mxu0 %v539
        %578 = vmatprep.subr.mxu0 0.0
        %579 = vmatpush1.msra.mxu0 %v538
        %580 = vmatprep.subr.mxu0 0.0
        %581 = vmatpush1.msra.mxu0 %v537
        %582 = vmatprep.subr.mxu0 0.0
        %583 = vmatpush1.msra.mxu0 %v536
        %584 = vmatprep.subr.mxu0 0.0
        %585 = vmatpush2.msra.mxu0 0.0
        %586 = vmatprep.subr.mxu0 0.0
        %587 = vmatpush2.msra.mxu0 0.0
        %588 = vmatprep.subr.mxu0 0.0
        %589 = vmatpush2.msra.mxu0 0.0
        %590 = vmatprep.subr.mxu0 0.0
        %591 = vmatpush2.msra.mxu0 0.0
        %592 = vmatprep.subr.mxu0 0.0
        %593 = vmatpush2.msra.mxu0 0.0
        %594 = vmatprep.subr.mxu0 0.0
        %595 = vmatpush2.msra.mxu0 0.0
        %596 = vmatprep.subr.mxu0 0.0
        %597 = vmatpush2.msra.mxu0 0.0
        %598 = vmatprep.subr.mxu0 0.0
        %599 = vmatpush2.msra.mxu0 0.0
        %600 = vmatprep.subr.mxu0 0.0
        %601 = vmatpush2.msra.mxu0 0.0
        %602 = vmatprep.subr.mxu0 0.0
        %603 = vmatpush2.msra.mxu0 0.0
        %604 = vmatprep.subr.mxu0 0.0
        %605 = vmatpush2.msra.mxu0 0.0
        %606 = vmatprep.subr.mxu0 0.0
        %607 = vmatpush2.msra.mxu0 0.0
        %608 = vmatprep.subr.mxu0 0.0
        %609 = vmatpush2.msra.mxu0 0.0
        %610 = vmatprep.subr.mxu0 0.0
        %611 = vmatpush2.msra.mxu0 0.0
        %612 = vmatprep.subr.mxu0 0.0
        %613 = vmatpush2.msra.mxu0 0.0
        %614 = vmatprep.subr.mxu0 0.0
        %615 = vmatpush2.msra.mxu0 0.0
        %616 = vmatprep.mubr.f32.mxu0 0.0
        %617 = vmatmul.mubr.f32.gmra.mxu0 %v431
        %v618 = vpop.f32.mrf.mxu0
        %v619 = vadd.f32 0.0, %v618
        %v620 = vpop.f32.mrf.mxu0
        %621 = vmatprep.mubr.f32.mxu0 0.0
        %622 = vmatmul.mubr.f32.gmra.mxu0 %v432
        %v623 = vpop.f32.mrf.mxu0
        %v624 = vadd.f32 0.0, %v623
        %v625 = vpop.f32.mrf.mxu0
        %626 = vmatprep.mubr.f32.mxu0 0.0
        %627 = vmatmul.mubr.f32.gmra.mxu0 %v433
        %v628 = vpop.f32.mrf.mxu0
        %v629 = vadd.f32 0.0, %v628
        %v630 = vpop.f32.mrf.mxu0
        %631 = vmatprep.mubr.f32.mxu0 0.0
        %632 = vmatmul.mubr.f32.gmra.mxu0 %v434
        %v633 = vpop.f32.mrf.mxu0
        %v634 = vadd.f32 0.0, %v633
        %v635 = vpop.f32.mrf.mxu0
        %636 = vdwg.mxu0
        %v637 = vld [vmem:[#allocation9] sm:$0xff]
        %v638 = vld [vmem:[#allocation9 + $0x8] sm:$0xff]
        %v639 = vld [vmem:[#allocation9 + $0x10] sm:$0xff]
        %v640 = vld [vmem:[#allocation9 + $0x18] sm:$0xff]
        %v641 = vld [vmem:[#allocation9 + $0x20] sm:$0xff]
        %v642 = vld [vmem:[#allocation9 + $0x28] sm:$0xff]
        %v643 = vld [vmem:[#allocation9 + $0x30] sm:$0xff]
        %v644 = vld [vmem:[#allocation9 + $0x38] sm:$0xff]
        %v645 = vld [vmem:[#allocation9 + $0x40] sm:$0xff]
        %v646 = vld [vmem:[#allocation9 + $0x48] sm:$0xff]
        %v647 = vld [vmem:[#allocation9 + $0x50] sm:$0xff]
        %v648 = vld [vmem:[#allocation9 + $0x58] sm:$0xff]
        %v649 = vld [vmem:[#allocation9 + $0x60] sm:$0xff]
        %v650 = vld [vmem:[#allocation9 + $0x68] sm:$0xff]
        %v651 = vld [vmem:[#allocation9 + $0x70] sm:$0xff]
        %v652 = vld [vmem:[#allocation9 + $0x78] sm:$0xff]
        %vm653 = vcmask 523264
        %v655 = vsel %vm653, %v619, 0
        %v658 = vsel %vm653, %v624, 0
        %v661 = vsel %vm653, %v629, 0
        %v664 = vsel %vm653, %v634, 0
        %666 = vmatprep.subr.mxu0 0.0
        %667 = vmatpush1.msra.mxu0 0.0
        %668 = vmatprep.subr.mxu0 0.0
        %669 = vmatpush1.msra.mxu0 0.0
        %670 = vmatprep.subr.mxu0 0.0
        %671 = vmatpush1.msra.mxu0 0.0
        %672 = vmatprep.subr.mxu0 0.0
        %673 = vmatpush1.msra.mxu0 0.0
        %674 = vmatprep.subr.mxu0 0.0
        %675 = vmatpush1.msra.mxu0 0.0
        %676 = vmatprep.subr.mxu0 0.0
        %677 = vmatpush1.msra.mxu0 0.0
        %678 = vmatprep.subr.mxu0 0.0
        %679 = vmatpush1.msra.mxu0 0.0
        %680 = vmatprep.subr.mxu0 0.0
        %681 = vmatpush1.msra.mxu0 0.0
        %682 = vmatprep.subr.mxu0 %v652
        %683 = vmatpush1.msra.mxu0 %v651
        %684 = vmatprep.subr.mxu0 %v650
        %685 = vmatpush1.msra.mxu0 %v649
        %686 = vmatprep.subr.mxu0 %v648
        %687 = vmatpush1.msra.mxu0 %v647
        %688 = vmatprep.subr.mxu0 %v646
        %689 = vmatpush1.msra.mxu0 %v645
        %690 = vmatprep.subr.mxu0 %v644
        %691 = vmatpush1.msra.mxu0 %v643
        %692 = vmatprep.subr.mxu0 %v642
        %693 = vmatpush1.msra.mxu0 %v641
        %694 = vmatprep.subr.mxu0 %v640
        %695 = vmatpush1.msra.mxu0 %v639
        %696 = vmatprep.subr.mxu0 %v638
        %697 = vmatpush1.msra.mxu0 %v637
        %698 = vmatprep.subr.mxu0 0.0
        %699 = vmatpush2.msra.mxu0 0.0
        %700 = vmatprep.subr.mxu0 0.0
        %701 = vmatpush2.msra.mxu0 0.0
        %702 = vmatprep.subr.mxu0 0.0
        %703 = vmatpush2.msra.mxu0 0.0
        %704 = vmatprep.subr.mxu0 0.0
        %705 = vmatpush2.msra.mxu0 0.0
        %706 = vmatprep.subr.mxu0 0.0
        %707 = vmatpush2.msra.mxu0 0.0
        %708 = vmatprep.subr.mxu0 0.0
        %709 = vmatpush2.msra.mxu0 0.0
        %710 = vmatprep.subr.mxu0 0.0
        %711 = vmatpush2.msra.mxu0 0.0
        %712 = vmatprep.subr.mxu0 0.0
        %713 = vmatpush2.msra.mxu0 0.0
        %714 = vmatprep.subr.mxu0 0.0
        %715 = vmatpush2.msra.mxu0 0.0
        %716 = vmatprep.subr.mxu0 0.0
        %717 = vmatpush2.msra.mxu0 0.0
        %718 = vmatprep.subr.mxu0 0.0
        %719 = vmatpush2.msra.mxu0 0.0
        %720 = vmatprep.subr.mxu0 0.0
        %721 = vmatpush2.msra.mxu0 0.0
        %722 = vmatprep.subr.mxu0 0.0
        %723 = vmatpush2.msra.mxu0 0.0
        %724 = vmatprep.subr.mxu0 0.0
        %725 = vmatpush2.msra.mxu0 0.0
        %726 = vmatprep.subr.mxu0 0.0
        %727 = vmatpush2.msra.mxu0 0.0
        %728 = vmatprep.subr.mxu0 0.0
        %729 = vmatpush2.msra.mxu0 0.0
        %730 = vmatprep.mubr.f32.mxu0 0.0
        %731 = vmatmul.mubr.f32.gmra.mxu0 %v655
        %v732 = vpop.f32.mrf.mxu0
        %v733 = vadd.f32 0.0, %v732
        %v734 = vpop.f32.mrf.mxu0
        %v735 = vadd.f32 0.0, %v734
        %736 = vmatprep.mubr.f32.mxu0 0.0
        %737 = vmatmul.mubr.f32.gmra.mxu0 %v658
        %v738 = vpop.f32.mrf.mxu0
        %v739 = vadd.f32 0.0, %v738
        %v740 = vpop.f32.mrf.mxu0
        %v741 = vadd.f32 0.0, %v740
        %742 = vmatprep.mubr.f32.mxu0 0.0
        %743 = vmatmul.mubr.f32.gmra.mxu0 %v661
        %v744 = vpop.f32.mrf.mxu0
        %v745 = vadd.f32 0.0, %v744
        %v746 = vpop.f32.mrf.mxu0
        %v747 = vadd.f32 0.0, %v746
        %748 = vmatprep.mubr.f32.mxu0 0.0
        %749 = vmatmul.mubr.f32.gmra.mxu0 %v664
        %v750 = vpop.f32.mrf.mxu0
        %v751 = vadd.f32 0.0, %v750
        %v752 = vpop.f32.mrf.mxu0
        %v753 = vadd.f32 0.0, %v752
        %754 = vdwg.mxu0
        %v755 = vmul.f32 %v518, 0.088388346
        %v756 = vmul.f32 %v523, 0.088388346
        %v757 = vmul.f32 %v528, 0.088388346
        %v758 = vmul.f32 %v533, 0.088388346
        %vm759 = vcmask 261120
        %760 = vst.msk [vmem:[#allocation2] sm:$0xff] %vm759, %v755
        %761 = vst.msk [vmem:[#allocation2 + $0x8] sm:$0xff] %vm759, %v756
        %762 = vst.msk [vmem:[#allocation2 + $0x10] sm:$0xff] %vm759, %v757
        %763 = vst.msk [vmem:[#allocation2 + $0x18] sm:$0xff] %vm759, %v758
        %764 = vst.msk [vmem:[#allocation3] sm:$0xff] %vm759, %v733
        %765 = vst.msk [vmem:[#allocation3 + $0x8] sm:$0xff] %vm759, %v739
        %766 = vst.msk [vmem:[#allocation3 + $0x10] sm:$0xff] %vm759, %v745
        %767 = vst.msk [vmem:[#allocation3 + $0x18] sm:$0xff] %vm759, %v751
        %768 = vst.msk [vmem:[#allocation4] sm:$0xff] %vm759, %v735
        %769 = vst.msk [vmem:[#allocation4 + $0x8] sm:$0xff] %vm759, %v741
        %770 = vst.msk [vmem:[#allocation4 + $0x10] sm:$0xff] %vm759, %v747
        %771 = vst.msk [vmem:[#allocation4 + $0x18] sm:$0xff] %vm759, %v753
        %776 = vrot.lane.b32.xlu0 %v755, 96
        %v777 = vpop.permute.xlu0 %776
        %778 = vrot.lane.b32.xlu0 %v756, 96
        %v779 = vpop.permute.xlu0 %778
        %780 = vrot.lane.b32.xlu0 %v757, 96
        %v781 = vpop.permute.xlu0 %780
        %782 = vrot.lane.b32.xlu0 %v758, 96
        %v783 = vpop.permute.xlu0 %782
        %s788 = scalar_lea.vmem [#allocation2], 32
        %789 = vst.msk [vmem:[%s788] sm:$0xff] %vm759, %v777
        %790 = vst.msk [vmem:[%s788 + $0x8] sm:$0xff] %vm759, %v779
        %791 = vst.msk [vmem:[%s788 + $0x10] sm:$0xff] %vm759, %v781
        %792 = vst.msk [vmem:[%s788 + $0x18] sm:$0xff] %vm759, %v783
        %797 = vrot.lane.b32.xlu0 %v733, 96
        %v798 = vpop.permute.xlu0 %797
        %799 = vrot.lane.b32.xlu0 %v739, 96
        %v800 = vpop.permute.xlu0 %799
        %801 = vrot.lane.b32.xlu0 %v745, 96
        %v802 = vpop.permute.xlu0 %801
        %803 = vrot.lane.b32.xlu0 %v751, 96
        %v804 = vpop.permute.xlu0 %803
        %s809 = scalar_lea.vmem [#allocation3], 32
        %810 = vst.msk [vmem:[%s809] sm:$0xff] %vm759, %v798
        %811 = vst.msk [vmem:[%s809 + $0x8] sm:$0xff] %vm759, %v800
        %812 = vst.msk [vmem:[%s809 + $0x10] sm:$0xff] %vm759, %v802
        %813 = vst.msk [vmem:[%s809 + $0x18] sm:$0xff] %vm759, %v804
        %818 = vrot.lane.b32.xlu0 %v735, 96
        %v819 = vpop.permute.xlu0 %818
        %820 = vrot.lane.b32.xlu0 %v741, 96
        %v821 = vpop.permute.xlu0 %820
        %822 = vrot.lane.b32.xlu0 %v747, 96
        %v823 = vpop.permute.xlu0 %822
        %824 = vrot.lane.b32.xlu0 %v753, 96
        %v825 = vpop.permute.xlu0 %824
        %s830 = scalar_lea.vmem [#allocation4], 32
        %831 = vst.msk [vmem:[%s830] sm:$0xff] %vm759, %v819
        %832 = vst.msk [vmem:[%s830 + $0x8] sm:$0xff] %vm759, %v821
        %833 = vst.msk [vmem:[%s830 + $0x10] sm:$0xff] %vm759, %v823
        %834 = vst.msk [vmem:[%s830 + $0x18] sm:$0xff] %vm759, %v825
        %835 = vrot.lane.b32.xlu0 %v755, 64
        %v836 = vpop.permute.xlu0 %835
        %837 = vrot.lane.b32.xlu0 %v756, 64
        %v838 = vpop.permute.xlu0 %837
        %839 = vrot.lane.b32.xlu0 %v757, 64
        %v840 = vpop.permute.xlu0 %839
        %841 = vrot.lane.b32.xlu0 %v758, 64
        %v842 = vpop.permute.xlu0 %841
        %s847 = scalar_lea.vmem [#allocation2], 64
        %848 = vst.msk [vmem:[%s847] sm:$0xff] %vm759, %v836
        %849 = vst.msk [vmem:[%s847 + $0x8] sm:$0xff] %vm759, %v838
        %850 = vst.msk [vmem:[%s847 + $0x10] sm:$0xff] %vm759, %v840
        %851 = vst.msk [vmem:[%s847 + $0x18] sm:$0xff] %vm759, %v842
        %852 = vrot.lane.b32.xlu0 %v733, 64
        %v853 = vpop.permute.xlu0 %852
        %854 = vrot.lane.b32.xlu0 %v739, 64
        %v855 = vpop.permute.xlu0 %854
        %856 = vrot.lane.b32.xlu0 %v745, 64
        %v857 = vpop.permute.xlu0 %856
        %858 = vrot.lane.b32.xlu0 %v751, 64
        %v859 = vpop.permute.xlu0 %858
        %s864 = scalar_lea.vmem [#allocation3], 64
        %865 = vst.msk [vmem:[%s864] sm:$0xff] %vm759, %v853
        %866 = vst.msk [vmem:[%s864 + $0x8] sm:$0xff] %vm759, %v855
        %867 = vst.msk [vmem:[%s864 + $0x10] sm:$0xff] %vm759, %v857
        %868 = vst.msk [vmem:[%s864 + $0x18] sm:$0xff] %vm759, %v859
        %869 = vrot.lane.b32.xlu0 %v735, 64
        %v870 = vpop.permute.xlu0 %869
        %871 = vrot.lane.b32.xlu0 %v741, 64
        %v872 = vpop.permute.xlu0 %871
        %873 = vrot.lane.b32.xlu0 %v747, 64
        %v874 = vpop.permute.xlu0 %873
        %875 = vrot.lane.b32.xlu0 %v753, 64
        %v876 = vpop.permute.xlu0 %875
        %s881 = scalar_lea.vmem [#allocation4], 64
        %882 = vst.msk [vmem:[%s881] sm:$0xff] %vm759, %v870
        %883 = vst.msk [vmem:[%s881 + $0x8] sm:$0xff] %vm759, %v872
        %884 = vst.msk [vmem:[%s881 + $0x10] sm:$0xff] %vm759, %v874
        %885 = vst.msk [vmem:[%s881 + $0x18] sm:$0xff] %vm759, %v876
        %886 = vrot.lane.b32.xlu0 %v755, 32
        %v887 = vpop.permute.xlu0 %886
        %888 = vrot.lane.b32.xlu0 %v756, 32
        %v889 = vpop.permute.xlu0 %888
        %890 = vrot.lane.b32.xlu0 %v757, 32
        %v891 = vpop.permute.xlu0 %890
        %892 = vrot.lane.b32.xlu0 %v758, 32
        %v893 = vpop.permute.xlu0 %892
        %s898 = scalar_lea.vmem [#allocation2], 96
        %899 = vst.msk [vmem:[%s898] sm:$0xff] %vm759, %v887
        %900 = vst.msk [vmem:[%s898 + $0x8] sm:$0xff] %vm759, %v889
        %901 = vst.msk [vmem:[%s898 + $0x10] sm:$0xff] %vm759, %v891
        %902 = vst.msk [vmem:[%s898 + $0x18] sm:$0xff] %vm759, %v893
        %903 = vrot.lane.b32.xlu0 %v733, 32
        %v904 = vpop.permute.xlu0 %903
        %905 = vrot.lane.b32.xlu0 %v739, 32
        %v906 = vpop.permute.xlu0 %905
        %907 = vrot.lane.b32.xlu0 %v745, 32
        %v908 = vpop.permute.xlu0 %907
        %909 = vrot.lane.b32.xlu0 %v751, 32
        %v910 = vpop.permute.xlu0 %909
        %s915 = scalar_lea.vmem [#allocation3], 96
        %916 = vst.msk [vmem:[%s915] sm:$0xff] %vm759, %v904
        %917 = vst.msk [vmem:[%s915 + $0x8] sm:$0xff] %vm759, %v906
        %918 = vst.msk [vmem:[%s915 + $0x10] sm:$0xff] %vm759, %v908
        %919 = vst.msk [vmem:[%s915 + $0x18] sm:$0xff] %vm759, %v910
        %920 = vrot.lane.b32.xlu0 %v735, 32
        %v921 = vpop.permute.xlu0 %920
        %922 = vrot.lane.b32.xlu0 %v741, 32
        %v923 = vpop.permute.xlu0 %922
        %924 = vrot.lane.b32.xlu0 %v747, 32
        %v925 = vpop.permute.xlu0 %924
        %926 = vrot.lane.b32.xlu0 %v753, 32
        %v927 = vpop.permute.xlu0 %926
        %s932 = scalar_lea.vmem [#allocation4], 96
        %933 = vst.msk [vmem:[%s932] sm:$0xff] %vm759, %v921
        %934 = vst.msk [vmem:[%s932 + $0x8] sm:$0xff] %vm759, %v923
        %935 = vst.msk [vmem:[%s932 + $0x10] sm:$0xff] %vm759, %v925
        %936 = vst.msk [vmem:[%s932 + $0x18] sm:$0xff] %vm759, %v927
        %v937 = vld [vmem:[#allocation2] sm:$0xff]
        %v938 = vld [vmem:[#allocation2 + $0x8] sm:$0xff]
        %v939 = vld [vmem:[#allocation2 + $0x10] sm:$0xff]
        %v940 = vld [vmem:[#allocation2 + $0x18] sm:$0xff]
        %v941 = vld [vmem:[#allocation2 + $0x20] sm:$0xff]
        %v942 = vld [vmem:[#allocation2 + $0x28] sm:$0xff]
        %v943 = vld [vmem:[#allocation2 + $0x30] sm:$0xff]
        %v944 = vld [vmem:[#allocation2 + $0x38] sm:$0xff]
        %v945 = vld [vmem:[#allocation2 + $0x40] sm:$0xff]
        %v946 = vld [vmem:[#allocation2 + $0x48] sm:$0xff]
        %v947 = vld [vmem:[#allocation2 + $0x50] sm:$0xff]
        %v948 = vld [vmem:[#allocation2 + $0x58] sm:$0xff]
        %v949 = vld [vmem:[#allocation2 + $0x60] sm:$0xff]
        %v950 = vld [vmem:[#allocation2 + $0x68] sm:$0xff]
        %v951 = vld [vmem:[#allocation2 + $0x70] sm:$0xff]
        %v952 = vld [vmem:[#allocation2 + $0x78] sm:$0xff]
        %v953 = vld [vmem:[#allocation3] sm:$0xff]
        %v954 = vld [vmem:[#allocation3 + $0x8] sm:$0xff]
        %v955 = vld [vmem:[#allocation3 + $0x10] sm:$0xff]
        %v956 = vld [vmem:[#allocation3 + $0x18] sm:$0xff]
        %v957 = vld [vmem:[#allocation3 + $0x20] sm:$0xff]
        %v958 = vld [vmem:[#allocation3 + $0x28] sm:$0xff]
        %v959 = vld [vmem:[#allocation3 + $0x30] sm:$0xff]
        %v960 = vld [vmem:[#allocation3 + $0x38] sm:$0xff]
        %v961 = vld [vmem:[#allocation3 + $0x40] sm:$0xff]
        %v962 = vld [vmem:[#allocation3 + $0x48] sm:$0xff]
        %v963 = vld [vmem:[#allocation3 + $0x50] sm:$0xff]
        %v964 = vld [vmem:[#allocation3 + $0x58] sm:$0xff]
        %v965 = vld [vmem:[#allocation3 + $0x60] sm:$0xff]
        %v966 = vld [vmem:[#allocation3 + $0x68] sm:$0xff]
        %v967 = vld [vmem:[#allocation3 + $0x70] sm:$0xff]
        %v968 = vld [vmem:[#allocation3 + $0x78] sm:$0xff]
        %v970 = vsel %vm759, %v937, 0
        %v973 = vsel %vm759, %v938, 0
        %v976 = vsel %vm759, %v939, 0
        %v979 = vsel %vm759, %v940, 0
        %v982 = vsel %vm759, %v953, 0
        %v985 = vsel %vm759, %v954, 0
        %v988 = vsel %vm759, %v955, 0
        %v991 = vsel %vm759, %v956, 0
        %993 = vmatprep.subr.mxu0 0.0
        %994 = vmatpush1.xpose.msra.mxu0 0.0
        %995 = vmatprep.subr.mxu0 0.0
        %996 = vmatpush1.xpose.msra.mxu0 0.0
        %997 = vmatprep.subr.mxu0 0.0
        %998 = vmatpush1.xpose.msra.mxu0 0.0
        %999 = vmatprep.subr.mxu0 0.0
        %1000 = vmatpush1.xpose.msra.mxu0 0.0
        %1001 = vmatprep.subr.mxu0 0.0
        %1002 = vmatpush1.xpose.msra.mxu0 0.0
        %1003 = vmatprep.subr.mxu0 0.0
        %1004 = vmatpush1.xpose.msra.mxu0 0.0
        %1005 = vmatprep.subr.mxu0 0.0
        %1006 = vmatpush1.xpose.msra.mxu0 0.0
        %1007 = vmatprep.subr.mxu0 0.0
        %1008 = vmatpush1.xpose.msra.mxu0 0.0
        %1009 = vmatprep.subr.mxu0 0.0
        %1010 = vmatpush1.xpose.msra.mxu0 0.0
        %1011 = vmatprep.subr.mxu0 0.0
        %1012 = vmatpush1.xpose.msra.mxu0 0.0
        %1013 = vmatprep.subr.mxu0 0.0
        %1014 = vmatpush1.xpose.msra.mxu0 0.0
        %1015 = vmatprep.subr.mxu0 0.0
        %1016 = vmatpush1.xpose.msra.mxu0 0.0
        %1017 = vmatprep.subr.mxu0 0.0
        %1018 = vmatpush1.xpose.msra.mxu0 %v991
        %1019 = vmatprep.subr.mxu0 0.0
        %1020 = vmatpush1.xpose.msra.mxu0 %v988
        %1021 = vmatprep.subr.mxu0 0.0
        %1022 = vmatpush1.xpose.msra.mxu0 %v985
        %1023 = vmatprep.subr.mxu0 0.0
        %1024 = vmatpush1.xpose.msra.mxu0 %v982
        %1025 = vmatprep.subr.mxu0 0.0
        %1026 = vmatpush2.xpose.msra.mxu0 0.0
        %1027 = vmatprep.subr.mxu0 0.0
        %1028 = vmatpush2.xpose.msra.mxu0 0.0
        %1029 = vmatprep.subr.mxu0 0.0
        %1030 = vmatpush2.xpose.msra.mxu0 0.0
        %1031 = vmatprep.subr.mxu0 0.0
        %1032 = vmatpush2.xpose.msra.mxu0 0.0
        %1033 = vmatprep.subr.mxu0 0.0
        %1034 = vmatpush2.xpose.msra.mxu0 0.0
        %1035 = vmatprep.subr.mxu0 0.0
        %1036 = vmatpush2.xpose.msra.mxu0 0.0
        %1037 = vmatprep.subr.mxu0 0.0
        %1038 = vmatpush2.xpose.msra.mxu0 0.0
        %1039 = vmatprep.subr.mxu0 0.0
        %1040 = vmatpush2.xpose.msra.mxu0 0.0
        %1041 = vmatprep.subr.mxu0 0.0
        %1042 = vmatpush2.xpose.msra.mxu0 0.0
        %1043 = vmatprep.subr.mxu0 0.0
        %1044 = vmatpush2.xpose.msra.mxu0 0.0
        %1045 = vmatprep.subr.mxu0 0.0
        %1046 = vmatpush2.xpose.msra.mxu0 0.0
        %1047 = vmatprep.subr.mxu0 0.0
        %1048 = vmatpush2.xpose.msra.mxu0 0.0
        %1049 = vmatprep.subr.mxu0 0.0
        %1050 = vmatpush2.xpose.msra.mxu0 0.0
        %1051 = vmatprep.subr.mxu0 0.0
        %1052 = vmatpush2.xpose.msra.mxu0 0.0
        %1053 = vmatprep.subr.mxu0 0.0
        %1054 = vmatpush2.xpose.msra.mxu0 0.0
        %1055 = vmatprep.subr.mxu0 0.0
        %1056 = vmatpush2.xpose.msra.mxu0 0.0
        %1057 = vmatprep.mubr.f32.mxu0 0.0
        %1058 = vmatmul.mubr.f32.gmra.mxu0 %v970
        %v1059 = vpop.f32.mrf.mxu0
        %v1060 = vadd.f32 0.0, %v1059
        %v1061 = vpop.f32.mrf.mxu0
        %1062 = vmatprep.mubr.f32.mxu0 0.0
        %1063 = vmatmul.mubr.f32.gmra.mxu0 %v973
        %v1064 = vpop.f32.mrf.mxu0
        %v1065 = vadd.f32 0.0, %v1064
        %v1066 = vpop.f32.mrf.mxu0
        %1067 = vmatprep.mubr.f32.mxu0 0.0
        %1068 = vmatmul.mubr.f32.gmra.mxu0 %v976
        %v1069 = vpop.f32.mrf.mxu0
        %v1070 = vadd.f32 0.0, %v1069
        %v1071 = vpop.f32.mrf.mxu0
        %1072 = vmatprep.mubr.f32.mxu0 0.0
        %1073 = vmatmul.mubr.f32.gmra.mxu0 %v979
        %v1074 = vpop.f32.mrf.mxu0
        %v1075 = vadd.f32 0.0, %v1074
        %v1076 = vpop.f32.mrf.mxu0
        %1077 = vdwg.mxu0
        %v1079 = vsel %vm759, %v941, 0
        %v1082 = vsel %vm759, %v942, 0
        %v1085 = vsel %vm759, %v943, 0
        %v1088 = vsel %vm759, %v944, 0
        %v1091 = vsel %vm759, %v957, 0
        %v1094 = vsel %vm759, %v958, 0
        %v1097 = vsel %vm759, %v959, 0
        %v1100 = vsel %vm759, %v960, 0
        %1102 = vmatprep.subr.mxu0 0.0
        %1103 = vmatpush1.xpose.msra.mxu0 0.0
        %1104 = vmatprep.subr.mxu0 0.0
        %1105 = vmatpush1.xpose.msra.mxu0 0.0
        %1106 = vmatprep.subr.mxu0 0.0
        %1107 = vmatpush1.xpose.msra.mxu0 0.0
        %1108 = vmatprep.subr.mxu0 0.0
        %1109 = vmatpush1.xpose.msra.mxu0 0.0
        %1110 = vmatprep.subr.mxu0 0.0
        %1111 = vmatpush1.xpose.msra.mxu0 0.0
        %1112 = vmatprep.subr.mxu0 0.0
        %1113 = vmatpush1.xpose.msra.mxu0 0.0
        %1114 = vmatprep.subr.mxu0 0.0
        %1115 = vmatpush1.xpose.msra.mxu0 0.0
        %1116 = vmatprep.subr.mxu0 0.0
        %1117 = vmatpush1.xpose.msra.mxu0 0.0
        %1118 = vmatprep.subr.mxu0 0.0
        %1119 = vmatpush1.xpose.msra.mxu0 0.0
        %1120 = vmatprep.subr.mxu0 0.0
        %1121 = vmatpush1.xpose.msra.mxu0 0.0
        %1122 = vmatprep.subr.mxu0 0.0
        %1123 = vmatpush1.xpose.msra.mxu0 0.0
        %1124 = vmatprep.subr.mxu0 0.0
        %1125 = vmatpush1.xpose.msra.mxu0 0.0
        %1126 = vmatprep.subr.mxu0 0.0
        %1127 = vmatpush1.xpose.msra.mxu0 %v1100
        %1128 = vmatprep.subr.mxu0 0.0
        %1129 = vmatpush1.xpose.msra.mxu0 %v1097
        %1130 = vmatprep.subr.mxu0 0.0
        %1131 = vmatpush1.xpose.msra.mxu0 %v1094
        %1132 = vmatprep.subr.mxu0 0.0
        %1133 = vmatpush1.xpose.msra.mxu0 %v1091
        %1134 = vmatprep.subr.mxu0 0.0
        %1135 = vmatpush2.xpose.msra.mxu0 0.0
        %1136 = vmatprep.subr.mxu0 0.0
        %1137 = vmatpush2.xpose.msra.mxu0 0.0
        %1138 = vmatprep.subr.mxu0 0.0
        %1139 = vmatpush2.xpose.msra.mxu0 0.0
        %1140 = vmatprep.subr.mxu0 0.0
        %1141 = vmatpush2.xpose.msra.mxu0 0.0
        %1142 = vmatprep.subr.mxu0 0.0
        %1143 = vmatpush2.xpose.msra.mxu0 0.0
        %1144 = vmatprep.subr.mxu0 0.0
        %1145 = vmatpush2.xpose.msra.mxu0 0.0
        %1146 = vmatprep.subr.mxu0 0.0
        %1147 = vmatpush2.xpose.msra.mxu0 0.0
        %1148 = vmatprep.subr.mxu0 0.0
        %1149 = vmatpush2.xpose.msra.mxu0 0.0
        %1150 = vmatprep.subr.mxu0 0.0
        %1151 = vmatpush2.xpose.msra.mxu0 0.0
        %1152 = vmatprep.subr.mxu0 0.0
        %1153 = vmatpush2.xpose.msra.mxu0 0.0
        %1154 = vmatprep.subr.mxu0 0.0
        %1155 = vmatpush2.xpose.msra.mxu0 0.0
        %1156 = vmatprep.subr.mxu0 0.0
        %1157 = vmatpush2.xpose.msra.mxu0 0.0
        %1158 = vmatprep.subr.mxu0 0.0
        %1159 = vmatpush2.xpose.msra.mxu0 0.0
        %1160 = vmatprep.subr.mxu0 0.0
        %1161 = vmatpush2.xpose.msra.mxu0 0.0
        %1162 = vmatprep.subr.mxu0 0.0
        %1163 = vmatpush2.xpose.msra.mxu0 0.0
        %1164 = vmatprep.subr.mxu0 0.0
        %1165 = vmatpush2.xpose.msra.mxu0 0.0
        %1166 = vmatprep.mubr.f32.mxu0 0.0
        %1167 = vmatmul.mubr.f32.gmra.mxu0 %v1079
        %v1168 = vpop.f32.mrf.mxu0
        %v1169 = vadd.f32 0.0, %v1168
        %v1170 = vpop.f32.mrf.mxu0
        %1171 = vmatprep.mubr.f32.mxu0 0.0
        %1172 = vmatmul.mubr.f32.gmra.mxu0 %v1082
        %v1173 = vpop.f32.mrf.mxu0
        %v1174 = vadd.f32 0.0, %v1173
        %v1175 = vpop.f32.mrf.mxu0
        %1176 = vmatprep.mubr.f32.mxu0 0.0
        %1177 = vmatmul.mubr.f32.gmra.mxu0 %v1085
        %v1178 = vpop.f32.mrf.mxu0
        %v1179 = vadd.f32 0.0, %v1178
        %v1180 = vpop.f32.mrf.mxu0
        %1181 = vmatprep.mubr.f32.mxu0 0.0
        %1182 = vmatmul.mubr.f32.gmra.mxu0 %v1088
        %v1183 = vpop.f32.mrf.mxu0
        %v1184 = vadd.f32 0.0, %v1183
        %v1185 = vpop.f32.mrf.mxu0
        %1186 = vdwg.mxu0
        %v1188 = vsel %vm759, %v945, 0
        %v1191 = vsel %vm759, %v946, 0
        %v1194 = vsel %vm759, %v947, 0
        %v1197 = vsel %vm759, %v948, 0
        %v1200 = vsel %vm759, %v961, 0
        %v1203 = vsel %vm759, %v962, 0
        %v1206 = vsel %vm759, %v963, 0
        %v1209 = vsel %vm759, %v964, 0
        %1211 = vmatprep.subr.mxu0 0.0
        %1212 = vmatpush1.xpose.msra.mxu0 0.0
        %1213 = vmatprep.subr.mxu0 0.0
        %1214 = vmatpush1.xpose.msra.mxu0 0.0
        %1215 = vmatprep.subr.mxu0 0.0
        %1216 = vmatpush1.xpose.msra.mxu0 0.0
        %1217 = vmatprep.subr.mxu0 0.0
        %1218 = vmatpush1.xpose.msra.mxu0 0.0
        %1219 = vmatprep.subr.mxu0 0.0
        %1220 = vmatpush1.xpose.msra.mxu0 0.0
        %1221 = vmatprep.subr.mxu0 0.0
        %1222 = vmatpush1.xpose.msra.mxu0 0.0
        %1223 = vmatprep.subr.mxu0 0.0
        %1224 = vmatpush1.xpose.msra.mxu0 0.0
        %1225 = vmatprep.subr.mxu0 0.0
        %1226 = vmatpush1.xpose.msra.mxu0 0.0
        %1227 = vmatprep.subr.mxu0 0.0
        %1228 = vmatpush1.xpose.msra.mxu0 0.0
        %1229 = vmatprep.subr.mxu0 0.0
        %1230 = vmatpush1.xpose.msra.mxu0 0.0
        %1231 = vmatprep.subr.mxu0 0.0
        %1232 = vmatpush1.xpose.msra.mxu0 0.0
        %1233 = vmatprep.subr.mxu0 0.0
        %1234 = vmatpush1.xpose.msra.mxu0 0.0
        %1235 = vmatprep.subr.mxu0 0.0
        %1236 = vmatpush1.xpose.msra.mxu0 %v1209
        %1237 = vmatprep.subr.mxu0 0.0
        %1238 = vmatpush1.xpose.msra.mxu0 %v1206
        %1239 = vmatprep.subr.mxu0 0.0
        %1240 = vmatpush1.xpose.msra.mxu0 %v1203
        %1241 = vmatprep.subr.mxu0 0.0
        %1242 = vmatpush1.xpose.msra.mxu0 %v1200
        %1243 = vmatprep.subr.mxu0 0.0
        %1244 = vmatpush2.xpose.msra.mxu0 0.0
        %1245 = vmatprep.subr.mxu0 0.0
        %1246 = vmatpush2.xpose.msra.mxu0 0.0
        %1247 = vmatprep.subr.mxu0 0.0
        %1248 = vmatpush2.xpose.msra.mxu0 0.0
        %1249 = vmatprep.subr.mxu0 0.0
        %1250 = vmatpush2.xpose.msra.mxu0 0.0
        %1251 = vmatprep.subr.mxu0 0.0
        %1252 = vmatpush2.xpose.msra.mxu0 0.0
        %1253 = vmatprep.subr.mxu0 0.0
        %1254 = vmatpush2.xpose.msra.mxu0 0.0
        %1255 = vmatprep.subr.mxu0 0.0
        %1256 = vmatpush2.xpose.msra.mxu0 0.0
        %1257 = vmatprep.subr.mxu0 0.0
        %1258 = vmatpush2.xpose.msra.mxu0 0.0
        %1259 = vmatprep.subr.mxu0 0.0
        %1260 = vmatpush2.xpose.msra.mxu0 0.0
        %1261 = vmatprep.subr.mxu0 0.0
        %1262 = vmatpush2.xpose.msra.mxu0 0.0
        %1263 = vmatprep.subr.mxu0 0.0
        %1264 = vmatpush2.xpose.msra.mxu0 0.0
        %1265 = vmatprep.subr.mxu0 0.0
        %1266 = vmatpush2.xpose.msra.mxu0 0.0
        %1267 = vmatprep.subr.mxu0 0.0
        %1268 = vmatpush2.xpose.msra.mxu0 0.0
        %1269 = vmatprep.subr.mxu0 0.0
        %1270 = vmatpush2.xpose.msra.mxu0 0.0
        %1271 = vmatprep.subr.mxu0 0.0
        %1272 = vmatpush2.xpose.msra.mxu0 0.0
        %1273 = vmatprep.subr.mxu0 0.0
        %1274 = vmatpush2.xpose.msra.mxu0 0.0
        %1275 = vmatprep.mubr.f32.mxu0 0.0
        %1276 = vmatmul.mubr.f32.gmra.mxu0 %v1188
        %v1277 = vpop.f32.mrf.mxu0
        %v1278 = vadd.f32 0.0, %v1277
        %v1279 = vpop.f32.mrf.mxu0
        %1280 = vmatprep.mubr.f32.mxu0 0.0
        %1281 = vmatmul.mubr.f32.gmra.mxu0 %v1191
        %v1282 = vpop.f32.mrf.mxu0
        %v1283 = vadd.f32 0.0, %v1282
        %v1284 = vpop.f32.mrf.mxu0
        %1285 = vmatprep.mubr.f32.mxu0 0.0
        %1286 = vmatmul.mubr.f32.gmra.mxu0 %v1194
        %v1287 = vpop.f32.mrf.mxu0
        %v1288 = vadd.f32 0.0, %v1287
        %v1289 = vpop.f32.mrf.mxu0
        %1290 = vmatprep.mubr.f32.mxu0 0.0
        %1291 = vmatmul.mubr.f32.gmra.mxu0 %v1197
        %v1292 = vpop.f32.mrf.mxu0
        %v1293 = vadd.f32 0.0, %v1292
        %v1294 = vpop.f32.mrf.mxu0
        %1295 = vdwg.mxu0
        %v1297 = vsel %vm759, %v949, 0
        %v1300 = vsel %vm759, %v950, 0
        %v1303 = vsel %vm759, %v951, 0
        %v1306 = vsel %vm759, %v952, 0
        %v1309 = vsel %vm759, %v965, 0
        %v1312 = vsel %vm759, %v966, 0
        %v1315 = vsel %vm759, %v967, 0
        %v1318 = vsel %vm759, %v968, 0
        %1320 = vmatprep.subr.mxu0 0.0
        %1321 = vmatpush1.xpose.msra.mxu0 0.0
        %1322 = vmatprep.subr.mxu0 0.0
        %1323 = vmatpush1.xpose.msra.mxu0 0.0
        %1324 = vmatprep.subr.mxu0 0.0
        %1325 = vmatpush1.xpose.msra.mxu0 0.0
        %1326 = vmatprep.subr.mxu0 0.0
        %1327 = vmatpush1.xpose.msra.mxu0 0.0
        %1328 = vmatprep.subr.mxu0 0.0
        %1329 = vmatpush1.xpose.msra.mxu0 0.0
        %1330 = vmatprep.subr.mxu0 0.0
        %1331 = vmatpush1.xpose.msra.mxu0 0.0
        %1332 = vmatprep.subr.mxu0 0.0
        %1333 = vmatpush1.xpose.msra.mxu0 0.0
        %1334 = vmatprep.subr.mxu0 0.0
        %1335 = vmatpush1.xpose.msra.mxu0 0.0
        %1336 = vmatprep.subr.mxu0 0.0
        %1337 = vmatpush1.xpose.msra.mxu0 0.0
        %1338 = vmatprep.subr.mxu0 0.0
        %1339 = vmatpush1.xpose.msra.mxu0 0.0
        %1340 = vmatprep.subr.mxu0 0.0
        %1341 = vmatpush1.xpose.msra.mxu0 0.0
        %1342 = vmatprep.subr.mxu0 0.0
        %1343 = vmatpush1.xpose.msra.mxu0 0.0
        %1344 = vmatprep.subr.mxu0 0.0
        %1345 = vmatpush1.xpose.msra.mxu0 %v1318
        %1346 = vmatprep.subr.mxu0 0.0
        %1347 = vmatpush1.xpose.msra.mxu0 %v1315
        %1348 = vmatprep.subr.mxu0 0.0
        %1349 = vmatpush1.xpose.msra.mxu0 %v1312
        %1350 = vmatprep.subr.mxu0 0.0
        %1351 = vmatpush1.xpose.msra.mxu0 %v1309
        %1352 = vmatprep.subr.mxu0 0.0
        %1353 = vmatpush2.xpose.msra.mxu0 0.0
        %1354 = vmatprep.subr.mxu0 0.0
        %1355 = vmatpush2.xpose.msra.mxu0 0.0
        %1356 = vmatprep.subr.mxu0 0.0
        %1357 = vmatpush2.xpose.msra.mxu0 0.0
        %1358 = vmatprep.subr.mxu0 0.0
        %1359 = vmatpush2.xpose.msra.mxu0 0.0
        %1360 = vmatprep.subr.mxu0 0.0
        %1361 = vmatpush2.xpose.msra.mxu0 0.0
        %1362 = vmatprep.subr.mxu0 0.0
        %1363 = vmatpush2.xpose.msra.mxu0 0.0
        %1364 = vmatprep.subr.mxu0 0.0
        %1365 = vmatpush2.xpose.msra.mxu0 0.0
        %1366 = vmatprep.subr.mxu0 0.0
        %1367 = vmatpush2.xpose.msra.mxu0 0.0
        %1368 = vmatprep.subr.mxu0 0.0
        %1369 = vmatpush2.xpose.msra.mxu0 0.0
        %1370 = vmatprep.subr.mxu0 0.0
        %1371 = vmatpush2.xpose.msra.mxu0 0.0
        %1372 = vmatprep.subr.mxu0 0.0
        %1373 = vmatpush2.xpose.msra.mxu0 0.0
        %1374 = vmatprep.subr.mxu0 0.0
        %1375 = vmatpush2.xpose.msra.mxu0 0.0
        %1376 = vmatprep.subr.mxu0 0.0
        %1377 = vmatpush2.xpose.msra.mxu0 0.0
        %1378 = vmatprep.subr.mxu0 0.0
        %1379 = vmatpush2.xpose.msra.mxu0 0.0
        %1380 = vmatprep.subr.mxu0 0.0
        %1381 = vmatpush2.xpose.msra.mxu0 0.0
        %1382 = vmatprep.subr.mxu0 0.0
        %1383 = vmatpush2.xpose.msra.mxu0 0.0
        %1384 = vmatprep.mubr.f32.mxu0 0.0
        %1385 = vmatmul.mubr.f32.gmra.mxu0 %v1297
        %v1386 = vpop.f32.mrf.mxu0
        %v1387 = vadd.f32 0.0, %v1386
        %v1388 = vpop.f32.mrf.mxu0
        %1389 = vmatprep.mubr.f32.mxu0 0.0
        %1390 = vmatmul.mubr.f32.gmra.mxu0 %v1300
        %v1391 = vpop.f32.mrf.mxu0
        %v1392 = vadd.f32 0.0, %v1391
        %v1393 = vpop.f32.mrf.mxu0
        %1394 = vmatprep.mubr.f32.mxu0 0.0
        %1395 = vmatmul.mubr.f32.gmra.mxu0 %v1303
        %v1396 = vpop.f32.mrf.mxu0
        %v1397 = vadd.f32 0.0, %v1396
        %v1398 = vpop.f32.mrf.mxu0
        %1399 = vmatprep.mubr.f32.mxu0 0.0
        %1400 = vmatmul.mubr.f32.gmra.mxu0 %v1306
        %v1401 = vpop.f32.mrf.mxu0
        %v1402 = vadd.f32 0.0, %v1401
        %v1403 = vpop.f32.mrf.mxu0
        %1404 = vdwg.mxu0
        %vm1405 = vcmp.ne.f32.partialorder %v1060, %v1060
        %vm1406 = vcmp.ne.f32.partialorder %v1065, %v1065
        %vm1407 = vcmp.ne.f32.partialorder %v1070, %v1070
        %vm1408 = vcmp.ne.f32.partialorder %v1075, %v1075
        %vm1409 = vcmp.ne.f32.partialorder %v1169, %v1169
        %vm1410 = vcmp.ne.f32.partialorder %v1174, %v1174
        %vm1411 = vcmp.ne.f32.partialorder %v1179, %v1179
        %vm1412 = vcmp.ne.f32.partialorder %v1184, %v1184
        %vm1413 = vcmp.ne.f32.partialorder %v1278, %v1278
        %vm1414 = vcmp.ne.f32.partialorder %v1283, %v1283
        %vm1415 = vcmp.ne.f32.partialorder %v1288, %v1288
        %vm1416 = vcmp.ne.f32.partialorder %v1293, %v1293
        %vm1417 = vcmp.ne.f32.partialorder %v1387, %v1387
        %vm1418 = vcmp.ne.f32.partialorder %v1392, %v1392
        %vm1419 = vcmp.ne.f32.partialorder %v1397, %v1397
        %vm1420 = vcmp.ne.f32.partialorder %v1402, %v1402
        %v1421 = vsel %vm1405, -1e+09, %v1060
        %v1422 = vsel %vm1406, -1e+09, %v1065
        %v1423 = vsel %vm1407, -1e+09, %v1070
        %v1424 = vsel %vm1408, -1e+09, %v1075
        %v1425 = vsel %vm1409, -1e+09, %v1169
        %v1426 = vsel %vm1410, -1e+09, %v1174
        %v1427 = vsel %vm1411, -1e+09, %v1179
        %v1428 = vsel %vm1412, -1e+09, %v1184
        %v1429 = vsel %vm1413, -1e+09, %v1278
        %v1430 = vsel %vm1414, -1e+09, %v1283
        %v1431 = vsel %vm1415, -1e+09, %v1288
        %v1432 = vsel %vm1416, -1e+09, %v1293
        %v1433 = vsel %vm1417, -1e+09, %v1387
        %v1434 = vsel %vm1418, -1e+09, %v1392
        %v1435 = vsel %vm1419, -1e+09, %v1397
        %v1436 = vsel %vm1420, -1e+09, %v1402
        %v1437 = vmax.f32 %v1421, -10000.0
        %v1438 = vmax.f32 %v1422, -10000.0
        %v1439 = vmax.f32 %v1423, -10000.0
        %v1440 = vmax.f32 %v1424, -10000.0
        %v1441 = vmax.f32 %v1425, -10000.0
        %v1442 = vmax.f32 %v1426, -10000.0
        %v1443 = vmax.f32 %v1427, -10000.0
        %v1444 = vmax.f32 %v1428, -10000.0
        %v1445 = vmax.f32 %v1429, -10000.0
        %v1446 = vmax.f32 %v1430, -10000.0
        %v1447 = vmax.f32 %v1431, -10000.0
        %v1448 = vmax.f32 %v1432, -10000.0
        %v1449 = vmax.f32 %v1433, -10000.0
        %v1450 = vmax.f32 %v1434, -10000.0
        %v1451 = vmax.f32 %v1435, -10000.0
        %v1452 = vmax.f32 %v1436, -10000.0
        %v1453 = vmin.f32 %v1437, 10000.0
        %v1454 = vmin.f32 %v1438, 10000.0
        %v1455 = vmin.f32 %v1439, 10000.0
        %v1456 = vmin.f32 %v1440, 10000.0
        %v1457 = vmin.f32 %v1441, 10000.0
        %v1458 = vmin.f32 %v1442, 10000.0
        %v1459 = vmin.f32 %v1443, 10000.0
        %v1460 = vmin.f32 %v1444, 10000.0
        %v1461 = vmin.f32 %v1445, 10000.0
        %v1462 = vmin.f32 %v1446, 10000.0
        %v1463 = vmin.f32 %v1447, 10000.0
        %v1464 = vmin.f32 %v1448, 10000.0
        %v1465 = vmin.f32 %v1449, 10000.0
        %v1466 = vmin.f32 %v1450, 10000.0
        %v1467 = vmin.f32 %v1451, 10000.0
        %v1468 = vmin.f32 %v1452, 10000.0
        %v1469 = vld [vmem:[%s1] sm:$0xff]
        %v1470 = vld [vmem:[%s1 + $0x8] sm:$0xff]
        %v1471 = vld [vmem:[%s1 + $0x10] sm:$0xff]
        %v1472 = vld [vmem:[%s1 + $0x18] sm:$0xff]
        %v1473 = vmul.f32 %v1453, %v1469
        %v1474 = vmul.f32 %v1454, %v1470
        %v1475 = vmul.f32 %v1455, %v1471
        %v1476 = vmul.f32 %v1456, %v1472
        %v1477 = vmul.f32 %v1457, %v1469
        %v1478 = vmul.f32 %v1458, %v1470
        %v1479 = vmul.f32 %v1459, %v1471
        %v1480 = vmul.f32 %v1460, %v1472
        %v1481 = vmul.f32 %v1461, %v1469
        %v1482 = vmul.f32 %v1462, %v1470
        %v1483 = vmul.f32 %v1463, %v1471
        %v1484 = vmul.f32 %v1464, %v1472
        %v1485 = vmul.f32 %v1465, %v1469
        %v1486 = vmul.f32 %v1466, %v1470
        %v1487 = vmul.f32 %v1467, %v1471
        %v1488 = vmul.f32 %v1468, %v1472
        %vm1489 = vcmp.ne.f32.partialorder %v1473, %v1473
        %vm1490 = vcmp.ne.f32.partialorder %v1474, %v1474
        %vm1491 = vcmp.ne.f32.partialorder %v1475, %v1475
        %vm1492 = vcmp.ne.f32.partialorder %v1476, %v1476
        %vm1493 = vcmp.ne.f32.partialorder %v1477, %v1477
        %vm1494 = vcmp.ne.f32.partialorder %v1478, %v1478
        %vm1495 = vcmp.ne.f32.partialorder %v1479, %v1479
        %vm1496 = vcmp.ne.f32.partialorder %v1480, %v1480
        %vm1497 = vcmp.ne.f32.partialorder %v1481, %v1481
        %vm1498 = vcmp.ne.f32.partialorder %v1482, %v1482
        %vm1499 = vcmp.ne.f32.partialorder %v1483, %v1483
        %vm1500 = vcmp.ne.f32.partialorder %v1484, %v1484
        %vm1501 = vcmp.ne.f32.partialorder %v1485, %v1485
        %vm1502 = vcmp.ne.f32.partialorder %v1486, %v1486
        %vm1503 = vcmp.ne.f32.partialorder %v1487, %v1487
        %vm1504 = vcmp.ne.f32.partialorder %v1488, %v1488
        %v1505 = vsel %vm1489, -1e+09, %v1473
        %v1506 = vsel %vm1490, -1e+09, %v1474
        %v1507 = vsel %vm1491, -1e+09, %v1475
        %v1508 = vsel %vm1492, -1e+09, %v1476
        %v1509 = vsel %vm1493, -1e+09, %v1477
        %v1510 = vsel %vm1494, -1e+09, %v1478
        %v1511 = vsel %vm1495, -1e+09, %v1479
        %v1512 = vsel %vm1496, -1e+09, %v1480
        %v1513 = vsel %vm1497, -1e+09, %v1481
        %v1514 = vsel %vm1498, -1e+09, %v1482
        %v1515 = vsel %vm1499, -1e+09, %v1483
        %v1516 = vsel %vm1500, -1e+09, %v1484
        %v1517 = vsel %vm1501, -1e+09, %v1485
        %v1518 = vsel %vm1502, -1e+09, %v1486
        %v1519 = vsel %vm1503, -1e+09, %v1487
        %v1520 = vsel %vm1504, -1e+09, %v1488
        %v1521 = vmax.f32 %v1505, -10000.0
        %v1522 = vmax.f32 %v1506, -10000.0
        %v1523 = vmax.f32 %v1507, -10000.0
        %v1524 = vmax.f32 %v1508, -10000.0
        %v1525 = vmax.f32 %v1509, -10000.0
        %v1526 = vmax.f32 %v1510, -10000.0
        %v1527 = vmax.f32 %v1511, -10000.0
        %v1528 = vmax.f32 %v1512, -10000.0
        %v1529 = vmax.f32 %v1513, -10000.0
        %v1530 = vmax.f32 %v1514, -10000.0
        %v1531 = vmax.f32 %v1515, -10000.0
        %v1532 = vmax.f32 %v1516, -10000.0
        %v1533 = vmax.f32 %v1517, -10000.0
        %v1534 = vmax.f32 %v1518, -10000.0
        %v1535 = vmax.f32 %v1519, -10000.0
        %v1536 = vmax.f32 %v1520, -10000.0
        %v1537 = vmin.f32 %v1521, 10000.0
        %v1538 = vmin.f32 %v1522, 10000.0
        %v1539 = vmin.f32 %v1523, 10000.0
        %v1540 = vmin.f32 %v1524, 10000.0
        %v1541 = vmin.f32 %v1525, 10000.0
        %v1542 = vmin.f32 %v1526, 10000.0
        %v1543 = vmin.f32 %v1527, 10000.0
        %v1544 = vmin.f32 %v1528, 10000.0
        %v1545 = vmin.f32 %v1529, 10000.0
        %v1546 = vmin.f32 %v1530, 10000.0
        %v1547 = vmin.f32 %v1531, 10000.0
        %v1548 = vmin.f32 %v1532, 10000.0
        %v1549 = vmin.f32 %v1533, 10000.0
        %v1550 = vmin.f32 %v1534, 10000.0
        %v1551 = vmin.f32 %v1535, 10000.0
        %v1552 = vmin.f32 %v1536, 10000.0
        %v1553 = vsel %vm759, %v1537, -inf
        %1554 = vmax.xlane.f32.xlu0 %v1553
        %v1555 = vpop.xlane.xlu0 %1554
        %v1556 = vsel %vm759, %v1538, -inf
        %1557 = vmax.xlane.f32.xlu0 %v1556
        %v1558 = vpop.xlane.xlu0 %1557
        %v1559 = vsel %vm759, %v1539, -inf
        %1560 = vmax.xlane.f32.xlu0 %v1559
        %v1561 = vpop.xlane.xlu0 %1560
        %v1562 = vsel %vm759, %v1540, -inf
        %1563 = vmax.xlane.f32.xlu0 %v1562
        %v1564 = vpop.xlane.xlu0 %1563
        %v1565 = vsel %vm759, %v1541, -inf
        %1566 = vmax.xlane.f32.xlu0 %v1565
        %v1567 = vpop.xlane.xlu0 %1566
        %v1568 = vsel %vm759, %v1542, -inf
        %1569 = vmax.xlane.f32.xlu0 %v1568
        %v1570 = vpop.xlane.xlu0 %1569
        %v1571 = vsel %vm759, %v1543, -inf
        %1572 = vmax.xlane.f32.xlu0 %v1571
        %v1573 = vpop.xlane.xlu0 %1572
        %v1574 = vsel %vm759, %v1544, -inf
        %1575 = vmax.xlane.f32.xlu0 %v1574
        %v1576 = vpop.xlane.xlu0 %1575
        %v1577 = vsel %vm759, %v1545, -inf
        %1578 = vmax.xlane.f32.xlu0 %v1577
        %v1579 = vpop.xlane.xlu0 %1578
        %v1580 = vsel %vm759, %v1546, -inf
        %1581 = vmax.xlane.f32.xlu0 %v1580
        %v1582 = vpop.xlane.xlu0 %1581
        %v1583 = vsel %vm759, %v1547, -inf
        %1584 = vmax.xlane.f32.xlu0 %v1583
        %v1585 = vpop.xlane.xlu0 %1584
        %v1586 = vsel %vm759, %v1548, -inf
        %1587 = vmax.xlane.f32.xlu0 %v1586
        %v1588 = vpop.xlane.xlu0 %1587
        %v1589 = vsel %vm759, %v1549, -inf
        %1590 = vmax.xlane.f32.xlu0 %v1589
        %v1591 = vpop.xlane.xlu0 %1590
        %v1592 = vsel %vm759, %v1550, -inf
        %1593 = vmax.xlane.f32.xlu0 %v1592
        %v1594 = vpop.xlane.xlu0 %1593
        %v1595 = vsel %vm759, %v1551, -inf
        %1596 = vmax.xlane.f32.xlu0 %v1595
        %v1597 = vpop.xlane.xlu0 %1596
        %v1598 = vsel %vm759, %v1552, -inf
        %1599 = vmax.xlane.f32.xlu0 %v1598
        %v1600 = vpop.xlane.xlu0 %1599
        %v1601 = vsub.f32 %v1537, %v1555
        %v1602 = vsub.f32 %v1538, %v1558
        %v1603 = vsub.f32 %v1539, %v1561
        %v1604 = vsub.f32 %v1540, %v1564
        %v1605 = vsub.f32 %v1541, %v1567
        %v1606 = vsub.f32 %v1542, %v1570
        %v1607 = vsub.f32 %v1543, %v1573
        %v1608 = vsub.f32 %v1544, %v1576
        %v1609 = vsub.f32 %v1545, %v1579
        %v1610 = vsub.f32 %v1546, %v1582
        %v1611 = vsub.f32 %v1547, %v1585
        %v1612 = vsub.f32 %v1548, %v1588
        %v1613 = vsub.f32 %v1549, %v1591
        %v1614 = vsub.f32 %v1550, %v1594
        %v1615 = vsub.f32 %v1551, %v1597
        %v1616 = vsub.f32 %v1552, %v1600
        %v1617 = vmul.f32 %v1601, 1.442695
        %v1618 = vpow.pop %v1617
        %v1619 = vmul.f32 %v1602, 1.442695
        %v1620 = vpow.pop %v1619
        %v1621 = vmul.f32 %v1603, 1.442695
        %v1622 = vpow.pop %v1621
        %v1623 = vmul.f32 %v1604, 1.442695
        %v1624 = vpow.pop %v1623
        %v1625 = vmul.f32 %v1605, 1.442695
        %v1626 = vpow.pop %v1625
        %v1627 = vmul.f32 %v1606, 1.442695
        %v1628 = vpow.pop %v1627
        %v1629 = vmul.f32 %v1607, 1.442695
        %v1630 = vpow.pop %v1629
        %v1631 = vmul.f32 %v1608, 1.442695
        %v1632 = vpow.pop %v1631
        %v1633 = vmul.f32 %v1609, 1.442695
        %v1634 = vpow.pop %v1633
        %v1635 = vmul.f32 %v1610, 1.442695
        %v1636 = vpow.pop %v1635
        %v1637 = vmul.f32 %v1611, 1.442695
        %v1638 = vpow.pop %v1637
        %v1639 = vmul.f32 %v1612, 1.442695
        %v1640 = vpow.pop %v1639
        %v1641 = vmul.f32 %v1613, 1.442695
        %v1642 = vpow.pop %v1641
        %v1643 = vmul.f32 %v1614, 1.442695
        %v1644 = vpow.pop %v1643
        %v1645 = vmul.f32 %v1615, 1.442695
        %v1646 = vpow.pop %v1645
        %v1647 = vmul.f32 %v1616, 1.442695
        %v1648 = vpow.pop %v1647
        %v1649 = vsel %vm759, %v1618, 0.0
        %1650 = vadd.xlane.f32.xlu0 %v1649
        %v1651 = vpop.xlane.xlu0 %1650
        %v1652 = vsel %vm759, %v1620, 0.0
        %1653 = vadd.xlane.f32.xlu0 %v1652
        %v1654 = vpop.xlane.xlu0 %1653
        %v1655 = vsel %vm759, %v1622, 0.0
        %1656 = vadd.xlane.f32.xlu0 %v1655
        %v1657 = vpop.xlane.xlu0 %1656
        %v1658 = vsel %vm759, %v1624, 0.0
        %1659 = vadd.xlane.f32.xlu0 %v1658
        %v1660 = vpop.xlane.xlu0 %1659
        %v1661 = vsel %vm759, %v1626, 0.0
        %1662 = vadd.xlane.f32.xlu0 %v1661
        %v1663 = vpop.xlane.xlu0 %1662
        %v1664 = vsel %vm759, %v1628, 0.0
        %1665 = vadd.xlane.f32.xlu0 %v1664
        %v1666 = vpop.xlane.xlu0 %1665
        %v1667 = vsel %vm759, %v1630, 0.0
        %1668 = vadd.xlane.f32.xlu0 %v1667
        %v1669 = vpop.xlane.xlu0 %1668
        %v1670 = vsel %vm759, %v1632, 0.0
        %1671 = vadd.xlane.f32.xlu0 %v1670
        %v1672 = vpop.xlane.xlu0 %1671
        %v1673 = vsel %vm759, %v1634, 0.0
        %1674 = vadd.xlane.f32.xlu0 %v1673
        %v1675 = vpop.xlane.xlu0 %1674
        %v1676 = vsel %vm759, %v1636, 0.0
        %1677 = vadd.xlane.f32.xlu0 %v1676
        %v1678 = vpop.xlane.xlu0 %1677
        %v1679 = vsel %vm759, %v1638, 0.0
        %1680 = vadd.xlane.f32.xlu0 %v1679
        %v1681 = vpop.xlane.xlu0 %1680
        %v1682 = vsel %vm759, %v1640, 0.0
        %1683 = vadd.xlane.f32.xlu0 %v1682
        %v1684 = vpop.xlane.xlu0 %1683
        %v1685 = vsel %vm759, %v1642, 0.0
        %1686 = vadd.xlane.f32.xlu0 %v1685
        %v1687 = vpop.xlane.xlu0 %1686
        %v1688 = vsel %vm759, %v1644, 0.0
        %1689 = vadd.xlane.f32.xlu0 %v1688
        %v1690 = vpop.xlane.xlu0 %1689
        %v1691 = vsel %vm759, %v1646, 0.0
        %1692 = vadd.xlane.f32.xlu0 %v1691
        %v1693 = vpop.xlane.xlu0 %1692
        %v1694 = vsel %vm759, %v1648, 0.0
        %1695 = vadd.xlane.f32.xlu0 %v1694
        %v1696 = vpop.xlane.xlu0 %1695
        %v1697 = vrcp.pop %v1651
        %v1698 = vrcp.pop %v1654
        %v1699 = vrcp.pop %v1657
        %v1700 = vrcp.pop %v1660
        %v1701 = vrcp.pop %v1663
        %v1702 = vrcp.pop %v1666
        %v1703 = vrcp.pop %v1669
        %v1704 = vrcp.pop %v1672
        %v1705 = vrcp.pop %v1675
        %v1706 = vrcp.pop %v1678
        %v1707 = vrcp.pop %v1681
        %v1708 = vrcp.pop %v1684
        %v1709 = vrcp.pop %v1687
        %v1710 = vrcp.pop %v1690
        %v1711 = vrcp.pop %v1693
        %v1712 = vrcp.pop %v1696
        %v1713 = vmul.f32 %v1618, %v1697
        %v1714 = vmul.f32 %v1620, %v1698
        %v1715 = vmul.f32 %v1622, %v1699
        %v1716 = vmul.f32 %v1624, %v1700
        %v1717 = vmul.f32 %v1626, %v1701
        %v1718 = vmul.f32 %v1628, %v1702
        %v1719 = vmul.f32 %v1630, %v1703
        %v1720 = vmul.f32 %v1632, %v1704
        %v1721 = vmul.f32 %v1634, %v1705
        %v1722 = vmul.f32 %v1636, %v1706
        %v1723 = vmul.f32 %v1638, %v1707
        %v1724 = vmul.f32 %v1640, %v1708
        %v1725 = vmul.f32 %v1642, %v1709
        %v1726 = vmul.f32 %v1644, %v1710
        %v1727 = vmul.f32 %v1646, %v1711
        %v1728 = vmul.f32 %v1648, %v1712
        %v1729 = vld [vmem:[#allocation4] sm:$0xff]
        %v1730 = vld [vmem:[#allocation4 + $0x8] sm:$0xff]
        %v1731 = vld [vmem:[#allocation4 + $0x10] sm:$0xff]
        %v1732 = vld [vmem:[#allocation4 + $0x18] sm:$0xff]
        %v1733 = vld [vmem:[#allocation4 + $0x20] sm:$0xff]
        %v1734 = vld [vmem:[#allocation4 + $0x28] sm:$0xff]
        %v1735 = vld [vmem:[#allocation4 + $0x30] sm:$0xff]
        %v1736 = vld [vmem:[#allocation4 + $0x38] sm:$0xff]
        %v1737 = vld [vmem:[#allocation4 + $0x40] sm:$0xff]
        %v1738 = vld [vmem:[#allocation4 + $0x48] sm:$0xff]
        %v1739 = vld [vmem:[#allocation4 + $0x50] sm:$0xff]
        %v1740 = vld [vmem:[#allocation4 + $0x58] sm:$0xff]
        %v1741 = vld [vmem:[#allocation4 + $0x60] sm:$0xff]
        %v1742 = vld [vmem:[#allocation4 + $0x68] sm:$0xff]
        %v1743 = vld [vmem:[#allocation4 + $0x70] sm:$0xff]
        %v1744 = vld [vmem:[#allocation4 + $0x78] sm:$0xff]
        %v1746 = vsel %vm759, %v1713, 0
        %v1749 = vsel %vm759, %v1714, 0
        %v1752 = vsel %vm759, %v1715, 0
        %v1755 = vsel %vm759, %v1716, 0
        %1757 = vmatprep.subr.mxu0 0.0
        %1758 = vmatpush1.msra.mxu0 0.0
        %1759 = vmatprep.subr.mxu0 0.0
        %1760 = vmatpush1.msra.mxu0 0.0
        %1761 = vmatprep.subr.mxu0 0.0
        %1762 = vmatpush1.msra.mxu0 0.0
        %1763 = vmatprep.subr.mxu0 0.0
        %1764 = vmatpush1.msra.mxu0 0.0
        %1765 = vmatprep.subr.mxu0 0.0
        %1766 = vmatpush1.msra.mxu0 0.0
        %1767 = vmatprep.subr.mxu0 0.0
        %1768 = vmatpush1.msra.mxu0 0.0
        %1769 = vmatprep.subr.mxu0 0.0
        %1770 = vmatpush1.msra.mxu0 0.0
        %1771 = vmatprep.subr.mxu0 0.0
        %1772 = vmatpush1.msra.mxu0 0.0
        %1773 = vmatprep.subr.mxu0 0.0
        %1774 = vmatpush1.msra.mxu0 0.0
        %1775 = vmatprep.subr.mxu0 0.0
        %1776 = vmatpush1.msra.mxu0 0.0
        %1777 = vmatprep.subr.mxu0 0.0
        %1778 = vmatpush1.msra.mxu0 0.0
        %1779 = vmatprep.subr.mxu0 0.0
        %1780 = vmatpush1.msra.mxu0 0.0
        %1781 = vmatprep.subr.mxu0 0.0
        %1782 = vmatpush1.msra.mxu0 %v1732
        %1783 = vmatprep.subr.mxu0 0.0
        %1784 = vmatpush1.msra.mxu0 %v1731
        %1785 = vmatprep.subr.mxu0 0.0
        %1786 = vmatpush1.msra.mxu0 %v1730
        %1787 = vmatprep.subr.mxu0 0.0
        %1788 = vmatpush1.msra.mxu0 %v1729
        %1789 = vmatprep.subr.mxu0 0.0
        %1790 = vmatpush2.msra.mxu0 0.0
        %1791 = vmatprep.subr.mxu0 0.0
        %1792 = vmatpush2.msra.mxu0 0.0
        %1793 = vmatprep.subr.mxu0 0.0
        %1794 = vmatpush2.msra.mxu0 0.0
        %1795 = vmatprep.subr.mxu0 0.0
        %1796 = vmatpush2.msra.mxu0 0.0
        %1797 = vmatprep.subr.mxu0 0.0
        %1798 = vmatpush2.msra.mxu0 0.0
        %1799 = vmatprep.subr.mxu0 0.0
        %1800 = vmatpush2.msra.mxu0 0.0
        %1801 = vmatprep.subr.mxu0 0.0
        %1802 = vmatpush2.msra.mxu0 0.0
        %1803 = vmatprep.subr.mxu0 0.0
        %1804 = vmatpush2.msra.mxu0 0.0
        %1805 = vmatprep.subr.mxu0 0.0
        %1806 = vmatpush2.msra.mxu0 0.0
        %1807 = vmatprep.subr.mxu0 0.0
        %1808 = vmatpush2.msra.mxu0 0.0
        %1809 = vmatprep.subr.mxu0 0.0
        %1810 = vmatpush2.msra.mxu0 0.0
        %1811 = vmatprep.subr.mxu0 0.0
        %1812 = vmatpush2.msra.mxu0 0.0
        %1813 = vmatprep.subr.mxu0 0.0
        %1814 = vmatpush2.msra.mxu0 0.0
        %1815 = vmatprep.subr.mxu0 0.0
        %1816 = vmatpush2.msra.mxu0 0.0
        %1817 = vmatprep.subr.mxu0 0.0
        %1818 = vmatpush2.msra.mxu0 0.0
        %1819 = vmatprep.subr.mxu0 0.0
        %1820 = vmatpush2.msra.mxu0 0.0
        %1821 = vmatprep.mubr.f32.mxu0 0.0
        %1822 = vmatmul.mubr.f32.gmra.mxu0 %v1746
        %v1823 = vpop.f32.mrf.mxu0
        %v1824 = vadd.f32 0.0, %v1823
        %v1825 = vpop.f32.mrf.mxu0
        %1826 = vmatprep.mubr.f32.mxu0 0.0
        %1827 = vmatmul.mubr.f32.gmra.mxu0 %v1749
        %v1828 = vpop.f32.mrf.mxu0
        %v1829 = vadd.f32 0.0, %v1828
        %v1830 = vpop.f32.mrf.mxu0
        %1831 = vmatprep.mubr.f32.mxu0 0.0
        %1832 = vmatmul.mubr.f32.gmra.mxu0 %v1752
        %v1833 = vpop.f32.mrf.mxu0
        %v1834 = vadd.f32 0.0, %v1833
        %v1835 = vpop.f32.mrf.mxu0
        %1836 = vmatprep.mubr.f32.mxu0 0.0
        %1837 = vmatmul.mubr.f32.gmra.mxu0 %v1755
        %v1838 = vpop.f32.mrf.mxu0
        %v1839 = vadd.f32 0.0, %v1838
        %v1840 = vpop.f32.mrf.mxu0
        %1841 = vdwg.mxu0
        %v1843 = vsel %vm759, %v1717, 0
        %v1846 = vsel %vm759, %v1718, 0
        %v1849 = vsel %vm759, %v1719, 0
        %v1852 = vsel %vm759, %v1720, 0
        %1854 = vmatprep.subr.mxu0 0.0
        %1855 = vmatpush1.msra.mxu0 0.0
        %1856 = vmatprep.subr.mxu0 0.0
        %1857 = vmatpush1.msra.mxu0 0.0
        %1858 = vmatprep.subr.mxu0 0.0
        %1859 = vmatpush1.msra.mxu0 0.0
        %1860 = vmatprep.subr.mxu0 0.0
        %1861 = vmatpush1.msra.mxu0 0.0
        %1862 = vmatprep.subr.mxu0 0.0
        %1863 = vmatpush1.msra.mxu0 0.0
        %1864 = vmatprep.subr.mxu0 0.0
        %1865 = vmatpush1.msra.mxu0 0.0
        %1866 = vmatprep.subr.mxu0 0.0
        %1867 = vmatpush1.msra.mxu0 0.0
        %1868 = vmatprep.subr.mxu0 0.0
        %1869 = vmatpush1.msra.mxu0 0.0
        %1870 = vmatprep.subr.mxu0 0.0
        %1871 = vmatpush1.msra.mxu0 0.0
        %1872 = vmatprep.subr.mxu0 0.0
        %1873 = vmatpush1.msra.mxu0 0.0
        %1874 = vmatprep.subr.mxu0 0.0
        %1875 = vmatpush1.msra.mxu0 0.0
        %1876 = vmatprep.subr.mxu0 0.0
        %1877 = vmatpush1.msra.mxu0 0.0
        %1878 = vmatprep.subr.mxu0 0.0
        %1879 = vmatpush1.msra.mxu0 %v1736
        %1880 = vmatprep.subr.mxu0 0.0
        %1881 = vmatpush1.msra.mxu0 %v1735
        %1882 = vmatprep.subr.mxu0 0.0
        %1883 = vmatpush1.msra.mxu0 %v1734
        %1884 = vmatprep.subr.mxu0 0.0
        %1885 = vmatpush1.msra.mxu0 %v1733
        %1886 = vmatprep.subr.mxu0 0.0
        %1887 = vmatpush2.msra.mxu0 0.0
        %1888 = vmatprep.subr.mxu0 0.0
        %1889 = vmatpush2.msra.mxu0 0.0
        %1890 = vmatprep.subr.mxu0 0.0
        %1891 = vmatpush2.msra.mxu0 0.0
        %1892 = vmatprep.subr.mxu0 0.0
        %1893 = vmatpush2.msra.mxu0 0.0
        %1894 = vmatprep.subr.mxu0 0.0
        %1895 = vmatpush2.msra.mxu0 0.0
        %1896 = vmatprep.subr.mxu0 0.0
        %1897 = vmatpush2.msra.mxu0 0.0
        %1898 = vmatprep.subr.mxu0 0.0
        %1899 = vmatpush2.msra.mxu0 0.0
        %1900 = vmatprep.subr.mxu0 0.0
        %1901 = vmatpush2.msra.mxu0 0.0
        %1902 = vmatprep.subr.mxu0 0.0
        %1903 = vmatpush2.msra.mxu0 0.0
        %1904 = vmatprep.subr.mxu0 0.0
        %1905 = vmatpush2.msra.mxu0 0.0
        %1906 = vmatprep.subr.mxu0 0.0
        %1907 = vmatpush2.msra.mxu0 0.0
        %1908 = vmatprep.subr.mxu0 0.0
        %1909 = vmatpush2.msra.mxu0 0.0
        %1910 = vmatprep.subr.mxu0 0.0
        %1911 = vmatpush2.msra.mxu0 0.0
        %1912 = vmatprep.subr.mxu0 0.0
        %1913 = vmatpush2.msra.mxu0 0.0
        %1914 = vmatprep.subr.mxu0 0.0
        %1915 = vmatpush2.msra.mxu0 0.0
        %1916 = vmatprep.subr.mxu0 0.0
        %1917 = vmatpush2.msra.mxu0 0.0
        %1918 = vmatprep.mubr.f32.mxu0 0.0
        %1919 = vmatmul.mubr.f32.gmra.mxu0 %v1843
        %v1920 = vpop.f32.mrf.mxu0
        %v1921 = vadd.f32 0.0, %v1920
        %v1922 = vpop.f32.mrf.mxu0
        %1923 = vmatprep.mubr.f32.mxu0 0.0
        %1924 = vmatmul.mubr.f32.gmra.mxu0 %v1846
        %v1925 = vpop.f32.mrf.mxu0
        %v1926 = vadd.f32 0.0, %v1925
        %v1927 = vpop.f32.mrf.mxu0
        %1928 = vmatprep.mubr.f32.mxu0 0.0
        %1929 = vmatmul.mubr.f32.gmra.mxu0 %v1849
        %v1930 = vpop.f32.mrf.mxu0
        %v1931 = vadd.f32 0.0, %v1930
        %v1932 = vpop.f32.mrf.mxu0
        %1933 = vmatprep.mubr.f32.mxu0 0.0
        %1934 = vmatmul.mubr.f32.gmra.mxu0 %v1852
        %v1935 = vpop.f32.mrf.mxu0
        %v1936 = vadd.f32 0.0, %v1935
        %v1937 = vpop.f32.mrf.mxu0
        %1938 = vdwg.mxu0
        %v1940 = vsel %vm759, %v1721, 0
        %v1943 = vsel %vm759, %v1722, 0
        %v1946 = vsel %vm759, %v1723, 0
        %v1949 = vsel %vm759, %v1724, 0
        %1951 = vmatprep.subr.mxu0 0.0
        %1952 = vmatpush1.msra.mxu0 0.0
        %1953 = vmatprep.subr.mxu0 0.0
        %1954 = vmatpush1.msra.mxu0 0.0
        %1955 = vmatprep.subr.mxu0 0.0
        %1956 = vmatpush1.msra.mxu0 0.0
        %1957 = vmatprep.subr.mxu0 0.0
        %1958 = vmatpush1.msra.mxu0 0.0
        %1959 = vmatprep.subr.mxu0 0.0
        %1960 = vmatpush1.msra.mxu0 0.0
        %1961 = vmatprep.subr.mxu0 0.0
        %1962 = vmatpush1.msra.mxu0 0.0
        %1963 = vmatprep.subr.mxu0 0.0
        %1964 = vmatpush1.msra.mxu0 0.0
        %1965 = vmatprep.subr.mxu0 0.0
        %1966 = vmatpush1.msra.mxu0 0.0
        %1967 = vmatprep.subr.mxu0 0.0
        %1968 = vmatpush1.msra.mxu0 0.0
        %1969 = vmatprep.subr.mxu0 0.0
        %1970 = vmatpush1.msra.mxu0 0.0
        %1971 = vmatprep.subr.mxu0 0.0
        %1972 = vmatpush1.msra.mxu0 0.0
        %1973 = vmatprep.subr.mxu0 0.0
        %1974 = vmatpush1.msra.mxu0 0.0
        %1975 = vmatprep.subr.mxu0 0.0
        %1976 = vmatpush1.msra.mxu0 %v1740
        %1977 = vmatprep.subr.mxu0 0.0
        %1978 = vmatpush1.msra.mxu0 %v1739
        %1979 = vmatprep.subr.mxu0 0.0
        %1980 = vmatpush1.msra.mxu0 %v1738
        %1981 = vmatprep.subr.mxu0 0.0
        %1982 = vmatpush1.msra.mxu0 %v1737
        %1983 = vmatprep.subr.mxu0 0.0
        %1984 = vmatpush2.msra.mxu0 0.0
        %1985 = vmatprep.subr.mxu0 0.0
        %1986 = vmatpush2.msra.mxu0 0.0
        %1987 = vmatprep.subr.mxu0 0.0
        %1988 = vmatpush2.msra.mxu0 0.0
        %1989 = vmatprep.subr.mxu0 0.0
        %1990 = vmatpush2.msra.mxu0 0.0
        %1991 = vmatprep.subr.mxu0 0.0
        %1992 = vmatpush2.msra.mxu0 0.0
        %1993 = vmatprep.subr.mxu0 0.0
        %1994 = vmatpush2.msra.mxu0 0.0
        %1995 = vmatprep.subr.mxu0 0.0
        %1996 = vmatpush2.msra.mxu0 0.0
        %1997 = vmatprep.subr.mxu0 0.0
        %1998 = vmatpush2.msra.mxu0 0.0
        %1999 = vmatprep.subr.mxu0 0.0
        %2000 = vmatpush2.msra.mxu0 0.0
        %2001 = vmatprep.subr.mxu0 0.0
        %2002 = vmatpush2.msra.mxu0 0.0
        %2003 = vmatprep.subr.mxu0 0.0
        %2004 = vmatpush2.msra.mxu0 0.0
        %2005 = vmatprep.subr.mxu0 0.0
        %2006 = vmatpush2.msra.mxu0 0.0
        %2007 = vmatprep.subr.mxu0 0.0
        %2008 = vmatpush2.msra.mxu0 0.0
        %2009 = vmatprep.subr.mxu0 0.0
        %2010 = vmatpush2.msra.mxu0 0.0
        %2011 = vmatprep.subr.mxu0 0.0
        %2012 = vmatpush2.msra.mxu0 0.0
        %2013 = vmatprep.subr.mxu0 0.0
        %2014 = vmatpush2.msra.mxu0 0.0
        %2015 = vmatprep.mubr.f32.mxu0 0.0
        %2016 = vmatmul.mubr.f32.gmra.mxu0 %v1940
        %v2017 = vpop.f32.mrf.mxu0
        %v2018 = vadd.f32 0.0, %v2017
        %v2019 = vpop.f32.mrf.mxu0
        %2020 = vmatprep.mubr.f32.mxu0 0.0
        %2021 = vmatmul.mubr.f32.gmra.mxu0 %v1943
        %v2022 = vpop.f32.mrf.mxu0
        %v2023 = vadd.f32 0.0, %v2022
        %v2024 = vpop.f32.mrf.mxu0
        %2025 = vmatprep.mubr.f32.mxu0 0.0
        %2026 = vmatmul.mubr.f32.gmra.mxu0 %v1946
        %v2027 = vpop.f32.mrf.mxu0
        %v2028 = vadd.f32 0.0, %v2027
        %v2029 = vpop.f32.mrf.mxu0
        %2030 = vmatprep.mubr.f32.mxu0 0.0
        %2031 = vmatmul.mubr.f32.gmra.mxu0 %v1949
        %v2032 = vpop.f32.mrf.mxu0
        %v2033 = vadd.f32 0.0, %v2032
        %v2034 = vpop.f32.mrf.mxu0
        %2035 = vdwg.mxu0
        %v2037 = vsel %vm759, %v1725, 0
        %v2040 = vsel %vm759, %v1726, 0
        %v2043 = vsel %vm759, %v1727, 0
        %v2046 = vsel %vm759, %v1728, 0
        %2048 = vmatprep.subr.mxu0 0.0
        %2049 = vmatpush1.msra.mxu0 0.0
        %2050 = vmatprep.subr.mxu0 0.0
        %2051 = vmatpush1.msra.mxu0 0.0
        %2052 = vmatprep.subr.mxu0 0.0
        %2053 = vmatpush1.msra.mxu0 0.0
        %2054 = vmatprep.subr.mxu0 0.0
        %2055 = vmatpush1.msra.mxu0 0.0
        %2056 = vmatprep.subr.mxu0 0.0
        %2057 = vmatpush1.msra.mxu0 0.0
        %2058 = vmatprep.subr.mxu0 0.0
        %2059 = vmatpush1.msra.mxu0 0.0
        %2060 = vmatprep.subr.mxu0 0.0
        %2061 = vmatpush1.msra.mxu0 0.0
        %2062 = vmatprep.subr.mxu0 0.0
        %2063 = vmatpush1.msra.mxu0 0.0
        %2064 = vmatprep.subr.mxu0 0.0
        %2065 = vmatpush1.msra.mxu0 0.0
        %2066 = vmatprep.subr.mxu0 0.0
        %2067 = vmatpush1.msra.mxu0 0.0
        %2068 = vmatprep.subr.mxu0 0.0
        %2069 = vmatpush1.msra.mxu0 0.0
        %2070 = vmatprep.subr.mxu0 0.0
        %2071 = vmatpush1.msra.mxu0 0.0
        %2072 = vmatprep.subr.mxu0 0.0
        %2073 = vmatpush1.msra.mxu0 %v1744
        %2074 = vmatprep.subr.mxu0 0.0
        %2075 = vmatpush1.msra.mxu0 %v1743
        %2076 = vmatprep.subr.mxu0 0.0
        %2077 = vmatpush1.msra.mxu0 %v1742
        %2078 = vmatprep.subr.mxu0 0.0
        %2079 = vmatpush1.msra.mxu0 %v1741
        %2080 = vmatprep.subr.mxu0 0.0
        %2081 = vmatpush2.msra.mxu0 0.0
        %2082 = vmatprep.subr.mxu0 0.0
        %2083 = vmatpush2.msra.mxu0 0.0
        %2084 = vmatprep.subr.mxu0 0.0
        %2085 = vmatpush2.msra.mxu0 0.0
        %2086 = vmatprep.subr.mxu0 0.0
        %2087 = vmatpush2.msra.mxu0 0.0
        %2088 = vmatprep.subr.mxu0 0.0
        %2089 = vmatpush2.msra.mxu0 0.0
        %2090 = vmatprep.subr.mxu0 0.0
        %2091 = vmatpush2.msra.mxu0 0.0
        %2092 = vmatprep.subr.mxu0 0.0
        %2093 = vmatpush2.msra.mxu0 0.0
        %2094 = vmatprep.subr.mxu0 0.0
        %2095 = vmatpush2.msra.mxu0 0.0
        %2096 = vmatprep.subr.mxu0 0.0
        %2097 = vmatpush2.msra.mxu0 0.0
        %2098 = vmatprep.subr.mxu0 0.0
        %2099 = vmatpush2.msra.mxu0 0.0
        %2100 = vmatprep.subr.mxu0 0.0
        %2101 = vmatpush2.msra.mxu0 0.0
        %2102 = vmatprep.subr.mxu0 0.0
        %2103 = vmatpush2.msra.mxu0 0.0
        %2104 = vmatprep.subr.mxu0 0.0
        %2105 = vmatpush2.msra.mxu0 0.0
        %2106 = vmatprep.subr.mxu0 0.0
        %2107 = vmatpush2.msra.mxu0 0.0
        %2108 = vmatprep.subr.mxu0 0.0
        %2109 = vmatpush2.msra.mxu0 0.0
        %2110 = vmatprep.subr.mxu0 0.0
        %2111 = vmatpush2.msra.mxu0 0.0
        %2112 = vmatprep.mubr.f32.mxu0 0.0
        %2113 = vmatmul.mubr.f32.gmra.mxu0 %v2037
        %v2114 = vpop.f32.mrf.mxu0
        %v2115 = vadd.f32 0.0, %v2114
        %v2116 = vpop.f32.mrf.mxu0
        %2117 = vmatprep.mubr.f32.mxu0 0.0
        %2118 = vmatmul.mubr.f32.gmra.mxu0 %v2040
        %v2119 = vpop.f32.mrf.mxu0
        %v2120 = vadd.f32 0.0, %v2119
        %v2121 = vpop.f32.mrf.mxu0
        %2122 = vmatprep.mubr.f32.mxu0 0.0
        %2123 = vmatmul.mubr.f32.gmra.mxu0 %v2043
        %v2124 = vpop.f32.mrf.mxu0
        %v2125 = vadd.f32 0.0, %v2124
        %v2126 = vpop.f32.mrf.mxu0
        %2127 = vmatprep.mubr.f32.mxu0 0.0
        %2128 = vmatmul.mubr.f32.gmra.mxu0 %v2046
        %v2129 = vpop.f32.mrf.mxu0
        %v2130 = vadd.f32 0.0, %v2129
        %v2131 = vpop.f32.mrf.mxu0
        %2132 = vdwg.mxu0
        %2133 = vst.msk [vmem:[#allocation5] sm:$0xff] %vm759, %v1824
        %2134 = vst.msk [vmem:[#allocation5 + $0x8] sm:$0xff] %vm759, %v1829
        %2135 = vst.msk [vmem:[#allocation5 + $0x10] sm:$0xff] %vm759, %v1834
        %2136 = vst.msk [vmem:[#allocation5 + $0x18] sm:$0xff] %vm759, %v1839
        %2141 = vrot.lane.b32.xlu0 %v1921, 32
        %v2142 = vpop.permute.xlu0 %2141
        %2143 = vrot.lane.b32.xlu0 %v1926, 32
        %v2144 = vpop.permute.xlu0 %2143
        %2145 = vrot.lane.b32.xlu0 %v1931, 32
        %v2146 = vpop.permute.xlu0 %2145
        %2147 = vrot.lane.b32.xlu0 %v1936, 32
        %v2148 = vpop.permute.xlu0 %2147
        %vm2153 = vcmask 523520
        %2154 = vst.msk [vmem:[#allocation5] sm:$0xff] %vm2153, %v2142
        %2155 = vst.msk [vmem:[#allocation5 + $0x8] sm:$0xff] %vm2153, %v2144
        %2156 = vst.msk [vmem:[#allocation5 + $0x10] sm:$0xff] %vm2153, %v2146
        %2157 = vst.msk [vmem:[#allocation5 + $0x18] sm:$0xff] %vm2153, %v2148
        %2162 = vrot.lane.b32.xlu0 %v2018, 64
        %v2163 = vpop.permute.xlu0 %2162
        %2164 = vrot.lane.b32.xlu0 %v2023, 64
        %v2165 = vpop.permute.xlu0 %2164
        %2166 = vrot.lane.b32.xlu0 %v2028, 64
        %v2167 = vpop.permute.xlu0 %2166
        %2168 = vrot.lane.b32.xlu0 %v2033, 64
        %v2169 = vpop.permute.xlu0 %2168
        %vm2174 = vcmask 785920
        %2175 = vst.msk [vmem:[#allocation5] sm:$0xff] %vm2174, %v2163
        %2176 = vst.msk [vmem:[#allocation5 + $0x8] sm:$0xff] %vm2174, %v2165
        %2177 = vst.msk [vmem:[#allocation5 + $0x10] sm:$0xff] %vm2174, %v2167
        %2178 = vst.msk [vmem:[#allocation5 + $0x18] sm:$0xff] %vm2174, %v2169
        %2183 = vrot.lane.b32.xlu0 %v2115, 96
        %v2184 = vpop.permute.xlu0 %2183
        %2185 = vrot.lane.b32.xlu0 %v2120, 96
        %v2186 = vpop.permute.xlu0 %2185
        %2187 = vrot.lane.b32.xlu0 %v2125, 96
        %v2188 = vpop.permute.xlu0 %2187
        %2189 = vrot.lane.b32.xlu0 %v2130, 96
        %v2190 = vpop.permute.xlu0 %2189
        %vm2195 = vcmask 1048320
        %2196 = vst.msk [vmem:[#allocation5] sm:$0xff] %vm2195, %v2184
        %2197 = vst.msk [vmem:[#allocation5 + $0x8] sm:$0xff] %vm2195, %v2186
        %2198 = vst.msk [vmem:[#allocation5 + $0x10] sm:$0xff] %vm2195, %v2188
        %2199 = vst.msk [vmem:[#allocation5 + $0x18] sm:$0xff] %vm2195, %v2190
        %v2200 = vld [vmem:[#allocation5] sm:$0xff]
        %v2201 = vld [vmem:[#allocation5 + $0x8] sm:$0xff]
        %v2202 = vld [vmem:[#allocation5 + $0x10] sm:$0xff]
        %v2203 = vld [vmem:[#allocation5 + $0x18] sm:$0xff]
        %v2204 = vld [vmem:[#allocation11] sm:$0xff]
        %v2205 = vld [vmem:[#allocation11 + $0x8] sm:$0xff]
        %v2206 = vld [vmem:[#allocation11 + $0x10] sm:$0xff]
        %v2207 = vld [vmem:[#allocation11 + $0x18] sm:$0xff]
        %v2208 = vld [vmem:[#allocation11 + $0x20] sm:$0xff]
        %v2209 = vld [vmem:[#allocation11 + $0x28] sm:$0xff]
        %v2210 = vld [vmem:[#allocation11 + $0x30] sm:$0xff]
        %v2211 = vld [vmem:[#allocation11 + $0x38] sm:$0xff]
        %v2212 = vld [vmem:[#allocation11 + $0x40] sm:$0xff]
        %v2213 = vld [vmem:[#allocation11 + $0x48] sm:$0xff]
        %v2214 = vld [vmem:[#allocation11 + $0x50] sm:$0xff]
        %v2215 = vld [vmem:[#allocation11 + $0x58] sm:$0xff]
        %v2216 = vld [vmem:[#allocation11 + $0x60] sm:$0xff]
        %v2217 = vld [vmem:[#allocation11 + $0x68] sm:$0xff]
        %v2218 = vld [vmem:[#allocation11 + $0x70] sm:$0xff]
        %v2219 = vld [vmem:[#allocation11 + $0x78] sm:$0xff]
        %2220 = vmatprep.subr.mxu0 0.0
        %2221 = vmatpush1.msra.mxu0 %v2219
        %2222 = vmatprep.subr.mxu0 0.0
        %2223 = vmatpush1.msra.mxu0 %v2218
        %2224 = vmatprep.subr.mxu0 0.0
        %2225 = vmatpush1.msra.mxu0 %v2217
        %2226 = vmatprep.subr.mxu0 0.0
        %2227 = vmatpush1.msra.mxu0 %v2216
        %2228 = vmatprep.subr.mxu0 0.0
        %2229 = vmatpush1.msra.mxu0 %v2215
        %2230 = vmatprep.subr.mxu0 0.0
        %2231 = vmatpush1.msra.mxu0 %v2214
        %2232 = vmatprep.subr.mxu0 0.0
        %2233 = vmatpush1.msra.mxu0 %v2213
        %2234 = vmatprep.subr.mxu0 0.0
        %2235 = vmatpush1.msra.mxu0 %v2212
        %2236 = vmatprep.subr.mxu0 0.0
        %2237 = vmatpush1.msra.mxu0 %v2211
        %2238 = vmatprep.subr.mxu0 0.0
        %2239 = vmatpush1.msra.mxu0 %v2210
        %2240 = vmatprep.subr.mxu0 0.0
        %2241 = vmatpush1.msra.mxu0 %v2209
        %2242 = vmatprep.subr.mxu0 0.0
        %2243 = vmatpush1.msra.mxu0 %v2208
        %2244 = vmatprep.subr.mxu0 0.0
        %2245 = vmatpush1.msra.mxu0 %v2207
        %2246 = vmatprep.subr.mxu0 0.0
        %2247 = vmatpush1.msra.mxu0 %v2206
        %2248 = vmatprep.subr.mxu0 0.0
        %2249 = vmatpush1.msra.mxu0 %v2205
        %2250 = vmatprep.subr.mxu0 0.0
        %2251 = vmatpush1.msra.mxu0 %v2204
        %2252 = vmatprep.subr.mxu0 0.0
        %2253 = vmatpush2.msra.mxu0 0.0
        %2254 = vmatprep.subr.mxu0 0.0
        %2255 = vmatpush2.msra.mxu0 0.0
        %2256 = vmatprep.subr.mxu0 0.0
        %2257 = vmatpush2.msra.mxu0 0.0
        %2258 = vmatprep.subr.mxu0 0.0
        %2259 = vmatpush2.msra.mxu0 0.0
        %2260 = vmatprep.subr.mxu0 0.0
        %2261 = vmatpush2.msra.mxu0 0.0
        %2262 = vmatprep.subr.mxu0 0.0
        %2263 = vmatpush2.msra.mxu0 0.0
        %2264 = vmatprep.subr.mxu0 0.0
        %2265 = vmatpush2.msra.mxu0 0.0
        %2266 = vmatprep.subr.mxu0 0.0
        %2267 = vmatpush2.msra.mxu0 0.0
        %2268 = vmatprep.subr.mxu0 0.0
        %2269 = vmatpush2.msra.mxu0 0.0
        %2270 = vmatprep.subr.mxu0 0.0
        %2271 = vmatpush2.msra.mxu0 0.0
        %2272 = vmatprep.subr.mxu0 0.0
        %2273 = vmatpush2.msra.mxu0 0.0
        %2274 = vmatprep.subr.mxu0 0.0
        %2275 = vmatpush2.msra.mxu0 0.0
        %2276 = vmatprep.subr.mxu0 0.0
        %2277 = vmatpush2.msra.mxu0 0.0
        %2278 = vmatprep.subr.mxu0 0.0
        %2279 = vmatpush2.msra.mxu0 0.0
        %2280 = vmatprep.subr.mxu0 0.0
        %2281 = vmatpush2.msra.mxu0 0.0
        %2282 = vmatprep.subr.mxu0 0.0
        %2283 = vmatpush2.msra.mxu0 0.0
        %2284 = vmatprep.mubr.f32.mxu0 0.0
        %2285 = vmatmul.mubr.f32.gmra.mxu0 %v2200
        %v2286 = vpop.f32.mrf.mxu0
        %v2287 = vadd.f32 0.0, %v2286
        %v2288 = vpop.f32.mrf.mxu0
        %2289 = vmatprep.mubr.f32.mxu0 0.0
        %2290 = vmatmul.mubr.f32.gmra.mxu0 %v2201
        %v2291 = vpop.f32.mrf.mxu0
        %v2292 = vadd.f32 0.0, %v2291
        %v2293 = vpop.f32.mrf.mxu0
        %2294 = vmatprep.mubr.f32.mxu0 0.0
        %2295 = vmatmul.mubr.f32.gmra.mxu0 %v2202
        %v2296 = vpop.f32.mrf.mxu0
        %v2297 = vadd.f32 0.0, %v2296
        %v2298 = vpop.f32.mrf.mxu0
        %2299 = vmatprep.mubr.f32.mxu0 0.0
        %2300 = vmatmul.mubr.f32.gmra.mxu0 %v2203
        %v2301 = vpop.f32.mrf.mxu0
        %v2302 = vadd.f32 0.0, %v2301
        %v2303 = vpop.f32.mrf.mxu0
        %2304 = vdwg.mxu0
        %v2305 = vld [vmem:[%s9] sm:$0x1]
        %v2306 = vld [vmem:[%s9 + $0x1] sm:$0x1]
        %v2307 = vld [vmem:[%s9 + $0x2] sm:$0x1]
        %v2308 = vld [vmem:[%s9 + $0x3] sm:$0x1]
        %v2309 = vld [vmem:[%s9 + $0x4] sm:$0x1]
        %v2310 = vadd.f32 %v431, %v2287
        %v2311 = vadd.f32 %v432, %v2292
        %v2312 = vadd.f32 %v433, %v2297
        %v2313 = vadd.f32 %v434, %v2302
        %2314 = vadd.xlane.f32.xlu0 %v2310
        %v2315 = vpop.xlane.xlu0 %2314
        %2316 = vadd.xlane.f32.xlu0 %v2311
        %v2317 = vpop.xlane.xlu0 %2316
        %2318 = vadd.xlane.f32.xlu0 %v2312
        %v2319 = vpop.xlane.xlu0 %2318
        %2320 = vadd.xlane.f32.xlu0 %v2313
        %v2321 = vpop.xlane.xlu0 %2320
        %v2322 = vrcp.pop 128.0
        %v2323 = vmul.f32 %v2315, %v2322
        %v2324 = vmul.f32 %v2317, %v2322
        %v2325 = vmul.f32 %v2319, %v2322
        %v2326 = vmul.f32 %v2321, %v2322
        %v2327 = vsub.f32 %v2310, %v2323
        %v2328 = vsub.f32 %v2311, %v2324
        %v2329 = vsub.f32 %v2312, %v2325
        %v2330 = vsub.f32 %v2313, %v2326
        %v2331 = vmul.f32 %v2327, %v2327
        %v2332 = vmul.f32 %v2328, %v2328
        %v2333 = vmul.f32 %v2329, %v2329
        %v2334 = vmul.f32 %v2330, %v2330
        %2335 = vadd.xlane.f32.xlu0 %v2331
        %v2336 = vpop.xlane.xlu0 %2335
        %2337 = vadd.xlane.f32.xlu0 %v2332
        %v2338 = vpop.xlane.xlu0 %2337
        %2339 = vadd.xlane.f32.xlu0 %v2333
        %v2340 = vpop.xlane.xlu0 %2339
        %2341 = vadd.xlane.f32.xlu0 %v2334
        %v2342 = vpop.xlane.xlu0 %2341
        %v2343 = vmul.f32 %v2336, %v2322
        %v2344 = vmul.f32 %v2338, %v2322
        %v2345 = vmul.f32 %v2340, %v2322
        %v2346 = vmul.f32 %v2342, %v2322
        %v2347 = vadd.f32 %v2343, 1e-05
        %v2348 = vadd.f32 %v2344, 1e-05
        %v2349 = vadd.f32 %v2345, 1e-05
        %v2350 = vadd.f32 %v2346, 1e-05
        %v2351 = vrsqrt.pop %v2347
        %v2352 = vrsqrt.pop %v2348
        %v2353 = vrsqrt.pop %v2349
        %v2354 = vrsqrt.pop %v2350
        %v2355 = vmul.f32 %v2327, %v2351
        %v2356 = vmul.f32 %v2328, %v2352
        %v2357 = vmul.f32 %v2329, %v2353
        %v2358 = vmul.f32 %v2330, %v2354
        %v2359 = vlaneseq
        %v2360 = vshrl.u32 %v2359, 7
        %v2361 = vsub.s32 0, %v2360
        %v2362 = vrot.slane %v2305, %v2361
        %v2363 = vmul.f32 %v2355, %v2362
        %v2364 = vmul.f32 %v2356, %v2362
        %v2365 = vmul.f32 %v2357, %v2362
        %v2366 = vmul.f32 %v2358, %v2362
        %v2367 = vlaneseq
        %v2368 = vshrl.u32 %v2367, 7
        %v2369 = vsub.s32 0, %v2368
        %v2370 = vrot.slane %v2306, %v2369
        %v2371 = vadd.f32 %v2363, %v2370
        %v2372 = vadd.f32 %v2364, %v2370
        %v2373 = vadd.f32 %v2365, %v2370
        %v2374 = vadd.f32 %v2366, %v2370
        %v2375 = vld [vmem:[#allocation12] sm:$0xff]
        %v2376 = vld [vmem:[#allocation12 + $0x8] sm:$0xff]
        %v2377 = vld [vmem:[#allocation12 + $0x10] sm:$0xff]
        %v2378 = vld [vmem:[#allocation12 + $0x18] sm:$0xff]
        %v2379 = vld [vmem:[#allocation12 + $0x20] sm:$0xff]
        %v2380 = vld [vmem:[#allocation12 + $0x28] sm:$0xff]
        %v2381 = vld [vmem:[#allocation12 + $0x30] sm:$0xff]
        %v2382 = vld [vmem:[#allocation12 + $0x38] sm:$0xff]
        %v2383 = vld [vmem:[#allocation12 + $0x40] sm:$0xff]
        %v2384 = vld [vmem:[#allocation12 + $0x48] sm:$0xff]
        %v2385 = vld [vmem:[#allocation12 + $0x50] sm:$0xff]
        %v2386 = vld [vmem:[#allocation12 + $0x58] sm:$0xff]
        %v2387 = vld [vmem:[#allocation12 + $0x60] sm:$0xff]
        %v2388 = vld [vmem:[#allocation12 + $0x68] sm:$0xff]
        %v2389 = vld [vmem:[#allocation12 + $0x70] sm:$0xff]
        %v2390 = vld [vmem:[#allocation12 + $0x78] sm:$0xff]
        %v2391 = vld [vmem:[#allocation12 + $0x80] sm:$0xff]
        %v2392 = vld [vmem:[#allocation12 + $0x88] sm:$0xff]
        %v2393 = vld [vmem:[#allocation12 + $0x90] sm:$0xff]
        %v2394 = vld [vmem:[#allocation12 + $0x98] sm:$0xff]
        %v2395 = vld [vmem:[#allocation12 + $0xa0] sm:$0xff]
        %v2396 = vld [vmem:[#allocation12 + $0xa8] sm:$0xff]
        %v2397 = vld [vmem:[#allocation12 + $0xb0] sm:$0xff]
        %v2398 = vld [vmem:[#allocation12 + $0xb8] sm:$0xff]
        %v2399 = vld [vmem:[#allocation12 + $0xc0] sm:$0xff]
        %v2400 = vld [vmem:[#allocation12 + $0xc8] sm:$0xff]
        %v2401 = vld [vmem:[#allocation12 + $0xd0] sm:$0xff]
        %v2402 = vld [vmem:[#allocation12 + $0xd8] sm:$0xff]
        %v2403 = vld [vmem:[#allocation12 + $0xe0] sm:$0xff]
        %v2404 = vld [vmem:[#allocation12 + $0xe8] sm:$0xff]
        %v2405 = vld [vmem:[#allocation12 + $0xf0] sm:$0xff]
        %v2406 = vld [vmem:[#allocation12 + $0xf8] sm:$0xff]
        %v2407 = vld [vmem:[#allocation12 + $0x100] sm:$0xff]
        %v2408 = vld [vmem:[#allocation12 + $0x108] sm:$0xff]
        %v2409 = vld [vmem:[#allocation12 + $0x110] sm:$0xff]
        %v2410 = vld [vmem:[#allocation12 + $0x118] sm:$0xff]
        %v2411 = vld [vmem:[#allocation12 + $0x120] sm:$0xff]
        %v2412 = vld [vmem:[#allocation12 + $0x128] sm:$0xff]
        %v2413 = vld [vmem:[#allocation12 + $0x130] sm:$0xff]
        %v2414 = vld [vmem:[#allocation12 + $0x138] sm:$0xff]
        %v2415 = vld [vmem:[#allocation12 + $0x140] sm:$0xff]
        %v2416 = vld [vmem:[#allocation12 + $0x148] sm:$0xff]
        %v2417 = vld [vmem:[#allocation12 + $0x150] sm:$0xff]
        %v2418 = vld [vmem:[#allocation12 + $0x158] sm:$0xff]
        %v2419 = vld [vmem:[#allocation12 + $0x160] sm:$0xff]
        %v2420 = vld [vmem:[#allocation12 + $0x168] sm:$0xff]
        %v2421 = vld [vmem:[#allocation12 + $0x170] sm:$0xff]
        %v2422 = vld [vmem:[#allocation12 + $0x178] sm:$0xff]
        %v2423 = vld [vmem:[#allocation12 + $0x180] sm:$0xff]
        %v2424 = vld [vmem:[#allocation12 + $0x188] sm:$0xff]
        %v2425 = vld [vmem:[#allocation12 + $0x190] sm:$0xff]
        %v2426 = vld [vmem:[#allocation12 + $0x198] sm:$0xff]
        %v2427 = vld [vmem:[#allocation12 + $0x1a0] sm:$0xff]
        %v2428 = vld [vmem:[#allocation12 + $0x1a8] sm:$0xff]
        %v2429 = vld [vmem:[#allocation12 + $0x1b0] sm:$0xff]
        %v2430 = vld [vmem:[#allocation12 + $0x1b8] sm:$0xff]
        %v2431 = vld [vmem:[#allocation12 + $0x1c0] sm:$0xff]
        %v2432 = vld [vmem:[#allocation12 + $0x1c8] sm:$0xff]
        %v2433 = vld [vmem:[#allocation12 + $0x1d0] sm:$0xff]
        %v2434 = vld [vmem:[#allocation12 + $0x1d8] sm:$0xff]
        %v2435 = vld [vmem:[#allocation12 + $0x1e0] sm:$0xff]
        %v2436 = vld [vmem:[#allocation12 + $0x1e8] sm:$0xff]
        %v2437 = vld [vmem:[#allocation12 + $0x1f0] sm:$0xff]
        %v2438 = vld [vmem:[#allocation12 + $0x1f8] sm:$0xff]
        %v2439 = vld [vmem:[%s7] sm:$0xf]
        %v2441 = vlaneseq
        %v2442 = vshrl.u32 %v2441, 7
        %v2443 = vsub.s32 0, %v2442
        %v2444 = vrot.slane %v2439, %v2443
        %v2445 = vlaneseq
        %v2446 = vshrl.u32 %v2445, 7
        %v2447 = vsub.s32 1, %v2446
        %v2448 = vrot.slane %v2439, %v2447
        %v2449 = vlaneseq
        %v2450 = vshrl.u32 %v2449, 7
        %v2451 = vsub.s32 2, %v2450
        %v2452 = vrot.slane %v2439, %v2451
        %v2453 = vlaneseq
        %v2454 = vshrl.u32 %v2453, 7
        %v2455 = vsub.s32 3, %v2454
        %v2456 = vrot.slane %v2439, %v2455
        %2461 = vmatprep.subr.mxu0 %v2436
        %2462 = vmatpush1.msra.mxu0 %v2435
        %2463 = vmatprep.subr.mxu0 %v2432
        %2464 = vmatpush1.msra.mxu0 %v2431
        %2465 = vmatprep.subr.mxu0 %v2428
        %2466 = vmatpush1.msra.mxu0 %v2427
        %2467 = vmatprep.subr.mxu0 %v2424
        %2468 = vmatpush1.msra.mxu0 %v2423
        %2469 = vmatprep.subr.mxu0 %v2420
        %2470 = vmatpush1.msra.mxu0 %v2419
        %2471 = vmatprep.subr.mxu0 %v2416
        %2472 = vmatpush1.msra.mxu0 %v2415
        %2473 = vmatprep.subr.mxu0 %v2412
        %2474 = vmatpush1.msra.mxu0 %v2411
        %2475 = vmatprep.subr.mxu0 %v2408
        %2476 = vmatpush1.msra.mxu0 %v2407
        %2477 = vmatprep.subr.mxu0 %v2404
        %2478 = vmatpush1.msra.mxu0 %v2403
        %2479 = vmatprep.subr.mxu0 %v2400
        %2480 = vmatpush1.msra.mxu0 %v2399
        %2481 = vmatprep.subr.mxu0 %v2396
        %2482 = vmatpush1.msra.mxu0 %v2395
        %2483 = vmatprep.subr.mxu0 %v2392
        %2484 = vmatpush1.msra.mxu0 %v2391
        %2485 = vmatprep.subr.mxu0 %v2388
        %2486 = vmatpush1.msra.mxu0 %v2387
        %2487 = vmatprep.subr.mxu0 %v2384
        %2488 = vmatpush1.msra.mxu0 %v2383
        %2489 = vmatprep.subr.mxu0 %v2380
        %2490 = vmatpush1.msra.mxu0 %v2379
        %2491 = vmatprep.subr.mxu0 %v2376
        %2492 = vmatpush1.msra.mxu0 %v2375
        %2493 = vmatprep.subr.mxu0 0.0
        %2494 = vmatpush2.msra.mxu0 0.0
        %2495 = vmatprep.subr.mxu0 0.0
        %2496 = vmatpush2.msra.mxu0 0.0
        %2497 = vmatprep.subr.mxu0 0.0
        %2498 = vmatpush2.msra.mxu0 0.0
        %2499 = vmatprep.subr.mxu0 0.0
        %2500 = vmatpush2.msra.mxu0 0.0
        %2501 = vmatprep.subr.mxu0 0.0
        %2502 = vmatpush2.msra.mxu0 0.0
        %2503 = vmatprep.subr.mxu0 0.0
        %2504 = vmatpush2.msra.mxu0 0.0
        %2505 = vmatprep.subr.mxu0 0.0
        %2506 = vmatpush2.msra.mxu0 0.0
        %2507 = vmatprep.subr.mxu0 0.0
        %2508 = vmatpush2.msra.mxu0 0.0
        %2509 = vmatprep.subr.mxu0 0.0
        %2510 = vmatpush2.msra.mxu0 0.0
        %2511 = vmatprep.subr.mxu0 0.0
        %2512 = vmatpush2.msra.mxu0 0.0
        %2513 = vmatprep.subr.mxu0 0.0
        %2514 = vmatpush2.msra.mxu0 0.0
        %2515 = vmatprep.subr.mxu0 0.0
        %2516 = vmatpush2.msra.mxu0 0.0
        %2517 = vmatprep.subr.mxu0 0.0
        %2518 = vmatpush2.msra.mxu0 0.0
        %2519 = vmatprep.subr.mxu0 0.0
        %2520 = vmatpush2.msra.mxu0 0.0
        %2521 = vmatprep.subr.mxu0 0.0
        %2522 = vmatpush2.msra.mxu0 0.0
        %2523 = vmatprep.subr.mxu0 0.0
        %2524 = vmatpush2.msra.mxu0 0.0
        %2525 = vmatprep.mubr.f32.mxu0 0.0
        %2526 = vmatmul.mubr.f32.gmra.mxu0 %v2371
        %v2527 = vpop.f32.mrf.mxu0
        %v2528 = vadd.f32 %v2444, %v2527
        %v2529 = vpop.f32.mrf.mxu0
        %v2530 = vadd.f32 %v2448, %v2529
        %2531 = vmatprep.mubr.f32.mxu0 0.0
        %2532 = vmatmul.mubr.f32.gmra.mxu0 %v2372
        %v2533 = vpop.f32.mrf.mxu0
        %v2534 = vadd.f32 %v2444, %v2533
        %v2535 = vpop.f32.mrf.mxu0
        %v2536 = vadd.f32 %v2448, %v2535
        %2537 = vmatprep.mubr.f32.mxu0 0.0
        %2538 = vmatmul.mubr.f32.gmra.mxu0 %v2373
        %v2539 = vpop.f32.mrf.mxu0
        %v2540 = vadd.f32 %v2444, %v2539
        %v2541 = vpop.f32.mrf.mxu0
        %v2542 = vadd.f32 %v2448, %v2541
        %2543 = vmatprep.mubr.f32.mxu0 0.0
        %2544 = vmatmul.mubr.f32.gmra.mxu0 %v2374
        %v2545 = vpop.f32.mrf.mxu0
        %v2546 = vadd.f32 %v2444, %v2545
        %v2547 = vpop.f32.mrf.mxu0
        %v2548 = vadd.f32 %v2448, %v2547
        %2549 = vdwg.mxu0
        %2550 = vmatprep.subr.mxu0 %v2438
        %2551 = vmatpush1.msra.mxu0 %v2437
        %2552 = vmatprep.subr.mxu0 %v2434
        %2553 = vmatpush1.msra.mxu0 %v2433
        %2554 = vmatprep.subr.mxu0 %v2430
        %2555 = vmatpush1.msra.mxu0 %v2429
        %2556 = vmatprep.subr.mxu0 %v2426
        %2557 = vmatpush1.msra.mxu0 %v2425
        %2558 = vmatprep.subr.mxu0 %v2422
        %2559 = vmatpush1.msra.mxu0 %v2421
        %2560 = vmatprep.subr.mxu0 %v2418
        %2561 = vmatpush1.msra.mxu0 %v2417
        %2562 = vmatprep.subr.mxu0 %v2414
        %2563 = vmatpush1.msra.mxu0 %v2413
        %2564 = vmatprep.subr.mxu0 %v2410
        %2565 = vmatpush1.msra.mxu0 %v2409
        %2566 = vmatprep.subr.mxu0 %v2406
        %2567 = vmatpush1.msra.mxu0 %v2405
        %2568 = vmatprep.subr.mxu0 %v2402
        %2569 = vmatpush1.msra.mxu0 %v2401
        %2570 = vmatprep.subr.mxu0 %v2398
        %2571 = vmatpush1.msra.mxu0 %v2397
        %2572 = vmatprep.subr.mxu0 %v2394
        %2573 = vmatpush1.msra.mxu0 %v2393
        %2574 = vmatprep.subr.mxu0 %v2390
        %2575 = vmatpush1.msra.mxu0 %v2389
        %2576 = vmatprep.subr.mxu0 %v2386
        %2577 = vmatpush1.msra.mxu0 %v2385
        %2578 = vmatprep.subr.mxu0 %v2382
        %2579 = vmatpush1.msra.mxu0 %v2381
        %2580 = vmatprep.subr.mxu0 %v2378
        %2581 = vmatpush1.msra.mxu0 %v2377
        %2582 = vmatprep.subr.mxu0 0.0
        %2583 = vmatpush2.msra.mxu0 0.0
        %2584 = vmatprep.subr.mxu0 0.0
        %2585 = vmatpush2.msra.mxu0 0.0
        %2586 = vmatprep.subr.mxu0 0.0
        %2587 = vmatpush2.msra.mxu0 0.0
        %2588 = vmatprep.subr.mxu0 0.0
        %2589 = vmatpush2.msra.mxu0 0.0
        %2590 = vmatprep.subr.mxu0 0.0
        %2591 = vmatpush2.msra.mxu0 0.0
        %2592 = vmatprep.subr.mxu0 0.0
        %2593 = vmatpush2.msra.mxu0 0.0
        %2594 = vmatprep.subr.mxu0 0.0
        %2595 = vmatpush2.msra.mxu0 0.0
        %2596 = vmatprep.subr.mxu0 0.0
        %2597 = vmatpush2.msra.mxu0 0.0
        %2598 = vmatprep.subr.mxu0 0.0
        %2599 = vmatpush2.msra.mxu0 0.0
        %2600 = vmatprep.subr.mxu0 0.0
        %2601 = vmatpush2.msra.mxu0 0.0
        %2602 = vmatprep.subr.mxu0 0.0
        %2603 = vmatpush2.msra.mxu0 0.0
        %2604 = vmatprep.subr.mxu0 0.0
        %2605 = vmatpush2.msra.mxu0 0.0
        %2606 = vmatprep.subr.mxu0 0.0
        %2607 = vmatpush2.msra.mxu0 0.0
        %2608 = vmatprep.subr.mxu0 0.0
        %2609 = vmatpush2.msra.mxu0 0.0
        %2610 = vmatprep.subr.mxu0 0.0
        %2611 = vmatpush2.msra.mxu0 0.0
        %2612 = vmatprep.subr.mxu0 0.0
        %2613 = vmatpush2.msra.mxu0 0.0
        %2614 = vmatprep.mubr.f32.mxu0 0.0
        %2615 = vmatmul.mubr.f32.gmra.mxu0 %v2371
        %v2616 = vpop.f32.mrf.mxu0
        %v2617 = vadd.f32 %v2452, %v2616
        %v2618 = vpop.f32.mrf.mxu0
        %v2619 = vadd.f32 %v2456, %v2618
        %2620 = vmatprep.mubr.f32.mxu0 0.0
        %2621 = vmatmul.mubr.f32.gmra.mxu0 %v2372
        %v2622 = vpop.f32.mrf.mxu0
        %v2623 = vadd.f32 %v2452, %v2622
        %v2624 = vpop.f32.mrf.mxu0
        %v2625 = vadd.f32 %v2456, %v2624
        %2626 = vmatprep.mubr.f32.mxu0 0.0
        %2627 = vmatmul.mubr.f32.gmra.mxu0 %v2373
        %v2628 = vpop.f32.mrf.mxu0
        %v2629 = vadd.f32 %v2452, %v2628
        %v2630 = vpop.f32.mrf.mxu0
        %v2631 = vadd.f32 %v2456, %v2630
        %2632 = vmatprep.mubr.f32.mxu0 0.0
        %2633 = vmatmul.mubr.f32.gmra.mxu0 %v2374
        %v2634 = vpop.f32.mrf.mxu0
        %v2635 = vadd.f32 %v2452, %v2634
        %v2636 = vpop.f32.mrf.mxu0
        %v2637 = vadd.f32 %v2456, %v2636
        %2638 = vdwg.mxu0
        %v2639 = vmax.f32 %v2528, 0.0
        %v2640 = vmax.f32 %v2530, 0.0
        %v2641 = vmax.f32 %v2617, 0.0
        %v2642 = vmax.f32 %v2619, 0.0
        %v2643 = vmax.f32 %v2534, 0.0
        %v2644 = vmax.f32 %v2536, 0.0
        %v2645 = vmax.f32 %v2623, 0.0
        %v2646 = vmax.f32 %v2625, 0.0
        %v2647 = vmax.f32 %v2540, 0.0
        %v2648 = vmax.f32 %v2542, 0.0
        %v2649 = vmax.f32 %v2629, 0.0
        %v2650 = vmax.f32 %v2631, 0.0
        %v2651 = vmax.f32 %v2546, 0.0
        %v2652 = vmax.f32 %v2548, 0.0
        %v2653 = vmax.f32 %v2635, 0.0
        %v2654 = vmax.f32 %v2637, 0.0
        %v2655 = vld [vmem:[#allocation14] sm:$0xff]
        %v2656 = vld [vmem:[#allocation14 + $0x8] sm:$0xff]
        %v2657 = vld [vmem:[#allocation14 + $0x10] sm:$0xff]
        %v2658 = vld [vmem:[#allocation14 + $0x18] sm:$0xff]
        %v2659 = vld [vmem:[#allocation14 + $0x20] sm:$0xff]
        %v2660 = vld [vmem:[#allocation14 + $0x28] sm:$0xff]
        %v2661 = vld [vmem:[#allocation14 + $0x30] sm:$0xff]
        %v2662 = vld [vmem:[#allocation14 + $0x38] sm:$0xff]
        %v2663 = vld [vmem:[#allocation14 + $0x40] sm:$0xff]
        %v2664 = vld [vmem:[#allocation14 + $0x48] sm:$0xff]
        %v2665 = vld [vmem:[#allocation14 + $0x50] sm:$0xff]
        %v2666 = vld [vmem:[#allocation14 + $0x58] sm:$0xff]
        %v2667 = vld [vmem:[#allocation14 + $0x60] sm:$0xff]
        %v2668 = vld [vmem:[#allocation14 + $0x68] sm:$0xff]
        %v2669 = vld [vmem:[#allocation14 + $0x70] sm:$0xff]
        %v2670 = vld [vmem:[#allocation14 + $0x78] sm:$0xff]
        %v2671 = vld [vmem:[#allocation14 + $0x80] sm:$0xff]
        %v2672 = vld [vmem:[#allocation14 + $0x88] sm:$0xff]
        %v2673 = vld [vmem:[#allocation14 + $0x90] sm:$0xff]
        %v2674 = vld [vmem:[#allocation14 + $0x98] sm:$0xff]
        %v2675 = vld [vmem:[#allocation14 + $0xa0] sm:$0xff]
        %v2676 = vld [vmem:[#allocation14 + $0xa8] sm:$0xff]
        %v2677 = vld [vmem:[#allocation14 + $0xb0] sm:$0xff]
        %v2678 = vld [vmem:[#allocation14 + $0xb8] sm:$0xff]
        %v2679 = vld [vmem:[#allocation14 + $0xc0] sm:$0xff]
        %v2680 = vld [vmem:[#allocation14 + $0xc8] sm:$0xff]
        %v2681 = vld [vmem:[#allocation14 + $0xd0] sm:$0xff]
        %v2682 = vld [vmem:[#allocation14 + $0xd8] sm:$0xff]
        %v2683 = vld [vmem:[#allocation14 + $0xe0] sm:$0xff]
        %v2684 = vld [vmem:[#allocation14 + $0xe8] sm:$0xff]
        %v2685 = vld [vmem:[#allocation14 + $0xf0] sm:$0xff]
        %v2686 = vld [vmem:[#allocation14 + $0xf8] sm:$0xff]
        %v2687 = vld [vmem:[#allocation14 + $0x100] sm:$0xff]
        %v2688 = vld [vmem:[#allocation14 + $0x108] sm:$0xff]
        %v2689 = vld [vmem:[#allocation14 + $0x110] sm:$0xff]
        %v2690 = vld [vmem:[#allocation14 + $0x118] sm:$0xff]
        %v2691 = vld [vmem:[#allocation14 + $0x120] sm:$0xff]
        %v2692 = vld [vmem:[#allocation14 + $0x128] sm:$0xff]
        %v2693 = vld [vmem:[#allocation14 + $0x130] sm:$0xff]
        %v2694 = vld [vmem:[#allocation14 + $0x138] sm:$0xff]
        %v2695 = vld [vmem:[#allocation14 + $0x140] sm:$0xff]
        %v2696 = vld [vmem:[#allocation14 + $0x148] sm:$0xff]
        %v2697 = vld [vmem:[#allocation14 + $0x150] sm:$0xff]
        %v2698 = vld [vmem:[#allocation14 + $0x158] sm:$0xff]
        %v2699 = vld [vmem:[#allocation14 + $0x160] sm:$0xff]
        %v2700 = vld [vmem:[#allocation14 + $0x168] sm:$0xff]
        %v2701 = vld [vmem:[#allocation14 + $0x170] sm:$0xff]
        %v2702 = vld [vmem:[#allocation14 + $0x178] sm:$0xff]
        %v2703 = vld [vmem:[#allocation14 + $0x180] sm:$0xff]
        %v2704 = vld [vmem:[#allocation14 + $0x188] sm:$0xff]
        %v2705 = vld [vmem:[#allocation14 + $0x190] sm:$0xff]
        %v2706 = vld [vmem:[#allocation14 + $0x198] sm:$0xff]
        %v2707 = vld [vmem:[#allocation14 + $0x1a0] sm:$0xff]
        %v2708 = vld [vmem:[#allocation14 + $0x1a8] sm:$0xff]
        %v2709 = vld [vmem:[#allocation14 + $0x1b0] sm:$0xff]
        %v2710 = vld [vmem:[#allocation14 + $0x1b8] sm:$0xff]
        %v2711 = vld [vmem:[#allocation14 + $0x1c0] sm:$0xff]
        %v2712 = vld [vmem:[#allocation14 + $0x1c8] sm:$0xff]
        %v2713 = vld [vmem:[#allocation14 + $0x1d0] sm:$0xff]
        %v2714 = vld [vmem:[#allocation14 + $0x1d8] sm:$0xff]
        %v2715 = vld [vmem:[#allocation14 + $0x1e0] sm:$0xff]
        %v2716 = vld [vmem:[#allocation14 + $0x1e8] sm:$0xff]
        %v2717 = vld [vmem:[#allocation14 + $0x1f0] sm:$0xff]
        %v2718 = vld [vmem:[#allocation14 + $0x1f8] sm:$0xff]
        %v2719 = vlaneseq
        %v2720 = vshrl.u32 %v2719, 7
        %v2721 = vsub.s32 0, %v2720
        %v2722 = vrot.slane %v2309, %v2721
        %2723 = vmatprep.subr.mxu0 0.0
        %2724 = vmatpush1.msra.mxu0 %v2670
        %2725 = vmatprep.subr.mxu0 0.0
        %2726 = vmatpush1.msra.mxu0 %v2669
        %2727 = vmatprep.subr.mxu0 0.0
        %2728 = vmatpush1.msra.mxu0 %v2668
        %2729 = vmatprep.subr.mxu0 0.0
        %2730 = vmatpush1.msra.mxu0 %v2667
        %2731 = vmatprep.subr.mxu0 0.0
        %2732 = vmatpush1.msra.mxu0 %v2666
        %2733 = vmatprep.subr.mxu0 0.0
        %2734 = vmatpush1.msra.mxu0 %v2665
        %2735 = vmatprep.subr.mxu0 0.0
        %2736 = vmatpush1.msra.mxu0 %v2664
        %2737 = vmatprep.subr.mxu0 0.0
        %2738 = vmatpush1.msra.mxu0 %v2663
        %2739 = vmatprep.subr.mxu0 0.0
        %2740 = vmatpush1.msra.mxu0 %v2662
        %2741 = vmatprep.subr.mxu0 0.0
        %2742 = vmatpush1.msra.mxu0 %v2661
        %2743 = vmatprep.subr.mxu0 0.0
        %2744 = vmatpush1.msra.mxu0 %v2660
        %2745 = vmatprep.subr.mxu0 0.0
        %2746 = vmatpush1.msra.mxu0 %v2659
        %2747 = vmatprep.subr.mxu0 0.0
        %2748 = vmatpush1.msra.mxu0 %v2658
        %2749 = vmatprep.subr.mxu0 0.0
        %2750 = vmatpush1.msra.mxu0 %v2657
        %2751 = vmatprep.subr.mxu0 0.0
        %2752 = vmatpush1.msra.mxu0 %v2656
        %2753 = vmatprep.subr.mxu0 0.0
        %2754 = vmatpush1.msra.mxu0 %v2655
        %2755 = vmatprep.subr.mxu0 0.0
        %2756 = vmatpush2.msra.mxu0 %v2686
        %2757 = vmatprep.subr.mxu0 0.0
        %2758 = vmatpush2.msra.mxu0 %v2685
        %2759 = vmatprep.subr.mxu0 0.0
        %2760 = vmatpush2.msra.mxu0 %v2684
        %2761 = vmatprep.subr.mxu0 0.0
        %2762 = vmatpush2.msra.mxu0 %v2683
        %2763 = vmatprep.subr.mxu0 0.0
        %2764 = vmatpush2.msra.mxu0 %v2682
        %2765 = vmatprep.subr.mxu0 0.0
        %2766 = vmatpush2.msra.mxu0 %v2681
        %2767 = vmatprep.subr.mxu0 0.0
        %2768 = vmatpush2.msra.mxu0 %v2680
        %2769 = vmatprep.subr.mxu0 0.0
        %2770 = vmatpush2.msra.mxu0 %v2679
        %2771 = vmatprep.subr.mxu0 0.0
        %2772 = vmatpush2.msra.mxu0 %v2678
        %2773 = vmatprep.subr.mxu0 0.0
        %2774 = vmatpush2.msra.mxu0 %v2677
        %2775 = vmatprep.subr.mxu0 0.0
        %2776 = vmatpush2.msra.mxu0 %v2676
        %2777 = vmatprep.subr.mxu0 0.0
        %2778 = vmatpush2.msra.mxu0 %v2675
        %2779 = vmatprep.subr.mxu0 0.0
        %2780 = vmatpush2.msra.mxu0 %v2674
        %2781 = vmatprep.subr.mxu0 0.0
        %2782 = vmatpush2.msra.mxu0 %v2673
        %2783 = vmatprep.subr.mxu0 0.0
        %2784 = vmatpush2.msra.mxu0 %v2672
        %2785 = vmatprep.subr.mxu0 0.0
        %2786 = vmatpush2.msra.mxu0 %v2671
        %2787 = vmatprep.mubr.f32.mxu0 %v2640
        %2788 = vmatmul.mubr.f32.gmra.mxu0 %v2639
        %v2789 = vpop.f32.mrf.mxu0
        %v2790 = vadd.f32 %v2722, %v2789
        %v2791 = vpop.f32.mrf.mxu0
        %2792 = vmatprep.mubr.f32.mxu0 %v2644
        %2793 = vmatmul.mubr.f32.gmra.mxu0 %v2643
        %v2794 = vpop.f32.mrf.mxu0
        %v2795 = vadd.f32 %v2722, %v2794
        %v2796 = vpop.f32.mrf.mxu0
        %2797 = vmatprep.mubr.f32.mxu0 %v2648
        %2798 = vmatmul.mubr.f32.gmra.mxu0 %v2647
        %v2799 = vpop.f32.mrf.mxu0
        %v2800 = vadd.f32 %v2722, %v2799
        %v2801 = vpop.f32.mrf.mxu0
        %2802 = vmatprep.mubr.f32.mxu0 %v2652
        %2803 = vmatmul.mubr.f32.gmra.mxu0 %v2651
        %v2804 = vpop.f32.mrf.mxu0
        %v2805 = vadd.f32 %v2722, %v2804
        %v2806 = vpop.f32.mrf.mxu0
        %2807 = vdwg.mxu0
        %2808 = vmatprep.subr.mxu0 0.0
        %2809 = vmatpush1.msra.mxu0 %v2702
        %2810 = vmatprep.subr.mxu0 0.0
        %2811 = vmatpush1.msra.mxu0 %v2701
        %2812 = vmatprep.subr.mxu0 0.0
        %2813 = vmatpush1.msra.mxu0 %v2700
        %2814 = vmatprep.subr.mxu0 0.0
        %2815 = vmatpush1.msra.mxu0 %v2699
        %2816 = vmatprep.subr.mxu0 0.0
        %2817 = vmatpush1.msra.mxu0 %v2698
        %2818 = vmatprep.subr.mxu0 0.0
        %2819 = vmatpush1.msra.mxu0 %v2697
        %2820 = vmatprep.subr.mxu0 0.0
        %2821 = vmatpush1.msra.mxu0 %v2696
        %2822 = vmatprep.subr.mxu0 0.0
        %2823 = vmatpush1.msra.mxu0 %v2695
        %2824 = vmatprep.subr.mxu0 0.0
        %2825 = vmatpush1.msra.mxu0 %v2694
        %2826 = vmatprep.subr.mxu0 0.0
        %2827 = vmatpush1.msra.mxu0 %v2693
        %2828 = vmatprep.subr.mxu0 0.0
        %2829 = vmatpush1.msra.mxu0 %v2692
        %2830 = vmatprep.subr.mxu0 0.0
        %2831 = vmatpush1.msra.mxu0 %v2691
        %2832 = vmatprep.subr.mxu0 0.0
        %2833 = vmatpush1.msra.mxu0 %v2690
        %2834 = vmatprep.subr.mxu0 0.0
        %2835 = vmatpush1.msra.mxu0 %v2689
        %2836 = vmatprep.subr.mxu0 0.0
        %2837 = vmatpush1.msra.mxu0 %v2688
        %2838 = vmatprep.subr.mxu0 0.0
        %2839 = vmatpush1.msra.mxu0 %v2687
        %2840 = vmatprep.subr.mxu0 0.0
        %2841 = vmatpush2.msra.mxu0 %v2718
        %2842 = vmatprep.subr.mxu0 0.0
        %2843 = vmatpush2.msra.mxu0 %v2717
        %2844 = vmatprep.subr.mxu0 0.0
        %2845 = vmatpush2.msra.mxu0 %v2716
        %2846 = vmatprep.subr.mxu0 0.0
        %2847 = vmatpush2.msra.mxu0 %v2715
        %2848 = vmatprep.subr.mxu0 0.0
        %2849 = vmatpush2.msra.mxu0 %v2714
        %2850 = vmatprep.subr.mxu0 0.0
        %2851 = vmatpush2.msra.mxu0 %v2713
        %2852 = vmatprep.subr.mxu0 0.0
        %2853 = vmatpush2.msra.mxu0 %v2712
        %2854 = vmatprep.subr.mxu0 0.0
        %2855 = vmatpush2.msra.mxu0 %v2711
        %2856 = vmatprep.subr.mxu0 0.0
        %2857 = vmatpush2.msra.mxu0 %v2710
        %2858 = vmatprep.subr.mxu0 0.0
        %2859 = vmatpush2.msra.mxu0 %v2709
        %2860 = vmatprep.subr.mxu0 0.0
        %2861 = vmatpush2.msra.mxu0 %v2708
        %2862 = vmatprep.subr.mxu0 0.0
        %2863 = vmatpush2.msra.mxu0 %v2707
        %2864 = vmatprep.subr.mxu0 0.0
        %2865 = vmatpush2.msra.mxu0 %v2706
        %2866 = vmatprep.subr.mxu0 0.0
        %2867 = vmatpush2.msra.mxu0 %v2705
        %2868 = vmatprep.subr.mxu0 0.0
        %2869 = vmatpush2.msra.mxu0 %v2704
        %2870 = vmatprep.subr.mxu0 0.0
        %2871 = vmatpush2.msra.mxu0 %v2703
        %2872 = vmatprep.mubr.f32.mxu0 %v2642
        %2873 = vmatmul.mubr.f32.gmra.mxu0 %v2641
        %v2874 = vpop.f32.mrf.mxu0
        %v2875 = vadd.f32 %v2790, %v2874
        %v2876 = vpop.f32.mrf.mxu0
        %2877 = vmatprep.mubr.f32.mxu0 %v2646
        %2878 = vmatmul.mubr.f32.gmra.mxu0 %v2645
        %v2879 = vpop.f32.mrf.mxu0
        %v2880 = vadd.f32 %v2795, %v2879
        %v2881 = vpop.f32.mrf.mxu0
        %2882 = vmatprep.mubr.f32.mxu0 %v2650
        %2883 = vmatmul.mubr.f32.gmra.mxu0 %v2649
        %v2884 = vpop.f32.mrf.mxu0
        %v2885 = vadd.f32 %v2800, %v2884
        %v2886 = vpop.f32.mrf.mxu0
        %2887 = vmatprep.mubr.f32.mxu0 %v2654
        %2888 = vmatmul.mubr.f32.gmra.mxu0 %v2653
        %v2889 = vpop.f32.mrf.mxu0
        %v2890 = vadd.f32 %v2805, %v2889
        %v2891 = vpop.f32.mrf.mxu0
        %2892 = vdwg.mxu0
        %v2893 = vmax.f32 %v2875, -5.0
        %v2894 = vmax.f32 %v2880, -5.0
        %v2895 = vmax.f32 %v2885, -5.0
        %v2896 = vmax.f32 %v2890, -5.0
        %v2897 = vmin.f32 %v2893, 5.0
        %v2898 = vmin.f32 %v2894, 5.0
        %v2899 = vmin.f32 %v2895, 5.0
        %v2900 = vmin.f32 %v2896, 5.0
        %v2901 = vadd.f32 %v2371, %v2897
        %v2902 = vadd.f32 %v2372, %v2898
        %v2903 = vadd.f32 %v2373, %v2899
        %v2904 = vadd.f32 %v2374, %v2900
        %2905 = vadd.xlane.f32.xlu0 %v2901
        %v2906 = vpop.xlane.xlu0 %2905
        %2907 = vadd.xlane.f32.xlu0 %v2902
        %v2908 = vpop.xlane.xlu0 %2907
        %2909 = vadd.xlane.f32.xlu0 %v2903
        %v2910 = vpop.xlane.xlu0 %2909
        %2911 = vadd.xlane.f32.xlu0 %v2904
        %v2912 = vpop.xlane.xlu0 %2911
        %v2913 = vmul.f32 %v2906, %v2322
        %v2914 = vmul.f32 %v2908, %v2322
        %v2915 = vmul.f32 %v2910, %v2322
        %v2916 = vmul.f32 %v2912, %v2322
        %v2917 = vsub.f32 %v2901, %v2913
        %v2918 = vsub.f32 %v2902, %v2914
        %v2919 = vsub.f32 %v2903, %v2915
        %v2920 = vsub.f32 %v2904, %v2916
        %v2921 = vmul.f32 %v2917, %v2917
        %v2922 = vmul.f32 %v2918, %v2918
        %v2923 = vmul.f32 %v2919, %v2919
        %v2924 = vmul.f32 %v2920, %v2920
        %2925 = vadd.xlane.f32.xlu0 %v2921
        %v2926 = vpop.xlane.xlu0 %2925
        %2927 = vadd.xlane.f32.xlu0 %v2922
        %v2928 = vpop.xlane.xlu0 %2927
        %2929 = vadd.xlane.f32.xlu0 %v2923
        %v2930 = vpop.xlane.xlu0 %2929
        %2931 = vadd.xlane.f32.xlu0 %v2924
        %v2932 = vpop.xlane.xlu0 %2931
        %v2933 = vmul.f32 %v2926, %v2322
        %v2934 = vmul.f32 %v2928, %v2322
        %v2935 = vmul.f32 %v2930, %v2322
        %v2936 = vmul.f32 %v2932, %v2322
        %v2937 = vadd.f32 %v2933, 1e-05
        %v2938 = vadd.f32 %v2934, 1e-05
        %v2939 = vadd.f32 %v2935, 1e-05
        %v2940 = vadd.f32 %v2936, 1e-05
        %v2941 = vrsqrt.pop %v2937
        %v2942 = vrsqrt.pop %v2938
        %v2943 = vrsqrt.pop %v2939
        %v2944 = vrsqrt.pop %v2940
        %v2945 = vmul.f32 %v2917, %v2941
        %v2946 = vmul.f32 %v2918, %v2942
        %v2947 = vmul.f32 %v2919, %v2943
        %v2948 = vmul.f32 %v2920, %v2944
        %v2949 = vlaneseq
        %v2950 = vshrl.u32 %v2949, 7
        %v2951 = vsub.s32 0, %v2950
        %v2952 = vrot.slane %v2307, %v2951
        %v2953 = vmul.f32 %v2945, %v2952
        %v2954 = vmul.f32 %v2946, %v2952
        %v2955 = vmul.f32 %v2947, %v2952
        %v2956 = vmul.f32 %v2948, %v2952
        %v2957 = vlaneseq
        %v2958 = vshrl.u32 %v2957, 7
        %v2959 = vsub.s32 0, %v2958
        %v2960 = vrot.slane %v2308, %v2959
        %v2961 = vadd.f32 %v2953, %v2960
        %v2962 = vadd.f32 %v2954, %v2960
        %v2963 = vadd.f32 %v2955, %v2960
        %v2964 = vadd.f32 %v2956, %v2960
        %2965 = vst [vmem:[%s425] sm:$0xff] %v2961
        %2966 = vst [vmem:[%s425 + $0x8] sm:$0xff] %v2962
        %2967 = vst [vmem:[%s425 + $0x10] sm:$0xff] %v2963
        %2968 = vst [vmem:[%s425 + $0x18] sm:$0xff] %v2964
        %s2969 = sand.u32 %s250, 1
        %s2970 = scalar_lea.sflag [#allocation8], %s2969
        %s2971 = sand.u32 %s250, 1
        %s2972 = smul.addr %s2971, 32
        %s2973 = scalar_lea.vmem [#allocation15], %s2972
        // Predicated region
        $region81: #{tpu_custom_call.1} parent=59 // pred_check
          %p2974 = pneg %p260
        $region82: #{tpu_custom_call.1} parent=59 // pred_check_branch
          %2976 = sbr.rel (%p2974) target = $region84
        $region83: #{tpu_custom_call.1} parent=59 // pred_region
          %s2978 = ssub.s32 512, 512
          %2979 = vsyncadd %s2970, %s2978
          %s2980 = smul.addr %s27, 4
          %s2981 = smul.addr %s2980, 128
          %s2982 = scalar_lea.hbm %s10, %s2981
          %s2983 = sshll.u32 %s2973, 4
          %s2984 = int_to_ptr.vmem [resolvable:$true] %s2983
          %2989 = dma.vmem_to_hbm [thread:$0]  %s2984, 512, %s2982, %s2970, 128, 128, 8
        $region84: #{tpu_custom_call.1} parent=59 // pred_fallthru
          _
      $region60: #{tpu_custom_call.1} parent=5 // pred_fallthru
        _
      %p2990 = scmp.le.s32.totalorder 2, %s22
      // Predicated region
      $region85: #{tpu_custom_call.1} parent=5 // pred_check
        %p2991 = pneg %p2990
      $region86: #{tpu_custom_call.1} parent=5 // pred_check_branch
        %2993 = sbr.rel (%p2991) target = $region88
      $region87: #{tpu_custom_call.1} parent=5 // pred_region
        %s2994 = ssub.s32 %s22, 2
        // Predicated region
        $region89: #{tpu_custom_call.1} parent=87 // pred_check
          %p2995 = pneg %p266
        $region90: #{tpu_custom_call.1} parent=87 // pred_check_branch
          %2997 = sbr.rel (%p2995) target = $region92
        $region91: #{tpu_custom_call.1} parent=87 // pred_region
          %s2998 = sand.u32 %s251, 1
          %s2999 = scalar_lea.sflag [#allocation8], %s2998
          %s3000 = sand.u32 %s251, 1
          %s3001 = smul.addr %s3000, 32
          %s3002 = scalar_lea.vmem [#allocation15], %s3001
          %3003 = dma.done %s2999, 512
        $region92: #{tpu_custom_call.1} parent=87 // pred_fallthru
          _
      $region88: #{tpu_custom_call.1} parent=5 // pred_fallthru
        _
    $region6: #{tpu_custom_call.1} parent=1 // loop_footer
      %s26 = sadd.s32 1, %s22
    $region7: #{tpu_custom_call.1} parent=1 // loop_footer_branch
      %21 = sbr.rel target = $region3
    $region8: #{tpu_custom_call.1} parent=1 // loop_exit
      _
    %3004 = vsyncpa [#allocation7], 1
    %s3005 = scalar_lea.sflag [#allocation7], 1
    %3006 = vsyncpa %s3005, 1
    %3007 = vsyncpa [#allocation10], 1
    %3008 = vsyncpa [#allocation13], 1
    %3009 = vsyncpa [#allocation8], 1
    %s3010 = scalar_lea.sflag [#allocation8], 1
    %3011 = vsyncpa %s3010, 1

</llo_original>
